<compile_context>
chip_gen: v5e
topology: v5e:2x2
jax: 0.10.0
libtpu: 0.0.40
codegen_flags: <defaults>
</compile_context>

<pallas_src>
import math

import numpy as np
import jax
import jax.numpy as jnp
from jax.experimental import pallas as pl
from jax.experimental.pallas import tpu as pltpu

# ----------------------- module hyper-parameters -----------------------
HIDDEN = 32             # config.hidden_size (small for the demo)
FFN = 256               # SparseTop2MLP default intermediate_size (experts use the default)
NUM_EXPERTS = 12
TOP_K = 2
NUM_CLUSTER = 2
CAPACITY_FACTOR = 1.25  # getattr(moe_config, "capacity_factor", 1.25)
MIN_CAPACITY = None     # getattr(moe_config, "min_capacity", None)


def round_up(x, m):
    return ((x + m - 1) // m) * m


def pad_capacity(capacity):
    # bf16 vregs pack 16 sublanes -> Cp must be a multiple of 16.  Once capacity is large
    # enough that pad waste is small, align to the MXU height (128 on v5e, 256 on
    # v6e/v7x) so the expert matmuls run with full MXU rows.
    if capacity >= 512:
        return round_up(capacity, 256)
    if capacity >= 128:
        return round_up(capacity, 128)
    return round_up(max(capacity, 1), 16)


def _vmem_step_bytes(eb, cp, hp, tf):
    x_b = eb * cp * hp * 2          # bf16 routed tokens
    w13_b = eb * 2 * hp * tf * 2    # bf16 fused f1/f3 tile
    w2_b = eb * tf * hp * 2         # bf16 f2 tile
    cwc_b = eb * cp * 1 * 4         # fp32 combine weights
    out_b = eb * cp * hp * 4        # fp32 output block
    acc_b = eb * cp * hp * 4        # fp32 accumulator scratch
    # inputs & outputs are double-buffered by the BlockSpec pipeline; scratch is single.
    return 2 * (x_b + w13_b + w2_b + cwc_b + out_b) + acc_b


def pick_tiles(E, Cp, Hp, F, budget_bytes=40 * 2**20):
    """Pick (experts_per_step, f_tile) so the double-buffered working set fits VMEM.

    40 MiB default budget is v7x-safe (64 MiB physical); v5e/v6e (128 MiB) simply get
    more headroom — raise the budget / f_tile there if weight DMA is still exposed
    (optionally also pipeline_mode=pl.Buffered(3) on the weight BlockSpecs).
    """
    # F tile: largest 128-multiple divisor of F, capped at 512 (bounds a single expert's
    # double-buffered w13/w2 tiles on v7x).  Fallback: the full F (then it's the full dim
    # of the block, which is always legal).
    tile_f = F
    for cand in (512, 384, 256, 128):
        if cand <= F and F % cand == 0:
            tile_f = cand
            break
    # Experts per grid step: fatter steps amortize the ~0.35us/step pipeline overhead
    # (dominant at small capacities) while staying inside the VMEM budget.
    eb = 1
    for cand in range(min(E, 8), 0, -1):
        if E % cand == 0 and _vmem_step_bytes(cand, Cp, Hp, tile_f) <= budget_bytes:
            eb = cand
            break
    return eb, tile_f


# ----------------------------- Pallas kernel -----------------------------
def expert_mlp_kernel(x_ref, w13_ref, w2_ref, cwc_ref, o_ref, acc_ref):
    # grid = (expert_blocks, f_tiles); this step: EB experts x one F tile.
    f = pl.program_id(1)

    @pl.when(f == 0)
    def _init():
        acc_ref[...] = jnp.zeros_like(acc_ref)

    eb = x_ref.shape[0]                                   # static
    for e in range(eb):                                   # static unroll over experts in block
        x = x_ref[e]                                      # [Cp, Hp] bf16
        # f1 / f3 for this F tile: two bf16 MXU matmuls with fp32 accumulation.
        h1 = jnp.dot(x, w13_ref[e, 0], preferred_element_type=jnp.float32)   # [Cp, TF]
        h3 = jnp.dot(x, w13_ref[e, 1], preferred_element_type=jnp.float32)   # [Cp, TF]
        p = h1 * h3
        g = p * jax.nn.sigmoid(p)                         # SiLU(f1(x) * f3(x)) — as in spec
        # f2 partial contraction over this F tile, accumulated in fp32 scratch.
        acc_ref[e] += jnp.dot(g.astype(jnp.bfloat16), w2_ref[e],
                              preferred_element_type=jnp.float32)            # [Cp, Hp]

    @pl.when(f == pl.num_programs(1) - 1)
    def _finalize():
        # Fused combine-weight multiply; padded / dropped slots carry cwc == 0.
        o_ref[...] = (acc_ref[...] * cwc_ref[...]).astype(o_ref.dtype)


def moe_experts(xg, w13, w2, cwc):
    """xg: [E, Cp, Hp] bf16 routed tokens; w13: [E, 2, Hp, F] bf16; w2: [E, F, Hp] bf16;
    cwc: [E, Cp, 1] fp32 combine weights.  Returns [E, Cp, Hp] fp32."""
    E, Cp, Hp = xg.shape
    F = w13.shape[-1]
    eb, tf = pick_tiles(E, Cp, Hp, F)
    num_f = F // tf
    ws = _vmem_step_bytes(eb, Cp, Hp, tf)
    # Explicit VMEM budget: above the scoped defaults (16/32 MiB), below v7x's 64 MiB.
    vmem_limit = int(min(max(ws + (8 << 20), 32 << 20), 56 << 20))

    cost = pl.CostEstimate(
        flops=6 * E * Cp * Hp * F,                       # 2 gate matmuls + 1 down matmul
        transcendentals=E * Cp * F,                      # sigmoid
        bytes_accessed=(w13.size + w2.size + xg.size) * 2 + cwc.size * 4 + E * Cp * Hp * 4,
    )

    return pl.pallas_call(
        expert_mlp_kernel,
        out_shape=jax.ShapeDtypeStruct((E, Cp, Hp), jnp.float32),
        grid_spec=pltpu.PrefetchScalarGridSpec(
            num_scalar_prefetch=0,
            grid=(E // eb, num_f),
            in_specs=[
                pl.BlockSpec((eb, Cp, Hp), lambda e, f: (e, 0, 0)),       # tokens
                pl.BlockSpec((eb, 2, Hp, tf), lambda e, f: (e, 0, 0, f)),  # fused w1/w3 tile
                pl.BlockSpec((eb, tf, Hp), lambda e, f: (e, f, 0)),        # w2 tile
                pl.BlockSpec((eb, Cp, 1), lambda e, f: (e, 0, 0)),         # combine weights
            ],
            out_specs=pl.BlockSpec((eb, Cp, Hp), lambda e, f: (e, 0, 0)),
            scratch_shapes=[pltpu.VMEM((eb, Cp, Hp), jnp.float32)],
        ),
        compiler_params=pltpu.CompilerParams(
            dimension_semantics=("parallel", "arbitrary"),
            vmem_limit_bytes=vmem_limit,
        ),
        cost_estimate=cost,
    )(xg, w13, w2, cwc)


# ----------------------------- routing glue -----------------------------
def get_capacity(num_tokens, num_experts, capacity_factor, min_capacity=None):
    capacity = math.ceil(num_tokens / num_experts * capacity_factor)
    if min_capacity is not None and capacity < min_capacity:
        capacity = min_capacity
    return capacity


def moe_block_rs_forward(hidden_states, params, w13p, w2p, cluster_index_list):
    B, S, H = hidden_states.shape
    N = B * S
    E = NUM_EXPERTS
    x2 = hidden_states.reshape(N, H)

    # PyTorch: cluster_index_count starts at 0 -> gate index = cluster_index_list[-1]
    # (the counter is never advanced inside forward(), so every row uses the same gate).
    gate_index = int(cluster_index_list[-1])
    gw = params["gate_w"][gate_index]                      # [E, H] nn.Linear weight
    router_logits = jnp.dot(x2, gw.T)                      # tiny matmul: plain XLA
    probs = jax.nn.softmax(router_logits, axis=-1)
    rw, sel = jax.lax.top_k(probs, TOP_K)                  # [N, K]
    rw = rw / jnp.sum(rw, axis=-1, keepdims=True)

    capacity = get_capacity(N, E, CAPACITY_FACTOR, MIN_CAPACITY)
    Cp = pad_capacity(capacity)                            # 16-multiple (bf16 sublanes)
    Hp = w13p.shape[2]                                     # 128-multiple hidden dim

    # Per-expert dispatch tables, mirroring torch.where(expert_mask[e]) row-major order:
    # slot-0 assignments in token order first, then slot-1; keep the first `capacity`.
    onehot = jax.nn.one_hot(sel, E, dtype=jnp.int32)       # [N, K, E]
    cum0 = jnp.cumsum(onehot[:, 0, :], axis=0)
    cum1 = jnp.cumsum(onehot[:, 1, :], axis=0)
    rank0 = cum0 - 1                                       # slot-0 position within expert
    rank1 = cum0[-1][None, :] + cum1 - 1                   # slot-1 position (after slot-0)
    tok = jnp.arange(N, dtype=jnp.int32)
    e0, e1 = sel[:, 0], sel[:, 1]
    p0 = rank0[tok, e0]
    p1 = rank1[tok, e1]
    # positions beyond capacity are pushed out of bounds and dropped by the scatter
    p0 = jnp.where(p0 < capacity, p0, Cp)
    p1 = jnp.where(p1 < capacity, p1, Cp)
    idx = jnp.zeros((E, Cp), jnp.int32).at[e0, p0].set(tok, mode="drop")
    idx = idx.at[e1, p1].set(tok, mode="drop")
    cwc = jnp.zeros((E, Cp), jnp.float32).at[e0, p0].set(rw[:, 0], mode="drop")
    cwc = cwc.at[e1, p1].set(rw[:, 1], mode="drop")

    # Gather routed token rows (padded slots point at row 0 but carry weight 0 -> exact).
    x2p = jnp.pad(x2, ((0, 0), (0, Hp - H))).astype(jnp.bfloat16)
    xg = x2p[idx.reshape(-1)].reshape(E, Cp, Hp)

    # Expert MLPs + combine-weight multiply in Pallas (bf16 MXU, fp32 accumulation).
    yg = moe_experts(xg, w13p, w2p, cwc[..., None])        # [E, Cp, Hp] fp32

    # Scatter-add back to token order (fp32, duplicates add; dropped/padded slots add 0).
    contrib = yg[:, :, :H].reshape(E * Cp, H)
    out2 = jnp.zeros((N, H), jnp.float32).at[idx.reshape(-1)].add(contrib)
    return out2.reshape(B, S, H), sel, rw, capacity


# ---------------------- deterministic parameter init ----------------------
def init_params(key):
    k = jax.random.split(key, 4)
    gate_w = 0.05 * jax.random.normal(
        k[0], (NUM_CLUSTER, NUM_EXPERTS, HIDDEN), jnp.float32)    # nn.Linear(H, E) weights
    w1 = 0.05 * jax.random.normal(k[1], (NUM_EXPERTS, HIDDEN, FFN), jnp.float32)
    w3 = 0.05 * jax.random.normal(k[2], (NUM_EXPERTS, HIDDEN, FFN), jnp.float32)
    w2 = 0.05 * jax.random.normal(k[3], (NUM_EXPERTS, FFN, HIDDEN), jnp.float32)
    return dict(gate_w=gate_w, w1=w1, w3=w3, w2=w2)


def prepare_expert_weights(params):
    """One-time prep: stack w1/w3 as [E, 2, Hp, F] (contiguous F tiles), pad hidden to a
    multiple of 128, cast to bf16."""
    w1, w3, w2 = params["w1"], params["w3"], params["w2"]
    E, H, F = w1.shape
    Hp = round_up(H, 128)
    w13 = jnp.stack([w1, w3], axis=1)                                        # [E, 2, H, F]
    w13p = jnp.pad(w13, ((0, 0), (0, 0), (0, Hp - H), (0, 0))).astype(jnp.bfloat16)
    w2p = jnp.pad(w2, ((0, 0), (0, 0), (0, Hp - H))).astype(jnp.bfloat16)    # [E, F, Hp]
    return w13p, w2p


# ----------------------- numpy reference (PyTorch-style) -----------------------
def ref_forward_np(x2, sel, rw, w1, w3, w2, capacity, num_experts):
    """Mirrors the PyTorch per-expert where/capacity/gather/index_add_ loop."""
    N, H = x2.shape
    out = np.zeros((N, H), dtype=np.float32)
    for e in range(num_experts):
        pairs = []  # (slot, token) in row-major order of expert_mask[e] ([K, N])
        for slot in range(rw.shape[1]):
            for t in range(N):
                if sel[t, slot] == e:
                    pairs.append((slot, t))
        pairs = pairs[:capacity]
        for slot, t in pairs:
            h = x2[t]
            h1 = h @ w1[e]
            h3 = h @ w3[e]
            p = h1 * h3
            g = p / (1.0 + np.exp(-p))        # SiLU(f1*f3)
            y = g @ w2[e]
            out[t] += y * rw[t, slot]
    return out


# --------------------------------- main ---------------------------------
if __name__ == "__main__":
    key = jax.random.PRNGKey(0)
    pkey, xkey = jax.random.split(key)
    params = init_params(pkey)
    w13p, w2p = prepare_expert_weights(params)

    B, S = 2, 8
    x = jax.random.normal(xkey, (B, S, HIDDEN), jnp.float32)
    cluster_index_list = [0, 1]   # cluster_index_count == 0 -> gate index = list[-1] = 1

    out, sel, rw, capacity = moe_block_rs_forward(x, params, w13p, w2p, cluster_index_list)
    out = jax.block_until_ready(out)

    # Reference on bf16-rounded inputs/weights (the kernel's MXU path is bf16 with fp32
    # accumulation); remaining difference is only the bf16 cast of the gated activation.
    def to_f32(a):
        return np.asarray(a.astype(jnp.bfloat16).astype(jnp.float32))

    ref = ref_forward_np(
        to_f32(jnp.asarray(x).reshape(B * S, HIDDEN)),
        np.asarray(sel), np.asarray(rw),
        to_f32(params["w1"]), to_f32(params["w3"]), to_f32(params["w2"]),
        capacity, NUM_EXPERTS)

    np.testing.assert_allclose(np.asarray(out).reshape(B * S, HIDDEN), ref,
                               rtol=2e-2, atol=2e-3)
    print("KERNEL_OK")
</pallas_src>

<mosaic_0001>
module attributes {stable_mosaic.version = 11 : i64} {
  func.func @expert_mlp_kernel(%arg0: i32, %arg1: i32, %arg2: memref<6x16x128xbf16, #tpu.memory_space<vmem>>, %arg3: memref<6x2x128x256xbf16, #tpu.memory_space<vmem>>, %arg4: memref<6x256x128xbf16, #tpu.memory_space<vmem>>, %arg5: memref<6x16x1xf32, #tpu.memory_space<vmem>>, %arg6: memref<6x16x128xf32, #tpu.memory_space<vmem>>, %arg7: memref<6x16x128xf32, #tpu.memory_space<vmem>>) attributes {dimension_semantics = [#tpu.dimension_semantics<parallel>, #tpu.dimension_semantics<arbitrary>], iteration_bounds = array<i64: 2, 1>, scalar_prefetch = 0 : i64, scratch_operands = 1 : i64, tpu.core_type = #tpu.core_type<tc>, window_params = [{transform_indices = @transform_0, window_bounds = array<i64: 6, 16, 128>}, {transform_indices = @transform_1, window_bounds = array<i64: 6, 2, 128, 256>}, {transform_indices = @transform_2, window_bounds = array<i64: 6, 256, 128>}, {transform_indices = @transform_3, window_bounds = array<i64: 6, 16, 1>}, {transform_indices = @transform_4, window_bounds = array<i64: 6, 16, 128>}]} {
    %c0_i32 = arith.constant 0 : i32
    %0 = arith.cmpi eq, %arg1, %c0_i32 : i32
    %1 = arith.extui %0 : i1 to i32
    %c0_i32_0 = arith.constant 0 : i32
    %2 = arith.cmpi ne, %1, %c0_i32_0 : i32
    scf.if %2 {
      %cst_140 = arith.constant 0.000000e+00 : f32
      %156 = vector.broadcast %cst_140 : f32 to vector<6x16x128xf32>
      %c0_141 = arith.constant 0 : index
      %c0_142 = arith.constant 0 : index
      %c0_143 = arith.constant 0 : index
      %157 = vector.load %arg7[%c0_141, %c0_142, %c0_143] : memref<6x16x128xf32, #tpu.memory_space<vmem>>, vector<6x16x128xf32>
      tpu.vector_store %arg7[%c0_141, %c0_142, %c0_143], %156 {strides = array<i32>} : memref<6x16x128xf32, #tpu.memory_space<vmem>>, vector<6x16x128xf32>,
    } else {
    }
    %c0 = arith.constant 0 : index
    %c0_1 = arith.constant 0 : index
    %c0_2 = arith.constant 0 : index
    %3 = vector.load %arg2[%c0, %c0_1, %c0_2] : memref<6x16x128xbf16, #tpu.memory_space<vmem>>, vector<1x16x128xbf16>
    %4 = vector.shape_cast %3 : vector<1x16x128xbf16> to vector<16x128xbf16>
    %c0_3 = arith.constant 0 : index
    %c0_4 = arith.constant 0 : index
    %c0_5 = arith.constant 0 : index
    %c0_6 = arith.constant 0 : index
    %5 = vector.load %arg3[%c0_3, %c0_4, %c0_5, %c0_6] : memref<6x2x128x256xbf16, #tpu.memory_space<vmem>>, vector<1x1x128x256xbf16>
    %6 = vector.shape_cast %5 : vector<1x1x128x256xbf16> to vector<128x256xbf16>
    %cst = arith.constant dense<0.000000e+00> : vector<16x256xf32>
    %7 = tpu.matmul %4, %6, %cst {dimension_numbers = #tpu.dot_dimension_numbers<[1], [0], [0], [1], [0, 0, 1, 1], [], []>} : vector<16x128xbf16>, vector<128x256xbf16>, vector<16x256xf32> -> vector<16x256xf32>
    %c0_7 = arith.constant 0 : index
    %c1 = arith.constant 1 : index
    %c0_8 = arith.constant 0 : index
    %c0_9 = arith.constant 0 : index
    %8 = vector.load %arg3[%c0_7, %c1, %c0_8, %c0_9] : memref<6x2x128x256xbf16, #tpu.memory_space<vmem>>, vector<1x1x128x256xbf16>
    %9 = vector.shape_cast %8 : vector<1x1x128x256xbf16> to vector<128x256xbf16>
    %cst_10 = arith.constant dense<0.000000e+00> : vector<16x256xf32>
    %10 = tpu.matmul %4, %9, %cst_10 {dimension_numbers = #tpu.dot_dimension_numbers<[1], [0], [0], [1], [0, 0, 1, 1], [], []>} : vector<16x128xbf16>, vector<128x256xbf16>, vector<16x256xf32> -> vector<16x256xf32>
    %11 = arith.mulf %7, %10 : vector<16x256xf32>
    %12 = arith.negf %11 : vector<16x256xf32>
    %13 = math.exp %12 : vector<16x256xf32>
    %cst_11 = arith.constant 1.000000e+00 : f32
    %14 = vector.broadcast %cst_11 : f32 to vector<16x256xf32>
    %15 = arith.addf %14, %13 : vector<16x256xf32>
    %16 = arith.divf %14, %15 : vector<16x256xf32>
    %17 = arith.mulf %11, %16 : vector<16x256xf32>
    %c0_12 = arith.constant 0 : index
    %c0_13 = arith.constant 0 : index
    %c0_14 = arith.constant 0 : index
    %18 = vector.load %arg7[%c0_12, %c0_13, %c0_14] : memref<6x16x128xf32, #tpu.memory_space<vmem>>, vector<1x16x128xf32>
    %19 = vector.shape_cast %18 : vector<1x16x128xf32> to vector<16x128xf32>
    %20 = arith.truncf %17 : vector<16x256xf32> to vector<16x256xbf16>
    %c0_15 = arith.constant 0 : index
    %c0_16 = arith.constant 0 : index
    %c0_17 = arith.constant 0 : index
    %21 = vector.load %arg4[%c0_15, %c0_16, %c0_17] : memref<6x256x128xbf16, #tpu.memory_space<vmem>>, vector<1x256x128xbf16>
    %22 = vector.shape_cast %21 : vector<1x256x128xbf16> to vector<256x128xbf16>
    %cst_18 = arith.constant dense<0.000000e+00> : vector<16x128xf32>
    %23 = tpu.matmul %20, %22, %cst_18 {dimension_numbers = #tpu.dot_dimension_numbers<[1], [0], [0], [1], [0, 0, 1, 1], [], []>} : vector<16x256xbf16>, vector<256x128xbf16>, vector<16x128xf32> -> vector<16x128xf32>
    %24 = arith.addf %19, %23 : vector<16x128xf32>
    %c0_19 = arith.constant 0 : index
    %c0_20 = arith.constant 0 : index
    %c0_21 = arith.constant 0 : index
    %25 = vector.load %arg7[%c0_19, %c0_20, %c0_21] : memref<6x16x128xf32, #tpu.memory_space<vmem>>, vector<1x16x128xf32>
    %26 = vector.shape_cast %25 : vector<1x16x128xf32> to vector<16x128xf32>
    %27 = vector.shape_cast %24 : vector<16x128xf32> to vector<1x16x128xf32>
    tpu.vector_store %arg7[%c0_19, %c0_20, %c0_21], %27 {strides = array<i32>} : memref<6x16x128xf32, #tpu.memory_space<vmem>>, vector<1x16x128xf32>,
    %c1_22 = arith.constant 1 : index
    %c0_23 = arith.constant 0 : index
    %c0_24 = arith.constant 0 : index
    %28 = vector.load %arg2[%c1_22, %c0_23, %c0_24] : memref<6x16x128xbf16, #tpu.memory_space<vmem>>, vector<1x16x128xbf16>
    %29 = vector.shape_cast %28 : vector<1x16x128xbf16> to vector<16x128xbf16>
    %c1_25 = arith.constant 1 : index
    %c0_26 = arith.constant 0 : index
    %c0_27 = arith.constant 0 : index
    %c0_28 = arith.constant 0 : index
    %30 = vector.load %arg3[%c1_25, %c0_26, %c0_27, %c0_28] : memref<6x2x128x256xbf16, #tpu.memory_space<vmem>>, vector<1x1x128x256xbf16>
    %31 = vector.shape_cast %30 : vector<1x1x128x256xbf16> to vector<128x256xbf16>
    %cst_29 = arith.constant dense<0.000000e+00> : vector<16x256xf32>
    %32 = tpu.matmul %29, %31, %cst_29 {dimension_numbers = #tpu.dot_dimension_numbers<[1], [0], [0], [1], [0, 0, 1, 1], [], []>} : vector<16x128xbf16>, vector<128x256xbf16>, vector<16x256xf32> -> vector<16x256xf32>
    %c1_30 = arith.constant 1 : index
    %c1_31 = arith.constant 1 : index
    %c0_32 = arith.constant 0 : index
    %c0_33 = arith.constant 0 : index
    %33 = vector.load %arg3[%c1_30, %c1_31, %c0_32, %c0_33] : memref<6x2x128x256xbf16, #tpu.memory_space<vmem>>, vector<1x1x128x256xbf16>
    %34 = vector.shape_cast %33 : vector<1x1x128x256xbf16> to vector<128x256xbf16>
    %cst_34 = arith.constant dense<0.000000e+00> : vector<16x256xf32>
    %35 = tpu.matmul %29, %34, %cst_34 {dimension_numbers = #tpu.dot_dimension_numbers<[1], [0], [0], [1], [0, 0, 1, 1], [], []>} : vector<16x128xbf16>, vector<128x256xbf16>, vector<16x256xf32> -> vector<16x256xf32>
    %36 = arith.mulf %32, %35 : vector<16x256xf32>
    %37 = arith.negf %36 : vector<16x256xf32>
    %38 = math.exp %37 : vector<16x256xf32>
    %cst_35 = arith.constant 1.000000e+00 : f32
    %39 = vector.broadcast %cst_35 : f32 to vector<16x256xf32>
    %40 = arith.addf %39, %38 : vector<16x256xf32>
    %41 = arith.divf %39, %40 : vector<16x256xf32>
    %42 = arith.mulf %36, %41 : vector<16x256xf32>
    %c1_36 = arith.constant 1 : index
    %c0_37 = arith.constant 0 : index
    %c0_38 = arith.constant 0 : index
    %43 = vector.load %arg7[%c1_36, %c0_37, %c0_38] : memref<6x16x128xf32, #tpu.memory_space<vmem>>, vector<1x16x128xf32>
    %44 = vector.shape_cast %43 : vector<1x16x128xf32> to vector<16x128xf32>
    %45 = arith.truncf %42 : vector<16x256xf32> to vector<16x256xbf16>
    %c1_39 = arith.constant 1 : index
    %c0_40 = arith.constant 0 : index
    %c0_41 = arith.constant 0 : index
    %46 = vector.load %arg4[%c1_39, %c0_40, %c0_41] : memref<6x256x128xbf16, #tpu.memory_space<vmem>>, vector<1x256x128xbf16>
    %47 = vector.shape_cast %46 : vector<1x256x128xbf16> to vector<256x128xbf16>
    %cst_42 = arith.constant dense<0.000000e+00> : vector<16x128xf32>
    %48 = tpu.matmul %45, %47, %cst_42 {dimension_numbers = #tpu.dot_dimension_numbers<[1], [0], [0], [1], [0, 0, 1, 1], [], []>} : vector<16x256xbf16>, vector<256x128xbf16>, vector<16x128xf32> -> vector<16x128xf32>
    %49 = arith.addf %44, %48 : vector<16x128xf32>
    %c1_43 = arith.constant 1 : index
    %c0_44 = arith.constant 0 : index
    %c0_45 = arith.constant 0 : index
    %50 = vector.load %arg7[%c1_43, %c0_44, %c0_45] : memref<6x16x128xf32, #tpu.memory_space<vmem>>, vector<1x16x128xf32>
    %51 = vector.shape_cast %50 : vector<1x16x128xf32> to vector<16x128xf32>
    %52 = vector.shape_cast %49 : vector<16x128xf32> to vector<1x16x128xf32>
    tpu.vector_store %arg7[%c1_43, %c0_44, %c0_45], %52 {strides = array<i32>} : memref<6x16x128xf32, #tpu.memory_space<vmem>>, vector<1x16x128xf32>,
    %c2 = arith.constant 2 : index
    %c0_46 = arith.constant 0 : index
    %c0_47 = arith.constant 0 : index
    %53 = vector.load %arg2[%c2, %c0_46, %c0_47] : memref<6x16x128xbf16, #tpu.memory_space<vmem>>, vector<1x16x128xbf16>
    %54 = vector.shape_cast %53 : vector<1x16x128xbf16> to vector<16x128xbf16>
    %c2_48 = arith.constant 2 : index
    %c0_49 = arith.constant 0 : index
    %c0_50 = arith.constant 0 : index
    %c0_51 = arith.constant 0 : index
    %55 = vector.load %arg3[%c2_48, %c0_49, %c0_50, %c0_51] : memref<6x2x128x256xbf16, #tpu.memory_space<vmem>>, vector<1x1x128x256xbf16>
    %56 = vector.shape_cast %55 : vector<1x1x128x256xbf16> to vector<128x256xbf16>
    %cst_52 = arith.constant dense<0.000000e+00> : vector<16x256xf32>
    %57 = tpu.matmul %54, %56, %cst_52 {dimension_numbers = #tpu.dot_dimension_numbers<[1], [0], [0], [1], [0, 0, 1, 1], [], []>} : vector<16x128xbf16>, vector<128x256xbf16>, vector<16x256xf32> -> vector<16x256xf32>
    %c2_53 = arith.constant 2 : index
    %c1_54 = arith.constant 1 : index
    %c0_55 = arith.constant 0 : index
    %c0_56 = arith.constant 0 : index
    %58 = vector.load %arg3[%c2_53, %c1_54, %c0_55, %c0_56] : memref<6x2x128x256xbf16, #tpu.memory_space<vmem>>, vector<1x1x128x256xbf16>
    %59 = vector.shape_cast %58 : vector<1x1x128x256xbf16> to vector<128x256xbf16>
    %cst_57 = arith.constant dense<0.000000e+00> : vector<16x256xf32>
    %60 = tpu.matmul %54, %59, %cst_57 {dimension_numbers = #tpu.dot_dimension_numbers<[1], [0], [0], [1], [0, 0, 1, 1], [], []>} : vector<16x128xbf16>, vector<128x256xbf16>, vector<16x256xf32> -> vector<16x256xf32>
    %61 = arith.mulf %57, %60 : vector<16x256xf32>
    %62 = arith.negf %61 : vector<16x256xf32>
    %63 = math.exp %62 : vector<16x256xf32>
    %cst_58 = arith.constant 1.000000e+00 : f32
    %64 = vector.broadcast %cst_58 : f32 to vector<16x256xf32>
    %65 = arith.addf %64, %63 : vector<16x256xf32>
    %66 = arith.divf %64, %65 : vector<16x256xf32>
    %67 = arith.mulf %61, %66 : vector<16x256xf32>
    %c2_59 = arith.constant 2 : index
    %c0_60 = arith.constant 0 : index
    %c0_61 = arith.constant 0 : index
    %68 = vector.load %arg7[%c2_59, %c0_60, %c0_61] : memref<6x16x128xf32, #tpu.memory_space<vmem>>, vector<1x16x128xf32>
    %69 = vector.shape_cast %68 : vector<1x16x128xf32> to vector<16x128xf32>
    %70 = arith.truncf %67 : vector<16x256xf32> to vector<16x256xbf16>
    %c2_62 = arith.constant 2 : index
    %c0_63 = arith.constant 0 : index
    %c0_64 = arith.constant 0 : index
    %71 = vector.load %arg4[%c2_62, %c0_63, %c0_64] : memref<6x256x128xbf16, #tpu.memory_space<vmem>>, vector<1x256x128xbf16>
    %72 = vector.shape_cast %71 : vector<1x256x128xbf16> to vector<256x128xbf16>
    %cst_65 = arith.constant dense<0.000000e+00> : vector<16x128xf32>
    %73 = tpu.matmul %70, %72, %cst_65 {dimension_numbers = #tpu.dot_dimension_numbers<[1], [0], [0], [1], [0, 0, 1, 1], [], []>} : vector<16x256xbf16>, vector<256x128xbf16>, vector<16x128xf32> -> vector<16x128xf32>
    %74 = arith.addf %69, %73 : vector<16x128xf32>
    %c2_66 = arith.constant 2 : index
    %c0_67 = arith.constant 0 : index
    %c0_68 = arith.constant 0 : index
    %75 = vector.load %arg7[%c2_66, %c0_67, %c0_68] : memref<6x16x128xf32, #tpu.memory_space<vmem>>, vector<1x16x128xf32>
    %76 = vector.shape_cast %75 : vector<1x16x128xf32> to vector<16x128xf32>
    %77 = vector.shape_cast %74 : vector<16x128xf32> to vector<1x16x128xf32>
    tpu.vector_store %arg7[%c2_66, %c0_67, %c0_68], %77 {strides = array<i32>} : memref<6x16x128xf32, #tpu.memory_space<vmem>>, vector<1x16x128xf32>,
    %c3 = arith.constant 3 : index
    %c0_69 = arith.constant 0 : index
    %c0_70 = arith.constant 0 : index
    %78 = vector.load %arg2[%c3, %c0_69, %c0_70] : memref<6x16x128xbf16, #tpu.memory_space<vmem>>, vector<1x16x128xbf16>
    %79 = vector.shape_cast %78 : vector<1x16x128xbf16> to vector<16x128xbf16>
    %c3_71 = arith.constant 3 : index
    %c0_72 = arith.constant 0 : index
    %c0_73 = arith.constant 0 : index
    %c0_74 = arith.constant 0 : index
    %80 = vector.load %arg3[%c3_71, %c0_72, %c0_73, %c0_74] : memref<6x2x128x256xbf16, #tpu.memory_space<vmem>>, vector<1x1x128x256xbf16>
    %81 = vector.shape_cast %80 : vector<1x1x128x256xbf16> to vector<128x256xbf16>
    %cst_75 = arith.constant dense<0.000000e+00> : vector<16x256xf32>
    %82 = tpu.matmul %79, %81, %cst_75 {dimension_numbers = #tpu.dot_dimension_numbers<[1], [0], [0], [1], [0, 0, 1, 1], [], []>} : vector<16x128xbf16>, vector<128x256xbf16>, vector<16x256xf32> -> vector<16x256xf32>
    %c3_76 = arith.constant 3 : index
    %c1_77 = arith.constant 1 : index
    %c0_78 = arith.constant 0 : index
    %c0_79 = arith.constant 0 : index
    %83 = vector.load %arg3[%c3_76, %c1_77, %c0_78, %c0_79] : memref<6x2x128x256xbf16, #tpu.memory_space<vmem>>, vector<1x1x128x256xbf16>
    %84 = vector.shape_cast %83 : vector<1x1x128x256xbf16> to vector<128x256xbf16>
    %cst_80 = arith.constant dense<0.000000e+00> : vector<16x256xf32>
    %85 = tpu.matmul %79, %84, %cst_80 {dimension_numbers = #tpu.dot_dimension_numbers<[1], [0], [0], [1], [0, 0, 1, 1], [], []>} : vector<16x128xbf16>, vector<128x256xbf16>, vector<16x256xf32> -> vector<16x256xf32>
    %86 = arith.mulf %82, %85 : vector<16x256xf32>
    %87 = arith.negf %86 : vector<16x256xf32>
    %88 = math.exp %87 : vector<16x256xf32>
    %cst_81 = arith.constant 1.000000e+00 : f32
    %89 = vector.broadcast %cst_81 : f32 to vector<16x256xf32>
    %90 = arith.addf %89, %88 : vector<16x256xf32>
    %91 = arith.divf %89, %90 : vector<16x256xf32>
    %92 = arith.mulf %86, %91 : vector<16x256xf32>
    %c3_82 = arith.constant 3 : index
    %c0_83 = arith.constant 0 : index
    %c0_84 = arith.constant 0 : index
    %93 = vector.load %arg7[%c3_82, %c0_83, %c0_84] : memref<6x16x128xf32, #tpu.memory_space<vmem>>, vector<1x16x128xf32>
    %94 = vector.shape_cast %93 : vector<1x16x128xf32> to vector<16x128xf32>
    %95 = arith.truncf %92 : vector<16x256xf32> to vector<16x256xbf16>
    %c3_85 = arith.constant 3 : index
    %c0_86 = arith.constant 0 : index
    %c0_87 = arith.constant 0 : index
    %96 = vector.load %arg4[%c3_85, %c0_86, %c0_87] : memref<6x256x128xbf16, #tpu.memory_space<vmem>>, vector<1x256x128xbf16>
    %97 = vector.shape_cast %96 : vector<1x256x128xbf16> to vector<256x128xbf16>
    %cst_88 = arith.constant dense<0.000000e+00> : vector<16x128xf32>
    %98 = tpu.matmul %95, %97, %cst_88 {dimension_numbers = #tpu.dot_dimension_numbers<[1], [0], [0], [1], [0, 0, 1, 1], [], []>} : vector<16x256xbf16>, vector<256x128xbf16>, vector<16x128xf32> -> vector<16x128xf32>
    %99 = arith.addf %94, %98 : vector<16x128xf32>
    %c3_89 = arith.constant 3 : index
    %c0_90 = arith.constant 0 : index
    %c0_91 = arith.constant 0 : index
    %100 = vector.load %arg7[%c3_89, %c0_90, %c0_91] : memref<6x16x128xf32, #tpu.memory_space<vmem>>, vector<1x16x128xf32>
    %101 = vector.shape_cast %100 : vector<1x16x128xf32> to vector<16x128xf32>
    %102 = vector.shape_cast %99 : vector<16x128xf32> to vector<1x16x128xf32>
    tpu.vector_store %arg7[%c3_89, %c0_90, %c0_91], %102 {strides = array<i32>} : memref<6x16x128xf32, #tpu.memory_space<vmem>>, vector<1x16x128xf32>,
    %c4 = arith.constant 4 : index
    %c0_92 = arith.constant 0 : index
    %c0_93 = arith.constant 0 : index
    %103 = vector.load %arg2[%c4, %c0_92, %c0_93] : memref<6x16x128xbf16, #tpu.memory_space<vmem>>, vector<1x16x128xbf16>
    %104 = vector.shape_cast %103 : vector<1x16x128xbf16> to vector<16x128xbf16>
    %c4_94 = arith.constant 4 : index
    %c0_95 = arith.constant 0 : index
    %c0_96 = arith.constant 0 : index
    %c0_97 = arith.constant 0 : index
    %105 = vector.load %arg3[%c4_94, %c0_95, %c0_96, %c0_97] : memref<6x2x128x256xbf16, #tpu.memory_space<vmem>>, vector<1x1x128x256xbf16>
    %106 = vector.shape_cast %105 : vector<1x1x128x256xbf16> to vector<128x256xbf16>
    %cst_98 = arith.constant dense<0.000000e+00> : vector<16x256xf32>
    %107 = tpu.matmul %104, %106, %cst_98 {dimension_numbers = #tpu.dot_dimension_numbers<[1], [0], [0], [1], [0, 0, 1, 1], [], []>} : vector<16x128xbf16>, vector<128x256xbf16>, vector<16x256xf32> -> vector<16x256xf32>
    %c4_99 = arith.constant 4 : index
    %c1_100 = arith.constant 1 : index
    %c0_101 = arith.constant 0 : index
    %c0_102 = arith.constant 0 : index
    %108 = vector.load %arg3[%c4_99, %c1_100, %c0_101, %c0_102] : memref<6x2x128x256xbf16, #tpu.memory_space<vmem>>, vector<1x1x128x256xbf16>
    %109 = vector.shape_cast %108 : vector<1x1x128x256xbf16> to vector<128x256xbf16>
    %cst_103 = arith.constant dense<0.000000e+00> : vector<16x256xf32>
    %110 = tpu.matmul %104, %109, %cst_103 {dimension_numbers = #tpu.dot_dimension_numbers<[1], [0], [0], [1], [0, 0, 1, 1], [], []>} : vector<16x128xbf16>, vector<128x256xbf16>, vector<16x256xf32> -> vector<16x256xf32>
    %111 = arith.mulf %107, %110 : vector<16x256xf32>
    %112 = arith.negf %111 : vector<16x256xf32>
    %113 = math.exp %112 : vector<16x256xf32>
    %cst_104 = arith.constant 1.000000e+00 : f32
    %114 = vector.broadcast %cst_104 : f32 to vector<16x256xf32>
    %115 = arith.addf %114, %113 : vector<16x256xf32>
    %116 = arith.divf %114, %115 : vector<16x256xf32>
    %117 = arith.mulf %111, %116 : vector<16x256xf32>
    %c4_105 = arith.constant 4 : index
    %c0_106 = arith.constant 0 : index
    %c0_107 = arith.constant 0 : index
    %118 = vector.load %arg7[%c4_105, %c0_106, %c0_107] : memref<6x16x128xf32, #tpu.memory_space<vmem>>, vector<1x16x128xf32>
    %119 = vector.shape_cast %118 : vector<1x16x128xf32> to vector<16x128xf32>
    %120 = arith.truncf %117 : vector<16x256xf32> to vector<16x256xbf16>
    %c4_108 = arith.constant 4 : index
    %c0_109 = arith.constant 0 : index
    %c0_110 = arith.constant 0 : index
    %121 = vector.load %arg4[%c4_108, %c0_109, %c0_110] : memref<6x256x128xbf16, #tpu.memory_space<vmem>>, vector<1x256x128xbf16>
    %122 = vector.shape_cast %121 : vector<1x256x128xbf16> to vector<256x128xbf16>
    %cst_111 = arith.constant dense<0.000000e+00> : vector<16x128xf32>
    %123 = tpu.matmul %120, %122, %cst_111 {dimension_numbers = #tpu.dot_dimension_numbers<[1], [0], [0], [1], [0, 0, 1, 1], [], []>} : vector<16x256xbf16>, vector<256x128xbf16>, vector<16x128xf32> -> vector<16x128xf32>
    %124 = arith.addf %119, %123 : vector<16x128xf32>
    %c4_112 = arith.constant 4 : index
    %c0_113 = arith.constant 0 : index
    %c0_114 = arith.constant 0 : index
    %125 = vector.load %arg7[%c4_112, %c0_113, %c0_114] : memref<6x16x128xf32, #tpu.memory_space<vmem>>, vector<1x16x128xf32>
    %126 = vector.shape_cast %125 : vector<1x16x128xf32> to vector<16x128xf32>
    %127 = vector.shape_cast %124 : vector<16x128xf32> to vector<1x16x128xf32>
    tpu.vector_store %arg7[%c4_112, %c0_113, %c0_114], %127 {strides = array<i32>} : memref<6x16x128xf32, #tpu.memory_space<vmem>>, vector<1x16x128xf32>,
    %c5 = arith.constant 5 : index
    %c0_115 = arith.constant 0 : index
    %c0_116 = arith.constant 0 : index
    %128 = vector.load %arg2[%c5, %c0_115, %c0_116] : memref<6x16x128xbf16, #tpu.memory_space<vmem>>, vector<1x16x128xbf16>
    %129 = vector.shape_cast %128 : vector<1x16x128xbf16> to vector<16x128xbf16>
    %c5_117 = arith.constant 5 : index
    %c0_118 = arith.constant 0 : index
    %c0_119 = arith.constant 0 : index
    %c0_120 = arith.constant 0 : index
    %130 = vector.load %arg3[%c5_117, %c0_118, %c0_119, %c0_120] : memref<6x2x128x256xbf16, #tpu.memory_space<vmem>>, vector<1x1x128x256xbf16>
    %131 = vector.shape_cast %130 : vector<1x1x128x256xbf16> to vector<128x256xbf16>
    %cst_121 = arith.constant dense<0.000000e+00> : vector<16x256xf32>
    %132 = tpu.matmul %129, %131, %cst_121 {dimension_numbers = #tpu.dot_dimension_numbers<[1], [0], [0], [1], [0, 0, 1, 1], [], []>} : vector<16x128xbf16>, vector<128x256xbf16>, vector<16x256xf32> -> vector<16x256xf32>
    %c5_122 = arith.constant 5 : index
    %c1_123 = arith.constant 1 : index
    %c0_124 = arith.constant 0 : index
    %c0_125 = arith.constant 0 : index
    %133 = vector.load %arg3[%c5_122, %c1_123, %c0_124, %c0_125] : memref<6x2x128x256xbf16, #tpu.memory_space<vmem>>, vector<1x1x128x256xbf16>
    %134 = vector.shape_cast %133 : vector<1x1x128x256xbf16> to vector<128x256xbf16>
    %cst_126 = arith.constant dense<0.000000e+00> : vector<16x256xf32>
    %135 = tpu.matmul %129, %134, %cst_126 {dimension_numbers = #tpu.dot_dimension_numbers<[1], [0], [0], [1], [0, 0, 1, 1], [], []>} : vector<16x128xbf16>, vector<128x256xbf16>, vector<16x256xf32> -> vector<16x256xf32>
    %136 = arith.mulf %132, %135 : vector<16x256xf32>
    %137 = arith.negf %136 : vector<16x256xf32>
    %138 = math.exp %137 : vector<16x256xf32>
    %cst_127 = arith.constant 1.000000e+00 : f32
    %139 = vector.broadcast %cst_127 : f32 to vector<16x256xf32>
    %140 = arith.addf %139, %138 : vector<16x256xf32>
    %141 = arith.divf %139, %140 : vector<16x256xf32>
    %142 = arith.mulf %136, %141 : vector<16x256xf32>
    %c5_128 = arith.constant 5 : index
    %c0_129 = arith.constant 0 : index
    %c0_130 = arith.constant 0 : index
    %143 = vector.load %arg7[%c5_128, %c0_129, %c0_130] : memref<6x16x128xf32, #tpu.memory_space<vmem>>, vector<1x16x128xf32>
    %144 = vector.shape_cast %143 : vector<1x16x128xf32> to vector<16x128xf32>
    %145 = arith.truncf %142 : vector<16x256xf32> to vector<16x256xbf16>
    %c5_131 = arith.constant 5 : index
    %c0_132 = arith.constant 0 : index
    %c0_133 = arith.constant 0 : index
    %146 = vector.load %arg4[%c5_131, %c0_132, %c0_133] : memref<6x256x128xbf16, #tpu.memory_space<vmem>>, vector<1x256x128xbf16>
    %147 = vector.shape_cast %146 : vector<1x256x128xbf16> to vector<256x128xbf16>
    %cst_134 = arith.constant dense<0.000000e+00> : vector<16x128xf32>
    %148 = tpu.matmul %145, %147, %cst_134 {dimension_numbers = #tpu.dot_dimension_numbers<[1], [0], [0], [1], [0, 0, 1, 1], [], []>} : vector<16x256xbf16>, vector<256x128xbf16>, vector<16x128xf32> -> vector<16x128xf32>
    %149 = arith.addf %144, %148 : vector<16x128xf32>
    %c5_135 = arith.constant 5 : index
    %c0_136 = arith.constant 0 : index
    %c0_137 = arith.constant 0 : index
    %150 = vector.load %arg7[%c5_135, %c0_136, %c0_137] : memref<6x16x128xf32, #tpu.memory_space<vmem>>, vector<1x16x128xf32>
    %151 = vector.shape_cast %150 : vector<1x16x128xf32> to vector<16x128xf32>
    %152 = vector.shape_cast %149 : vector<16x128xf32> to vector<1x16x128xf32>
    tpu.vector_store %arg7[%c5_135, %c0_136, %c0_137], %152 {strides = array<i32>} : memref<6x16x128xf32, #tpu.memory_space<vmem>>, vector<1x16x128xf32>,
    %c0_i32_138 = arith.constant 0 : i32
    %153 = arith.cmpi eq, %arg1, %c0_i32_138 : i32
    %154 = arith.extui %153 : i1 to i32
    %c0_i32_139 = arith.constant 0 : i32
    %155 = arith.cmpi ne, %154, %c0_i32_139 : i32
    scf.if %155 {
      %c0_140 = arith.constant 0 : index
      %c0_141 = arith.constant 0 : index
      %c0_142 = arith.constant 0 : index
      %156 = vector.load %arg7[%c0_140, %c0_141, %c0_142] : memref<6x16x128xf32, #tpu.memory_space<vmem>>, vector<6x16x128xf32>
      %c0_143 = arith.constant 0 : index
      %c0_144 = arith.constant 0 : index
      %c0_145 = arith.constant 0 : index
      %157 = vector.load %arg5[%c0_143, %c0_144, %c0_145] : memref<6x16x1xf32, #tpu.memory_space<vmem>>, vector<6x16x1xf32>
      %158 = vector.broadcast %157 : vector<6x16x1xf32> to vector<6x16x128xf32>
      %159 = arith.mulf %156, %158 : vector<6x16x128xf32>
      %c0_146 = arith.constant 0 : index
      %c0_147 = arith.constant 0 : index
      %c0_148 = arith.constant 0 : index
      %160 = vector.load %arg6[%c0_146, %c0_147, %c0_148] : memref<6x16x128xf32, #tpu.memory_space<vmem>>, vector<6x16x128xf32>
      tpu.vector_store %arg6[%c0_146, %c0_147, %c0_148], %159 {strides = array<i32>} : memref<6x16x128xf32, #tpu.memory_space<vmem>>, vector<6x16x128xf32>,
    } else {
    }
    return
  }
  func.func @transform_0(%arg0: i32, %arg1: i32) -> (i32, i32, i32) {
    %c0_i32 = arith.constant 0 : i32
    %c0_i32_0 = arith.constant 0 : i32
    %c0_i32_1 = arith.constant 0 : i32
    return %arg0, %c0_i32, %c0_i32_0 : i32, i32, i32
  }
  func.func @transform_1(%arg0: i32, %arg1: i32) -> (i32, i32, i32, i32) {
    %c0_i32 = arith.constant 0 : i32
    %c0_i32_0 = arith.constant 0 : i32
    %c0_i32_1 = arith.constant 0 : i32
    return %arg0, %c0_i32, %c0_i32_0, %arg1 : i32, i32, i32, i32
  }
  func.func @transform_2(%arg0: i32, %arg1: i32) -> (i32, i32, i32) {
    %c0_i32 = arith.constant 0 : i32
    %c0_i32_0 = arith.constant 0 : i32
    return %arg0, %arg1, %c0_i32 : i32, i32, i32
  }
  func.func @transform_3(%arg0: i32, %arg1: i32) -> (i32, i32, i32) {
    %c0_i32 = arith.constant 0 : i32
    %c0_i32_0 = arith.constant 0 : i32
    %c0_i32_1 = arith.constant 0 : i32
    return %arg0, %c0_i32, %c0_i32_0 : i32, i32, i32
  }
  func.func @transform_4(%arg0: i32, %arg1: i32) -> (i32, i32, i32) {
    %c0_i32 = arith.constant 0 : i32
    %c0_i32_0 = arith.constant 0 : i32
    %c0_i32_1 = arith.constant 0 : i32
    return %arg0, %c0_i32, %c0_i32_0 : i32, i32, i32
  }
}

</mosaic_0001>

<llo_original>
// kernel: tpu_custom_call.1
$region0: #{tpu_custom_call.1}
  #allocation0 [shape = 'u32[]', space=smem, size = 0x4, offset = 0x4, fixed_abs, tag = 'smem constant byte address 0x4 - core index']
  #allocation1 [shape = 'u32[72,128]{1,0:T(1,128)}', space=vmem, size = 0x9000, scoped, tag = 'internal scratch']
  #allocation2 [shape = 'f32[6,16,128]{2,1,0:T(8,128)}', space=vmem, size = 0xc000, scoped, tag = 'scratch operand']
  %s0 = inlined_call_operand.hbm [shape: bf16[12,16,128], index: 0, kind: input, shape index: {}]
  %s1 = inlined_call_operand.hbm [shape: bf16[12,2,128,256], index: 1, kind: input, shape index: {}]
  %s2 = inlined_call_operand.hbm [shape: bf16[12,256,128], index: 2, kind: input, shape index: {}]
  %s3 = inlined_call_operand.vmem [shape: f32[12,16,1], index: 3, kind: input, shape index: {}]
  %s4 = inlined_call_operand.hbm [shape: f32[12,16,128], index: 4, kind: output, shape index: {}]
  %s5 = sld [smem:[#allocation0]]
  $region69: #{tpu_custom_call.1} parent=0
    _
  %s7 = ssub.s32 1, %s5
  %s8 = scalar_select 0, %s7, %s5
  $region1: #{tpu_custom_call.1} parent=0
    #allocation3 [shape = 'u8[49152]{0}', space=vmem, size = 0xc000, scoped, tag = 'input window, operand 0']
    #allocation4 [shape = 's32[2]{0}', space=sflag, size = 0x8, scoped, tag = 'scoped memory for tpu_custom_call.1']
    #allocation5 [shape = 's32[2]{0}', space=sflag, size = 0x8, scoped, tag = 'scoped memory for tpu_custom_call.1']
    #allocation6 [shape = 'u8[1572864]{0}', space=vmem, size = 0x180000, scoped, tag = 'input window, operand 1']
    #allocation7 [shape = 's32[2]{0}', space=sflag, size = 0x8, scoped, tag = 'scoped memory for tpu_custom_call.1']
    #allocation8 [shape = 'u8[786432]{0}', space=vmem, size = 0xc0000, scoped, tag = 'input window, operand 2']
    #allocation9 [shape = 'u8[98304]{0}', space=vmem, size = 0x18000, scoped, tag = 'output window, operand 0']
    %9 = vsyncpa [#allocation4], 0
    %s10 = scalar_lea.sflag [#allocation4], 1
    %11 = vsyncpa %s10, 0
    %12 = vsyncpa [#allocation7], 0
    %s13 = scalar_lea.sflag [#allocation7], 1
    %14 = vsyncpa %s13, 0
    %15 = vsyncpa [#allocation5], 0
    %s16 = scalar_lea.sflag [#allocation5], 1
    %17 = vsyncpa %s16, 0
    loop: start=0, step=1, limit=4
    $region2: #{tpu_custom_call.1} parent=1 // loop_pre_header
      _
    $region3: #{tpu_custom_call.1} parent=1 // loop_header
      %s19 = sphi 0, %s23
      %p20 = scmp.ge.s32.totalorder %s19, 4
      %s26 = sphi 0, %s38
      %s27 = sphi 0, %s34
      %s28 = sphi 0, %s26
      %s29 = sphi 0, %s27
      %s30 = sphi 0, %s28
      %s31 = sphi 0, %s29
      %s41 = sphi 0, %s43
      %s44 = sphi 0, %s41
      %s45 = sphi 0, %s44
      %s61 = sphi 0, %s45
      %s69 = sphi 0, %s71
      %s72 = sphi 0, %s69
      %s73 = sphi 0, %s72
      %s89 = sphi 0, %s73
      %s97 = sphi 0, %s99
      %s100 = sphi 0, %s97
      %s101 = sphi 0, %s100
      %s117 = sphi 0, %s101
      %s123 = sphi 0, %s125
      %s126 = sphi 0, %s123
      %s127 = sphi 0, %s126
      %s143 = sphi 0, %s127
      %s149 = sphi 0, %s151
      %s152 = sphi 0, %s149
      %s153 = sphi 0, %s152
      %s169 = sphi 0, %s153
    $region4: #{tpu_custom_call.1} parent=1 // loop_header_branch
      %22 = sbr.rel (%p20) target = $region8
    $region5: #{tpu_custom_call.1} parent=1 // loop_body
      %s24 = ssub.s32 %s19, 1
      %s25 = ssub.s32 %s19, 2
      %s32 = sadd.s32 1, %s27
      %p33 = scmp.ge.s32.totalorder %s32, 1
      %s34 = scalar_select %p33, 0, %s32
      %s35 = sadd.s32 1, %s26
      %s36 = scalar_select %p33, %s35, %s26
      %p37 = scmp.ge.s32.totalorder %s36, 2
      %s38 = scalar_select %p37, 0, %s36
      %s39 = ssub.s32 %s26, %s38
      %p40 = scmp.eq.s32.totalorder %s39, 0
      %s42 = sadd.s32 %s41, 1
      %s43 = scalar_select %p40, %s41, %s42
      %p46 = pneg %p40
      %p47 = scmp.eq.s32.totalorder %s19, 1
      %p48 = por %p46, %p47
      %p49 = scmp.ne.s32.totalorder %s41, %s44
      %p50 = scmp.eq.s32.totalorder %s19, 0
      %p51 = por %p49, %p50
      %p52 = scmp.ne.s32.totalorder %s41, %s44
      %p53 = scmp.eq.s32.totalorder %s24, 1
      %p54 = por %p52, %p53
      %p55 = scmp.ne.s32.totalorder %s44, %s45
      %p56 = scmp.eq.s32.totalorder %s24, 0
      %p57 = por %p55, %p56
      %p58 = scmp.ne.s32.totalorder %s44, %s45
      %p59 = scmp.eq.s32.totalorder %s25, 1
      %p60 = por %p58, %p59
      %p62 = scmp.ne.s32.totalorder %s45, %s61
      %p63 = scmp.eq.s32.totalorder %s25, 0
      %p64 = por %p62, %p63
      %s65 = ssub.s32 %s26, %s38
      %s66 = ssub.s32 %s27, %s34
      %s67 = sor.u32 %s65, %s66
      %p68 = scmp.eq.s32.totalorder %s67, 0
      %s70 = sadd.s32 %s69, 1
      %s71 = scalar_select %p68, %s69, %s70
      %p74 = pneg %p68
      %p75 = scmp.eq.s32.totalorder %s19, 1
      %p76 = por %p74, %p75
      %p77 = scmp.ne.s32.totalorder %s69, %s72
      %p78 = scmp.eq.s32.totalorder %s19, 0
      %p79 = por %p77, %p78
      %p80 = scmp.ne.s32.totalorder %s69, %s72
      %p81 = scmp.eq.s32.totalorder %s24, 1
      %p82 = por %p80, %p81
      %p83 = scmp.ne.s32.totalorder %s72, %s73
      %p84 = scmp.eq.s32.totalorder %s24, 0
      %p85 = por %p83, %p84
      %p86 = scmp.ne.s32.totalorder %s72, %s73
      %p87 = scmp.eq.s32.totalorder %s25, 1
      %p88 = por %p86, %p87
      %p90 = scmp.ne.s32.totalorder %s73, %s89
      %p91 = scmp.eq.s32.totalorder %s25, 0
      %p92 = por %p90, %p91
      %s93 = ssub.s32 %s26, %s38
      %s94 = ssub.s32 %s27, %s34
      %s95 = sor.u32 %s93, %s94
      %p96 = scmp.eq.s32.totalorder %s95, 0
      %s98 = sadd.s32 %s97, 1
      %s99 = scalar_select %p96, %s97, %s98
      %p102 = pneg %p96
      %p103 = scmp.eq.s32.totalorder %s19, 1
      %p104 = por %p102, %p103
      %p105 = scmp.ne.s32.totalorder %s97, %s100
      %p106 = scmp.eq.s32.totalorder %s19, 0
      %p107 = por %p105, %p106
      %p108 = scmp.ne.s32.totalorder %s97, %s100
      %p109 = scmp.eq.s32.totalorder %s24, 1
      %p110 = por %p108, %p109
      %p111 = scmp.ne.s32.totalorder %s100, %s101
      %p112 = scmp.eq.s32.totalorder %s24, 0
      %p113 = por %p111, %p112
      %p114 = scmp.ne.s32.totalorder %s100, %s101
      %p115 = scmp.eq.s32.totalorder %s25, 1
      %p116 = por %p114, %p115
      %p118 = scmp.ne.s32.totalorder %s101, %s117
      %p119 = scmp.eq.s32.totalorder %s25, 0
      %p120 = por %p118, %p119
      %s121 = ssub.s32 %s26, %s38
      %p122 = scmp.eq.s32.totalorder %s121, 0
      %s124 = sadd.s32 %s123, 1
      %s125 = scalar_select %p122, %s123, %s124
      %p128 = pneg %p122
      %p129 = scmp.eq.s32.totalorder %s19, 1
      %p130 = por %p128, %p129
      %p131 = scmp.ne.s32.totalorder %s123, %s126
      %p132 = scmp.eq.s32.totalorder %s19, 0
      %p133 = por %p131, %p132
      %p134 = scmp.ne.s32.totalorder %s123, %s126
      %p135 = scmp.eq.s32.totalorder %s24, 1
      %p136 = por %p134, %p135
      %p137 = scmp.ne.s32.totalorder %s126, %s127
      %p138 = scmp.eq.s32.totalorder %s24, 0
      %p139 = por %p137, %p138
      %p140 = scmp.ne.s32.totalorder %s126, %s127
      %p141 = scmp.eq.s32.totalorder %s25, 1
      %p142 = por %p140, %p141
      %p144 = scmp.ne.s32.totalorder %s127, %s143
      %p145 = scmp.eq.s32.totalorder %s25, 0
      %p146 = por %p144, %p145
      %s147 = ssub.s32 %s26, %s38
      %p148 = scmp.eq.s32.totalorder %s147, 0
      %s150 = sadd.s32 %s149, 1
      %s151 = scalar_select %p148, %s149, %s150
      %p154 = pneg %p148
      %p155 = scmp.eq.s32.totalorder %s19, 1
      %p156 = por %p154, %p155
      %p157 = scmp.ne.s32.totalorder %s149, %s152
      %p158 = scmp.eq.s32.totalorder %s19, 0
      %p159 = por %p157, %p158
      %p160 = scmp.ne.s32.totalorder %s149, %s152
      %p161 = scmp.eq.s32.totalorder %s24, 1
      %p162 = por %p160, %p161
      %p163 = scmp.ne.s32.totalorder %s152, %s153
      %p164 = scmp.eq.s32.totalorder %s24, 0
      %p165 = por %p163, %p164
      %p166 = scmp.ne.s32.totalorder %s152, %s153
      %p167 = scmp.eq.s32.totalorder %s25, 1
      %p168 = por %p166, %p167
      %p170 = scmp.ne.s32.totalorder %s153, %s169
      %p171 = scmp.eq.s32.totalorder %s25, 0
      %p172 = por %p170, %p171
      %p173 = scmp.le.s32.totalorder 1, %s19
      %p174 = scmp.lt.s32.totalorder %s19, 3
      %p175 = pnand %p173, %p174
      %p176 = pneg %p175
      // Predicated region
      $region9: #{tpu_custom_call.1} parent=5 // pred_check
        _
      $region10: #{tpu_custom_call.1} parent=5 // pred_check_branch
        %178 = sbr.rel (%p175) target = $region12
      $region11: #{tpu_custom_call.1} parent=5 // pred_region
        %s179 = ssub.s32 %s19, 1
      $region12: #{tpu_custom_call.1} parent=5 // pred_fallthru
        _
      %p180 = scmp.lt.s32.totalorder %s19, 2
      // Predicated region
      $region13: #{tpu_custom_call.1} parent=5 // pred_check
        %p181 = pneg %p180
      $region14: #{tpu_custom_call.1} parent=5 // pred_check_branch
        %183 = sbr.rel (%p181) target = $region16
      $region15: #{tpu_custom_call.1} parent=5 // pred_region
        // Predicated region
        $region17: #{tpu_custom_call.1} parent=15 // pred_check
          %p184 = pneg %p51
        $region18: #{tpu_custom_call.1} parent=15 // pred_check_branch
          %186 = sbr.rel (%p184) target = $region20
        $region19: #{tpu_custom_call.1} parent=15 // pred_region
          %s187 = sand.u32 %s41, 1
          %s188 = scalar_lea.sflag [#allocation4], %s187
          %s189 = sand.u32 %s41, 1
          %s190 = smul.addr %s189, 48
          %s191 = scalar_lea.vmem [#allocation3], %s190
          %s192 = smul.u32 6, %s26
          %194 = vsyncadd %s188, 0
          %s195 = smul.addr %s192, 2
          %s196 = smul.addr %s195, 4
          %s197 = scalar_lea.hbm %s0, %s196
          %s198 = sshll.u32 %s197, 4
          %s199 = int_to_ptr.hbm [resolvable:$true] %s198
          %s200 = sshll.u32 %s191, 4
          %s201 = int_to_ptr.vmem [resolvable:$true] %s200
          %206 = dma.hbm_to_vmem [thread:$0]  %s199, 768, %s201, %s188, 64, 64, 4
        $region20: #{tpu_custom_call.1} parent=15 // pred_fallthru
          _
        // Predicated region
        $region21: #{tpu_custom_call.1} parent=15 // pred_check
          %p207 = pneg %p79
        $region22: #{tpu_custom_call.1} parent=15 // pred_check_branch
          %209 = sbr.rel (%p207) target = $region24
        $region23: #{tpu_custom_call.1} parent=15 // pred_region
          %s210 = sand.u32 %s19, 1
          %s211 = scalar_lea.sflag [#allocation7], %s210
          %s212 = sand.u32 %s69, 1
          %s213 = smul.addr %s212, 1536
          %s214 = scalar_lea.vmem [#allocation6], %s213
          %s215 = smul.u32 6, %s26
          %s216 = smul.u32 2, %s27
          %218 = vsyncadd %s211, 0
          %s219 = smul.addr %s215, 64
          %s220 = sadd.s32 %s216, %s219
          %s221 = smul.addr %s220, 4
          %s222 = scalar_lea.hbm %s1, %s221
          %s223 = sshll.u32 %s222, 4
          %s224 = int_to_ptr.hbm [resolvable:$true] %s223
          %s225 = sshll.u32 %s214, 4
          %s226 = int_to_ptr.vmem [resolvable:$true] %s225
          %231 = dma.hbm_to_vmem [thread:$0]  %s224, 24576, %s226, %s211, 128, 128, 8
        $region24: #{tpu_custom_call.1} parent=15 // pred_fallthru
          _
        // Predicated region
        $region25: #{tpu_custom_call.1} parent=15 // pred_check
          %p232 = pneg %p107
        $region26: #{tpu_custom_call.1} parent=15 // pred_check_branch
          %234 = sbr.rel (%p232) target = $region28
        $region27: #{tpu_custom_call.1} parent=15 // pred_region
          %s235 = sand.u32 %s19, 1
          %s236 = scalar_lea.sflag [#allocation7], %s235
          %s237 = sand.u32 %s97, 1
          %s238 = smul.addr %s237, 768
          %s239 = scalar_lea.vmem [#allocation8], %s238
          %s240 = smul.u32 6, %s26
          %s241 = smul.u32 32, %s27
          %243 = vsyncadd %s236, 0
          %s244 = smul.addr %s240, 32
          %s245 = sadd.s32 %s241, %s244
          %s246 = smul.addr %s245, 4
          %s247 = scalar_lea.hbm %s2, %s246
          %s248 = sshll.u32 %s247, 4
          %s249 = int_to_ptr.hbm [resolvable:$true] %s248
          %s250 = sshll.u32 %s239, 4
          %s251 = int_to_ptr.vmem [resolvable:$true] %s250
          %256 = dma.hbm_to_vmem [thread:$0]  %s249, 12288, %s251, %s236, 64, 64, 4
        $region28: #{tpu_custom_call.1} parent=15 // pred_fallthru
          _
        // Predicated region
        $region29: #{tpu_custom_call.1} parent=15 // pred_check
          %p257 = pneg %p133
        $region30: #{tpu_custom_call.1} parent=15 // pred_check_branch
          %259 = sbr.rel (%p257) target = $region32
        $region31: #{tpu_custom_call.1} parent=15 // pred_region
          %s260 = smul.u32 6, %s26
          %p261 = scmp.lt.s32.totalorder %s260, 11
          %s262 = scalar_select %p261, %s260, 11
          %s263 = smul.addr %s262, 2
          %s264 = smul.addr %s263, 8
          %s265 = scalar_lea.vmem %s3, %s264
          %s266 = smul.u32 6, %s26
        $region32: #{tpu_custom_call.1} parent=15 // pred_fallthru
          _
      $region16: #{tpu_custom_call.1} parent=5 // pred_fallthru
        _
      %p267 = scmp.le.s32.totalorder 1, %s19
      %p268 = scmp.lt.s32.totalorder %s19, 3
      %p269 = pnand %p267, %p268
      %p270 = pneg %p269
      // Predicated region
      $region33: #{tpu_custom_call.1} parent=5 // pred_check
        _
      $region34: #{tpu_custom_call.1} parent=5 // pred_check_branch
        %272 = sbr.rel (%p269) target = $region36
      $region35: #{tpu_custom_call.1} parent=5 // pred_region
        %s273 = ssub.s32 %s19, 1
        %s274 = sand.u32 %s44, 1
        %s275 = scalar_lea.sflag [#allocation4], %s274
        %s276 = sand.u32 %s44, 1
        %s277 = smul.addr %s276, 48
        %s278 = scalar_lea.vmem [#allocation3], %s277
        // Predicated region
        $region37: #{tpu_custom_call.1} parent=35 // pred_check
          %p279 = pneg %p57
        $region38: #{tpu_custom_call.1} parent=35 // pred_check_branch
          %281 = sbr.rel (%p279) target = $region40
        $region39: #{tpu_custom_call.1} parent=35 // pred_region
          %283 = dma.done %s275, 768
        $region40: #{tpu_custom_call.1} parent=35 // pred_fallthru
          _
        %s284 = sand.u32 %s24, 1
        %s285 = scalar_lea.sflag [#allocation7], %s284
        %s286 = sand.u32 %s72, 1
        %s287 = smul.addr %s286, 1536
        %s288 = scalar_lea.vmem [#allocation6], %s287
        // Predicated region
        $region41: #{tpu_custom_call.1} parent=35 // pred_check
          %p289 = pneg %p85
        $region42: #{tpu_custom_call.1} parent=35 // pred_check_branch
          %291 = sbr.rel (%p289) target = $region44
        $region43: #{tpu_custom_call.1} parent=35 // pred_region
          %293 = dma.done %s285, 24576
        $region44: #{tpu_custom_call.1} parent=35 // pred_fallthru
          _
        %s294 = sand.u32 %s24, 1
        %s295 = scalar_lea.sflag [#allocation7], %s294
        %s296 = sand.u32 %s100, 1
        %s297 = smul.addr %s296, 768
        %s298 = scalar_lea.vmem [#allocation8], %s297
        // Predicated region
        $region45: #{tpu_custom_call.1} parent=35 // pred_check
          %p299 = pneg %p113
        $region46: #{tpu_custom_call.1} parent=35 // pred_check_branch
          %301 = sbr.rel (%p299) target = $region48
        $region47: #{tpu_custom_call.1} parent=35 // pred_region
          %303 = dma.done %s295, 12288
        $region48: #{tpu_custom_call.1} parent=35 // pred_fallthru
          _
        %s304 = sand.u32 %s44, 1
        %s305 = scalar_lea.sflag [#allocation4], %s304
        %s306 = sand.u32 %s44, 1
        %s307 = smul.addr %s306, 48
        %s308 = scalar_lea.vmem [#allocation3], %s307
        %p309 = pneg %p57
        %p310 = pneg %p54
        %s311 = sand.u32 %s24, 1
        %s312 = scalar_lea.sflag [#allocation7], %s311
        %s313 = sand.u32 %s72, 1
        %s314 = smul.addr %s313, 1536
        %s315 = scalar_lea.vmem [#allocation6], %s314
        %p316 = pneg %p85
        %p317 = pneg %p82
        %s318 = sand.u32 %s24, 1
        %s319 = scalar_lea.sflag [#allocation7], %s318
        %s320 = sand.u32 %s100, 1
        %s321 = smul.addr %s320, 768
        %s322 = scalar_lea.vmem [#allocation8], %s321
        %p323 = pneg %p113
        %p324 = pneg %p110
        %s325 = smul.u32 6, %s28
        %p326 = scmp.lt.s32.totalorder %s325, 11
        %s327 = scalar_select %p326, %s325, 11
        %s328 = smul.addr %s327, 2
        %s329 = smul.addr %s328, 8
        %s330 = scalar_lea.vmem %s3, %s329
        %p331 = pneg %p139
        %p332 = pneg %p136
        %p333 = pneg %p165
        %p334 = pneg %p162
        %s335 = sand.u32 %s152, 1
        %s336 = scalar_lea.sflag [#allocation5], %s335
        %s337 = sand.u32 %s152, 1
        %s338 = smul.addr %s337, 96
        %s339 = scalar_lea.vmem [#allocation9], %s338
        %s340 = smul.u32 6, %s28
        %s341 = smul.u32 6, %s28
        %s342 = smul.u32 2, %s29
        %s343 = smul.u32 6, %s28
        %s344 = smul.u32 32, %s29
        %s345 = smul.u32 6, %s28
        %p346 = scmp.lt.s32.totalorder %s345, 11
        %s347 = scalar_select %p346, %s345, 11
        %s348 = smul.addr %s347, 2
        %s349 = smul.addr %s348, 8
        %s350 = scalar_lea.vmem %s3, %s349
        %s351 = smul.u32 6, %s28
        %s352 = smul.u32 6, %s28
        %p353 = scmp.eq.s32.totalorder %s29, 0
        // Predicated region
        $region49: #{tpu_custom_call.1} parent=35 // pred_check
          %p354 = pneg %p353
        $region50: #{tpu_custom_call.1} parent=35 // pred_check_branch
          %356 = sbr.rel (%p354) target = $region52
        $region51: #{tpu_custom_call.1} parent=35 // pred_region
          %357 = vst [vmem:[#allocation2] sm:$0xff] 0.0
          %358 = vst [vmem:[#allocation2 + $0x8] sm:$0xff] 0.0
          %359 = vst [vmem:[#allocation2 + $0x10] sm:$0xff] 0.0
          %360 = vst [vmem:[#allocation2 + $0x18] sm:$0xff] 0.0
          %361 = vst [vmem:[#allocation2 + $0x20] sm:$0xff] 0.0
          %362 = vst [vmem:[#allocation2 + $0x28] sm:$0xff] 0.0
          %363 = vst [vmem:[#allocation2 + $0x30] sm:$0xff] 0.0
          %364 = vst [vmem:[#allocation2 + $0x38] sm:$0xff] 0.0
          %365 = vst [vmem:[#allocation2 + $0x40] sm:$0xff] 0.0
          %366 = vst [vmem:[#allocation2 + $0x48] sm:$0xff] 0.0
          %367 = vst [vmem:[#allocation2 + $0x50] sm:$0xff] 0.0
          %368 = vst [vmem:[#allocation2 + $0x58] sm:$0xff] 0.0
        $region52: #{tpu_custom_call.1} parent=35 // pred_fallthru
          _
        %v369 = vld [vmem:[%s278] sm:$0xf]
        %v370 = vld [vmem:[%s278 + $0x4] sm:$0xf]
        %v371 = vld [vmem:[%s288] sm:$0xff]
        %v372 = vld [vmem:[%s288 + $0x8] sm:$0xff]
        %v373 = vld [vmem:[%s288 + $0x10] sm:$0xff]
        %v374 = vld [vmem:[%s288 + $0x18] sm:$0xff]
        %v375 = vld [vmem:[%s288 + $0x20] sm:$0xff]
        %v376 = vld [vmem:[%s288 + $0x28] sm:$0xff]
        %v377 = vld [vmem:[%s288 + $0x30] sm:$0xff]
        %v378 = vld [vmem:[%s288 + $0x38] sm:$0xff]
        %v379 = vld [vmem:[%s288 + $0x40] sm:$0xff]
        %v380 = vld [vmem:[%s288 + $0x48] sm:$0xff]
        %v381 = vld [vmem:[%s288 + $0x50] sm:$0xff]
        %v382 = vld [vmem:[%s288 + $0x58] sm:$0xff]
        %v383 = vld [vmem:[%s288 + $0x60] sm:$0xff]
        %v384 = vld [vmem:[%s288 + $0x68] sm:$0xff]
        %v385 = vld [vmem:[%s288 + $0x70] sm:$0xff]
        %v386 = vld [vmem:[%s288 + $0x78] sm:$0xff]
        %v389 = vunpack.c.l.b16 %v369
        %v390 = vunpack.c.l.b16 %v370
        %v391 = vpack.c.b16 %v390, %v389
        %v409 = vunpack.c.l.b16 %v371
        %v410 = vunpack.c.h.b16 %v371
        %v411 = vunpack.c.l.b16 %v372
        %v412 = vunpack.c.h.b16 %v372
        %v413 = vunpack.c.l.b16 %v373
        %v414 = vunpack.c.h.b16 %v373
        %v415 = vunpack.c.l.b16 %v374
        %v416 = vunpack.c.h.b16 %v374
        %v417 = vunpack.c.l.b16 %v375
        %v418 = vunpack.c.h.b16 %v375
        %v419 = vunpack.c.l.b16 %v376
        %v420 = vunpack.c.h.b16 %v376
        %v421 = vunpack.c.l.b16 %v377
        %v422 = vunpack.c.h.b16 %v377
        %v423 = vunpack.c.l.b16 %v378
        %v424 = vunpack.c.h.b16 %v378
        %v425 = vunpack.c.l.b16 %v379
        %v426 = vunpack.c.h.b16 %v379
        %v427 = vunpack.c.l.b16 %v380
        %v428 = vunpack.c.h.b16 %v380
        %v429 = vunpack.c.l.b16 %v381
        %v430 = vunpack.c.h.b16 %v381
        %v431 = vunpack.c.l.b16 %v382
        %v432 = vunpack.c.h.b16 %v382
        %v433 = vunpack.c.l.b16 %v383
        %v434 = vunpack.c.h.b16 %v383
        %v435 = vunpack.c.l.b16 %v384
        %v436 = vunpack.c.h.b16 %v384
        %v437 = vunpack.c.l.b16 %v385
        %v438 = vunpack.c.h.b16 %v385
        %v439 = vunpack.c.l.b16 %v386
        %v440 = vunpack.c.h.b16 %v386
        %v441 = vpack.c.b16 %v411, %v409
        %v442 = vpack.c.b16 %v412, %v410
        %v443 = vpack.c.b16 %v415, %v413
        %v444 = vpack.c.b16 %v416, %v414
        %v445 = vpack.c.b16 %v419, %v417
        %v446 = vpack.c.b16 %v420, %v418
        %v447 = vpack.c.b16 %v423, %v421
        %v448 = vpack.c.b16 %v424, %v422
        %v449 = vpack.c.b16 %v427, %v425
        %v450 = vpack.c.b16 %v428, %v426
        %v451 = vpack.c.b16 %v431, %v429
        %v452 = vpack.c.b16 %v432, %v430
        %v453 = vpack.c.b16 %v435, %v433
        %v454 = vpack.c.b16 %v436, %v434
        %v455 = vpack.c.b16 %v439, %v437
        %v456 = vpack.c.b16 %v440, %v438
        %473 = vmatpush.bf16.msra.mxu0 %v455
        %474 = vmatpush.bf16.msra.mxu0 %v453
        %475 = vmatpush.bf16.msra.mxu0 %v451
        %476 = vmatpush.bf16.msra.mxu0 %v449
        %477 = vmatpush.bf16.msra.mxu0 %v447
        %478 = vmatpush.bf16.msra.mxu0 %v445
        %479 = vmatpush.bf16.msra.mxu0 %v443
        %480 = vmatpush.bf16.msra.mxu0 %v441
        %481 = vmatmul.bf16.gmra.mxu0 %v391
        %v482 = vpop.f32.mrf.mxu0
        %v483 = vadd.f32 0.0, %v482
        %v484 = vpop.f32.mrf.mxu0
        %v485 = vadd.f32 0.0, %v484
        %486 = vdwg.mxu0
        %487 = vmatpush.bf16.msra.mxu0 %v456
        %488 = vmatpush.bf16.msra.mxu0 %v454
        %489 = vmatpush.bf16.msra.mxu0 %v452
        %490 = vmatpush.bf16.msra.mxu0 %v450
        %491 = vmatpush.bf16.msra.mxu0 %v448
        %492 = vmatpush.bf16.msra.mxu0 %v446
        %493 = vmatpush.bf16.msra.mxu0 %v444
        %494 = vmatpush.bf16.msra.mxu0 %v442
        %495 = vmatmul.bf16.gmra.mxu0 %v391
        %v496 = vpop.f32.mrf.mxu0
        %v497 = vadd.f32 0.0, %v496
        %v498 = vpop.f32.mrf.mxu0
        %v499 = vadd.f32 0.0, %v498
        %500 = vdwg.mxu0
        %s501 = scalar_lea.vmem %s288, 128 [#allocation6]
        %v502 = vld [vmem:[%s501] sm:$0xff]
        %v503 = vld [vmem:[%s501 + $0x8] sm:$0xff]
        %v504 = vld [vmem:[%s501 + $0x10] sm:$0xff]
        %v505 = vld [vmem:[%s501 + $0x18] sm:$0xff]
        %v506 = vld [vmem:[%s501 + $0x20] sm:$0xff]
        %v507 = vld [vmem:[%s501 + $0x28] sm:$0xff]
        %v508 = vld [vmem:[%s501 + $0x30] sm:$0xff]
        %v509 = vld [vmem:[%s501 + $0x38] sm:$0xff]
        %v510 = vld [vmem:[%s501 + $0x40] sm:$0xff]
        %v511 = vld [vmem:[%s501 + $0x48] sm:$0xff]
        %v512 = vld [vmem:[%s501 + $0x50] sm:$0xff]
        %v513 = vld [vmem:[%s501 + $0x58] sm:$0xff]
        %v514 = vld [vmem:[%s501 + $0x60] sm:$0xff]
        %v515 = vld [vmem:[%s501 + $0x68] sm:$0xff]
        %v516 = vld [vmem:[%s501 + $0x70] sm:$0xff]
        %v517 = vld [vmem:[%s501 + $0x78] sm:$0xff]
        %v534 = vunpack.c.l.b16 %v502
        %v535 = vunpack.c.h.b16 %v502
        %v536 = vunpack.c.l.b16 %v503
        %v537 = vunpack.c.h.b16 %v503
        %v538 = vunpack.c.l.b16 %v504
        %v539 = vunpack.c.h.b16 %v504
        %v540 = vunpack.c.l.b16 %v505
        %v541 = vunpack.c.h.b16 %v505
        %v542 = vunpack.c.l.b16 %v506
        %v543 = vunpack.c.h.b16 %v506
        %v544 = vunpack.c.l.b16 %v507
        %v545 = vunpack.c.h.b16 %v507
        %v546 = vunpack.c.l.b16 %v508
        %v547 = vunpack.c.h.b16 %v508
        %v548 = vunpack.c.l.b16 %v509
        %v549 = vunpack.c.h.b16 %v509
        %v550 = vunpack.c.l.b16 %v510
        %v551 = vunpack.c.h.b16 %v510
        %v552 = vunpack.c.l.b16 %v511
        %v553 = vunpack.c.h.b16 %v511
        %v554 = vunpack.c.l.b16 %v512
        %v555 = vunpack.c.h.b16 %v512
        %v556 = vunpack.c.l.b16 %v513
        %v557 = vunpack.c.h.b16 %v513
        %v558 = vunpack.c.l.b16 %v514
        %v559 = vunpack.c.h.b16 %v514
        %v560 = vunpack.c.l.b16 %v515
        %v561 = vunpack.c.h.b16 %v515
        %v562 = vunpack.c.l.b16 %v516
        %v563 = vunpack.c.h.b16 %v516
        %v564 = vunpack.c.l.b16 %v517
        %v565 = vunpack.c.h.b16 %v517
        %v566 = vpack.c.b16 %v536, %v534
        %v567 = vpack.c.b16 %v537, %v535
        %v568 = vpack.c.b16 %v540, %v538
        %v569 = vpack.c.b16 %v541, %v539
        %v570 = vpack.c.b16 %v544, %v542
        %v571 = vpack.c.b16 %v545, %v543
        %v572 = vpack.c.b16 %v548, %v546
        %v573 = vpack.c.b16 %v549, %v547
        %v574 = vpack.c.b16 %v552, %v550
        %v575 = vpack.c.b16 %v553, %v551
        %v576 = vpack.c.b16 %v556, %v554
        %v577 = vpack.c.b16 %v557, %v555
        %v578 = vpack.c.b16 %v560, %v558
        %v579 = vpack.c.b16 %v561, %v559
        %v580 = vpack.c.b16 %v564, %v562
        %v581 = vpack.c.b16 %v565, %v563
        %598 = vmatpush.bf16.msra.mxu0 %v580
        %599 = vmatpush.bf16.msra.mxu0 %v578
        %600 = vmatpush.bf16.msra.mxu0 %v576
        %601 = vmatpush.bf16.msra.mxu0 %v574
        %602 = vmatpush.bf16.msra.mxu0 %v572
        %603 = vmatpush.bf16.msra.mxu0 %v570
        %604 = vmatpush.bf16.msra.mxu0 %v568
        %605 = vmatpush.bf16.msra.mxu0 %v566
        %606 = vmatmul.bf16.gmra.mxu0 %v391
        %v607 = vpop.f32.mrf.mxu0
        %v608 = vadd.f32 0.0, %v607
        %v609 = vpop.f32.mrf.mxu0
        %v610 = vadd.f32 0.0, %v609
        %611 = vdwg.mxu0
        %612 = vmatpush.bf16.msra.mxu0 %v581
        %613 = vmatpush.bf16.msra.mxu0 %v579
        %614 = vmatpush.bf16.msra.mxu0 %v577
        %615 = vmatpush.bf16.msra.mxu0 %v575
        %616 = vmatpush.bf16.msra.mxu0 %v573
        %617 = vmatpush.bf16.msra.mxu0 %v571
        %618 = vmatpush.bf16.msra.mxu0 %v569
        %619 = vmatpush.bf16.msra.mxu0 %v567
        %620 = vmatmul.bf16.gmra.mxu0 %v391
        %v621 = vpop.f32.mrf.mxu0
        %v622 = vadd.f32 0.0, %v621
        %v623 = vpop.f32.mrf.mxu0
        %v624 = vadd.f32 0.0, %v623
        %625 = vdwg.mxu0
        %v626 = vmul.f32 %v483, %v608
        %v627 = vmul.f32 %v497, %v622
        %v628 = vmul.f32 %v485, %v610
        %v629 = vmul.f32 %v499, %v624
        %v630 = vxor.u32 %v626, 2147483648
        %v631 = vxor.u32 %v627, 2147483648
        %v632 = vxor.u32 %v628, 2147483648
        %v633 = vxor.u32 %v629, 2147483648
        %v634 = vmul.f32 %v630, 1.442695
        %v635 = vpow.pop %v634
        %v636 = vmul.f32 %v631, 1.442695
        %v637 = vpow.pop %v636
        %v638 = vmul.f32 %v632, 1.442695
        %v639 = vpow.pop %v638
        %v640 = vmul.f32 %v633, 1.442695
        %v641 = vpow.pop %v640
        %v642 = vadd.f32 %v635, 1.0
        %v643 = vadd.f32 %v637, 1.0
        %v644 = vadd.f32 %v639, 1.0
        %v645 = vadd.f32 %v641, 1.0
        %v646 = vrcp.pop %v642
        %v647 = vmul.f32 %v642, %v646
        %v648 = vsub.f32 1.0, %v647
        %v649 = vmul.f32 %v646, %v648
        %v650 = vadd.f32 %v646, %v649
        %vm651 = vweird.f32 %v642
        %vm652 = vweird.f32 %v646
        %vm653 = vmor %vm651, %vm652
        %v654 = vsel %vm653, %v646, %v650
        %v655 = vand.u32 2147483647, %v642
        %vm656 = vcmp.eq.f32.partialorder %v655, 8.507059e+37
        %v657 = vand.u32 %v642, 2147483648
        %v658 = vor.u32 1.1754944e-38, %v657
        %v659 = vsel %vm656, %v658, %v654
        %v660 = vmul.f32 1.0, %v659
        %v661 = vrcp.pop %v643
        %v662 = vmul.f32 %v643, %v661
        %v663 = vsub.f32 1.0, %v662
        %v664 = vmul.f32 %v661, %v663
        %v665 = vadd.f32 %v661, %v664
        %vm666 = vweird.f32 %v643
        %vm667 = vweird.f32 %v661
        %vm668 = vmor %vm666, %vm667
        %v669 = vsel %vm668, %v661, %v665
        %v670 = vand.u32 2147483647, %v643
        %vm671 = vcmp.eq.f32.partialorder %v670, 8.507059e+37
        %v672 = vand.u32 %v643, 2147483648
        %v673 = vor.u32 1.1754944e-38, %v672
        %v674 = vsel %vm671, %v673, %v669
        %v675 = vmul.f32 1.0, %v674
        %v676 = vrcp.pop %v644
        %v677 = vmul.f32 %v644, %v676
        %v678 = vsub.f32 1.0, %v677
        %v679 = vmul.f32 %v676, %v678
        %v680 = vadd.f32 %v676, %v679
        %vm681 = vweird.f32 %v644
        %vm682 = vweird.f32 %v676
        %vm683 = vmor %vm681, %vm682
        %v684 = vsel %vm683, %v676, %v680
        %v685 = vand.u32 2147483647, %v644
        %vm686 = vcmp.eq.f32.partialorder %v685, 8.507059e+37
        %v687 = vand.u32 %v644, 2147483648
        %v688 = vor.u32 1.1754944e-38, %v687
        %v689 = vsel %vm686, %v688, %v684
        %v690 = vmul.f32 1.0, %v689
        %v691 = vrcp.pop %v645
        %v692 = vmul.f32 %v645, %v691
        %v693 = vsub.f32 1.0, %v692
        %v694 = vmul.f32 %v691, %v693
        %v695 = vadd.f32 %v691, %v694
        %vm696 = vweird.f32 %v645
        %vm697 = vweird.f32 %v691
        %vm698 = vmor %vm696, %vm697
        %v699 = vsel %vm698, %v691, %v695
        %v700 = vand.u32 2147483647, %v645
        %vm701 = vcmp.eq.f32.partialorder %v700, 8.507059e+37
        %v702 = vand.u32 %v645, 2147483648
        %v703 = vor.u32 1.1754944e-38, %v702
        %v704 = vsel %vm701, %v703, %v699
        %v705 = vmul.f32 1.0, %v704
        %v706 = vmul.f32 %v626, %v660
        %v707 = vmul.f32 %v627, %v675
        %v708 = vmul.f32 %v628, %v690
        %v709 = vmul.f32 %v629, %v705
        %v710 = vld [vmem:[#allocation2] sm:$0xff]
        %v711 = vld [vmem:[#allocation2 + $0x8] sm:$0xff]
        %v712 = vpack.c.bf16 %v708, %v706
        %v713 = vpack.c.bf16 %v709, %v707
        %v714 = vld [vmem:[%s298] sm:$0xf]
        %v715 = vld [vmem:[%s298 + $0x4] sm:$0xf]
        %v716 = vld [vmem:[%s298 + $0x8] sm:$0xf]
        %v717 = vld [vmem:[%s298 + $0xc] sm:$0xf]
        %v718 = vld [vmem:[%s298 + $0x10] sm:$0xf]
        %v719 = vld [vmem:[%s298 + $0x14] sm:$0xf]
        %v720 = vld [vmem:[%s298 + $0x18] sm:$0xf]
        %v721 = vld [vmem:[%s298 + $0x1c] sm:$0xf]
        %v722 = vld [vmem:[%s298 + $0x20] sm:$0xf]
        %v723 = vld [vmem:[%s298 + $0x24] sm:$0xf]
        %v724 = vld [vmem:[%s298 + $0x28] sm:$0xf]
        %v725 = vld [vmem:[%s298 + $0x2c] sm:$0xf]
        %v726 = vld [vmem:[%s298 + $0x30] sm:$0xf]
        %v727 = vld [vmem:[%s298 + $0x34] sm:$0xf]
        %v728 = vld [vmem:[%s298 + $0x38] sm:$0xf]
        %v729 = vld [vmem:[%s298 + $0x3c] sm:$0xf]
        %v730 = vld [vmem:[%s298 + $0x40] sm:$0xf]
        %v731 = vld [vmem:[%s298 + $0x44] sm:$0xf]
        %v732 = vld [vmem:[%s298 + $0x48] sm:$0xf]
        %v733 = vld [vmem:[%s298 + $0x4c] sm:$0xf]
        %v734 = vld [vmem:[%s298 + $0x50] sm:$0xf]
        %v735 = vld [vmem:[%s298 + $0x54] sm:$0xf]
        %v736 = vld [vmem:[%s298 + $0x58] sm:$0xf]
        %v737 = vld [vmem:[%s298 + $0x5c] sm:$0xf]
        %v738 = vld [vmem:[%s298 + $0x60] sm:$0xf]
        %v739 = vld [vmem:[%s298 + $0x64] sm:$0xf]
        %v740 = vld [vmem:[%s298 + $0x68] sm:$0xf]
        %v741 = vld [vmem:[%s298 + $0x6c] sm:$0xf]
        %v742 = vld [vmem:[%s298 + $0x70] sm:$0xf]
        %v743 = vld [vmem:[%s298 + $0x74] sm:$0xf]
        %v744 = vld [vmem:[%s298 + $0x78] sm:$0xf]
        %v745 = vld [vmem:[%s298 + $0x7c] sm:$0xf]
        %v778 = vunpack.c.l.b16 %v714
        %v779 = vunpack.c.l.b16 %v715
        %v780 = vunpack.c.l.b16 %v716
        %v781 = vunpack.c.l.b16 %v717
        %v782 = vunpack.c.l.b16 %v718
        %v783 = vunpack.c.l.b16 %v719
        %v784 = vunpack.c.l.b16 %v720
        %v785 = vunpack.c.l.b16 %v721
        %v786 = vunpack.c.l.b16 %v722
        %v787 = vunpack.c.l.b16 %v723
        %v788 = vunpack.c.l.b16 %v724
        %v789 = vunpack.c.l.b16 %v725
        %v790 = vunpack.c.l.b16 %v726
        %v791 = vunpack.c.l.b16 %v727
        %v792 = vunpack.c.l.b16 %v728
        %v793 = vunpack.c.l.b16 %v729
        %v794 = vunpack.c.l.b16 %v730
        %v795 = vunpack.c.l.b16 %v731
        %v796 = vunpack.c.l.b16 %v732
        %v797 = vunpack.c.l.b16 %v733
        %v798 = vunpack.c.l.b16 %v734
        %v799 = vunpack.c.l.b16 %v735
        %v800 = vunpack.c.l.b16 %v736
        %v801 = vunpack.c.l.b16 %v737
        %v802 = vunpack.c.l.b16 %v738
        %v803 = vunpack.c.l.b16 %v739
        %v804 = vunpack.c.l.b16 %v740
        %v805 = vunpack.c.l.b16 %v741
        %v806 = vunpack.c.l.b16 %v742
        %v807 = vunpack.c.l.b16 %v743
        %v808 = vunpack.c.l.b16 %v744
        %v809 = vunpack.c.l.b16 %v745
        %v810 = vpack.c.b16 %v779, %v778
        %v811 = vpack.c.b16 %v781, %v780
        %v812 = vpack.c.b16 %v783, %v782
        %v813 = vpack.c.b16 %v785, %v784
        %v814 = vpack.c.b16 %v787, %v786
        %v815 = vpack.c.b16 %v789, %v788
        %v816 = vpack.c.b16 %v791, %v790
        %v817 = vpack.c.b16 %v793, %v792
        %v818 = vpack.c.b16 %v795, %v794
        %v819 = vpack.c.b16 %v797, %v796
        %v820 = vpack.c.b16 %v799, %v798
        %v821 = vpack.c.b16 %v801, %v800
        %v822 = vpack.c.b16 %v803, %v802
        %v823 = vpack.c.b16 %v805, %v804
        %v824 = vpack.c.b16 %v807, %v806
        %v825 = vpack.c.b16 %v809, %v808
        %842 = vmatpush.bf16.msra.mxu0 %v817
        %843 = vmatpush.bf16.msra.mxu0 %v816
        %844 = vmatpush.bf16.msra.mxu0 %v815
        %845 = vmatpush.bf16.msra.mxu0 %v814
        %846 = vmatpush.bf16.msra.mxu0 %v813
        %847 = vmatpush.bf16.msra.mxu0 %v812
        %848 = vmatpush.bf16.msra.mxu0 %v811
        %849 = vmatpush.bf16.msra.mxu0 %v810
        %850 = vmatmul.bf16.gmra.mxu0 %v712
        %v851 = vpop.f32.mrf.mxu0
        %v852 = vadd.f32 0.0, %v851
        %v853 = vpop.f32.mrf.mxu0
        %v854 = vadd.f32 0.0, %v853
        %855 = vdwg.mxu0
        %856 = vmatpush.bf16.msra.mxu0 %v825
        %857 = vmatpush.bf16.msra.mxu0 %v824
        %858 = vmatpush.bf16.msra.mxu0 %v823
        %859 = vmatpush.bf16.msra.mxu0 %v822
        %860 = vmatpush.bf16.msra.mxu0 %v821
        %861 = vmatpush.bf16.msra.mxu0 %v820
        %862 = vmatpush.bf16.msra.mxu0 %v819
        %863 = vmatpush.bf16.msra.mxu0 %v818
        %864 = vmatmul.bf16.gmra.mxu0 %v713
        %v865 = vpop.f32.mrf.mxu0
        %v866 = vadd.f32 %v852, %v865
        %v867 = vpop.f32.mrf.mxu0
        %v868 = vadd.f32 %v854, %v867
        %869 = vdwg.mxu0
        %v870 = vadd.f32 %v710, %v866
        %v871 = vadd.f32 %v711, %v868
        %872 = vst [vmem:[#allocation2] sm:$0xff] %v870
        %873 = vst [vmem:[#allocation2 + $0x8] sm:$0xff] %v871
        %s874 = scalar_lea.vmem %s278, 8 [#allocation3]
        %v875 = vld [vmem:[%s874] sm:$0xf]
        %v876 = vld [vmem:[%s874 + $0x4] sm:$0xf]
        %s877 = scalar_lea.vmem %s288, 256 [#allocation6]
        %v878 = vld [vmem:[%s877] sm:$0xff]
        %v879 = vld [vmem:[%s877 + $0x8] sm:$0xff]
        %v880 = vld [vmem:[%s877 + $0x10] sm:$0xff]
        %v881 = vld [vmem:[%s877 + $0x18] sm:$0xff]
        %v882 = vld [vmem:[%s877 + $0x20] sm:$0xff]
        %v883 = vld [vmem:[%s877 + $0x28] sm:$0xff]
        %v884 = vld [vmem:[%s877 + $0x30] sm:$0xff]
        %v885 = vld [vmem:[%s877 + $0x38] sm:$0xff]
        %v886 = vld [vmem:[%s877 + $0x40] sm:$0xff]
        %v887 = vld [vmem:[%s877 + $0x48] sm:$0xff]
        %v888 = vld [vmem:[%s877 + $0x50] sm:$0xff]
        %v889 = vld [vmem:[%s877 + $0x58] sm:$0xff]
        %v890 = vld [vmem:[%s877 + $0x60] sm:$0xff]
        %v891 = vld [vmem:[%s877 + $0x68] sm:$0xff]
        %v892 = vld [vmem:[%s877 + $0x70] sm:$0xff]
        %v893 = vld [vmem:[%s877 + $0x78] sm:$0xff]
        %v896 = vunpack.c.l.b16 %v875
        %v897 = vunpack.c.l.b16 %v876
        %v898 = vpack.c.b16 %v897, %v896
        %v916 = vunpack.c.l.b16 %v878
        %v917 = vunpack.c.h.b16 %v878
        %v918 = vunpack.c.l.b16 %v879
        %v919 = vunpack.c.h.b16 %v879
        %v920 = vunpack.c.l.b16 %v880
        %v921 = vunpack.c.h.b16 %v880
        %v922 = vunpack.c.l.b16 %v881
        %v923 = vunpack.c.h.b16 %v881
        %v924 = vunpack.c.l.b16 %v882
        %v925 = vunpack.c.h.b16 %v882
        %v926 = vunpack.c.l.b16 %v883
        %v927 = vunpack.c.h.b16 %v883
        %v928 = vunpack.c.l.b16 %v884
        %v929 = vunpack.c.h.b16 %v884
        %v930 = vunpack.c.l.b16 %v885
        %v931 = vunpack.c.h.b16 %v885
        %v932 = vunpack.c.l.b16 %v886
        %v933 = vunpack.c.h.b16 %v886
        %v934 = vunpack.c.l.b16 %v887
        %v935 = vunpack.c.h.b16 %v887
        %v936 = vunpack.c.l.b16 %v888
        %v937 = vunpack.c.h.b16 %v888
        %v938 = vunpack.c.l.b16 %v889
        %v939 = vunpack.c.h.b16 %v889
        %v940 = vunpack.c.l.b16 %v890
        %v941 = vunpack.c.h.b16 %v890
        %v942 = vunpack.c.l.b16 %v891
        %v943 = vunpack.c.h.b16 %v891
        %v944 = vunpack.c.l.b16 %v892
        %v945 = vunpack.c.h.b16 %v892
        %v946 = vunpack.c.l.b16 %v893
        %v947 = vunpack.c.h.b16 %v893
        %v948 = vpack.c.b16 %v918, %v916
        %v949 = vpack.c.b16 %v919, %v917
        %v950 = vpack.c.b16 %v922, %v920
        %v951 = vpack.c.b16 %v923, %v921
        %v952 = vpack.c.b16 %v926, %v924
        %v953 = vpack.c.b16 %v927, %v925
        %v954 = vpack.c.b16 %v930, %v928
        %v955 = vpack.c.b16 %v931, %v929
        %v956 = vpack.c.b16 %v934, %v932
        %v957 = vpack.c.b16 %v935, %v933
        %v958 = vpack.c.b16 %v938, %v936
        %v959 = vpack.c.b16 %v939, %v937
        %v960 = vpack.c.b16 %v942, %v940
        %v961 = vpack.c.b16 %v943, %v941
        %v962 = vpack.c.b16 %v946, %v944
        %v963 = vpack.c.b16 %v947, %v945
        %980 = vmatpush.bf16.msra.mxu0 %v962
        %981 = vmatpush.bf16.msra.mxu0 %v960
        %982 = vmatpush.bf16.msra.mxu0 %v958
        %983 = vmatpush.bf16.msra.mxu0 %v956
        %984 = vmatpush.bf16.msra.mxu0 %v954
        %985 = vmatpush.bf16.msra.mxu0 %v952
        %986 = vmatpush.bf16.msra.mxu0 %v950
        %987 = vmatpush.bf16.msra.mxu0 %v948
        %988 = vmatmul.bf16.gmra.mxu0 %v898
        %v989 = vpop.f32.mrf.mxu0
        %v990 = vadd.f32 0.0, %v989
        %v991 = vpop.f32.mrf.mxu0
        %v992 = vadd.f32 0.0, %v991
        %993 = vdwg.mxu0
        %994 = vmatpush.bf16.msra.mxu0 %v963
        %995 = vmatpush.bf16.msra.mxu0 %v961
        %996 = vmatpush.bf16.msra.mxu0 %v959
        %997 = vmatpush.bf16.msra.mxu0 %v957
        %998 = vmatpush.bf16.msra.mxu0 %v955
        %999 = vmatpush.bf16.msra.mxu0 %v953
        %1000 = vmatpush.bf16.msra.mxu0 %v951
        %1001 = vmatpush.bf16.msra.mxu0 %v949
        %1002 = vmatmul.bf16.gmra.mxu0 %v898
        %v1003 = vpop.f32.mrf.mxu0
        %v1004 = vadd.f32 0.0, %v1003
        %v1005 = vpop.f32.mrf.mxu0
        %v1006 = vadd.f32 0.0, %v1005
        %1007 = vdwg.mxu0
        %s1008 = scalar_lea.vmem %s288, 384 [#allocation6]
        %v1009 = vld [vmem:[%s1008] sm:$0xff]
        %v1010 = vld [vmem:[%s1008 + $0x8] sm:$0xff]
        %v1011 = vld [vmem:[%s1008 + $0x10] sm:$0xff]
        %v1012 = vld [vmem:[%s1008 + $0x18] sm:$0xff]
        %v1013 = vld [vmem:[%s1008 + $0x20] sm:$0xff]
        %v1014 = vld [vmem:[%s1008 + $0x28] sm:$0xff]
        %v1015 = vld [vmem:[%s1008 + $0x30] sm:$0xff]
        %v1016 = vld [vmem:[%s1008 + $0x38] sm:$0xff]
        %v1017 = vld [vmem:[%s1008 + $0x40] sm:$0xff]
        %v1018 = vld [vmem:[%s1008 + $0x48] sm:$0xff]
        %v1019 = vld [vmem:[%s1008 + $0x50] sm:$0xff]
        %v1020 = vld [vmem:[%s1008 + $0x58] sm:$0xff]
        %v1021 = vld [vmem:[%s1008 + $0x60] sm:$0xff]
        %v1022 = vld [vmem:[%s1008 + $0x68] sm:$0xff]
        %v1023 = vld [vmem:[%s1008 + $0x70] sm:$0xff]
        %v1024 = vld [vmem:[%s1008 + $0x78] sm:$0xff]
        %v1041 = vunpack.c.l.b16 %v1009
        %v1042 = vunpack.c.h.b16 %v1009
        %v1043 = vunpack.c.l.b16 %v1010
        %v1044 = vunpack.c.h.b16 %v1010
        %v1045 = vunpack.c.l.b16 %v1011
        %v1046 = vunpack.c.h.b16 %v1011
        %v1047 = vunpack.c.l.b16 %v1012
        %v1048 = vunpack.c.h.b16 %v1012
        %v1049 = vunpack.c.l.b16 %v1013
        %v1050 = vunpack.c.h.b16 %v1013
        %v1051 = vunpack.c.l.b16 %v1014
        %v1052 = vunpack.c.h.b16 %v1014
        %v1053 = vunpack.c.l.b16 %v1015
        %v1054 = vunpack.c.h.b16 %v1015
        %v1055 = vunpack.c.l.b16 %v1016
        %v1056 = vunpack.c.h.b16 %v1016
        %v1057 = vunpack.c.l.b16 %v1017
        %v1058 = vunpack.c.h.b16 %v1017
        %v1059 = vunpack.c.l.b16 %v1018
        %v1060 = vunpack.c.h.b16 %v1018
        %v1061 = vunpack.c.l.b16 %v1019
        %v1062 = vunpack.c.h.b16 %v1019
        %v1063 = vunpack.c.l.b16 %v1020
        %v1064 = vunpack.c.h.b16 %v1020
        %v1065 = vunpack.c.l.b16 %v1021
        %v1066 = vunpack.c.h.b16 %v1021
        %v1067 = vunpack.c.l.b16 %v1022
        %v1068 = vunpack.c.h.b16 %v1022
        %v1069 = vunpack.c.l.b16 %v1023
        %v1070 = vunpack.c.h.b16 %v1023
        %v1071 = vunpack.c.l.b16 %v1024
        %v1072 = vunpack.c.h.b16 %v1024
        %v1073 = vpack.c.b16 %v1043, %v1041
        %v1074 = vpack.c.b16 %v1044, %v1042
        %v1075 = vpack.c.b16 %v1047, %v1045
        %v1076 = vpack.c.b16 %v1048, %v1046
        %v1077 = vpack.c.b16 %v1051, %v1049
        %v1078 = vpack.c.b16 %v1052, %v1050
        %v1079 = vpack.c.b16 %v1055, %v1053
        %v1080 = vpack.c.b16 %v1056, %v1054
        %v1081 = vpack.c.b16 %v1059, %v1057
        %v1082 = vpack.c.b16 %v1060, %v1058
        %v1083 = vpack.c.b16 %v1063, %v1061
        %v1084 = vpack.c.b16 %v1064, %v1062
        %v1085 = vpack.c.b16 %v1067, %v1065
        %v1086 = vpack.c.b16 %v1068, %v1066
        %v1087 = vpack.c.b16 %v1071, %v1069
        %v1088 = vpack.c.b16 %v1072, %v1070
        %1105 = vmatpush.bf16.msra.mxu0 %v1087
        %1106 = vmatpush.bf16.msra.mxu0 %v1085
        %1107 = vmatpush.bf16.msra.mxu0 %v1083
        %1108 = vmatpush.bf16.msra.mxu0 %v1081
        %1109 = vmatpush.bf16.msra.mxu0 %v1079
        %1110 = vmatpush.bf16.msra.mxu0 %v1077
        %1111 = vmatpush.bf16.msra.mxu0 %v1075
        %1112 = vmatpush.bf16.msra.mxu0 %v1073
        %1113 = vmatmul.bf16.gmra.mxu0 %v898
        %v1114 = vpop.f32.mrf.mxu0
        %v1115 = vadd.f32 0.0, %v1114
        %v1116 = vpop.f32.mrf.mxu0
        %v1117 = vadd.f32 0.0, %v1116
        %1118 = vdwg.mxu0
        %1119 = vmatpush.bf16.msra.mxu0 %v1088
        %1120 = vmatpush.bf16.msra.mxu0 %v1086
        %1121 = vmatpush.bf16.msra.mxu0 %v1084
        %1122 = vmatpush.bf16.msra.mxu0 %v1082
        %1123 = vmatpush.bf16.msra.mxu0 %v1080
        %1124 = vmatpush.bf16.msra.mxu0 %v1078
        %1125 = vmatpush.bf16.msra.mxu0 %v1076
        %1126 = vmatpush.bf16.msra.mxu0 %v1074
        %1127 = vmatmul.bf16.gmra.mxu0 %v898
        %v1128 = vpop.f32.mrf.mxu0
        %v1129 = vadd.f32 0.0, %v1128
        %v1130 = vpop.f32.mrf.mxu0
        %v1131 = vadd.f32 0.0, %v1130
        %1132 = vdwg.mxu0
        %v1133 = vmul.f32 %v990, %v1115
        %v1134 = vmul.f32 %v1004, %v1129
        %v1135 = vmul.f32 %v992, %v1117
        %v1136 = vmul.f32 %v1006, %v1131
        %v1137 = vxor.u32 %v1133, 2147483648
        %v1138 = vxor.u32 %v1134, 2147483648
        %v1139 = vxor.u32 %v1135, 2147483648
        %v1140 = vxor.u32 %v1136, 2147483648
        %v1141 = vmul.f32 %v1137, 1.442695
        %v1142 = vpow.pop %v1141
        %v1143 = vmul.f32 %v1138, 1.442695
        %v1144 = vpow.pop %v1143
        %v1145 = vmul.f32 %v1139, 1.442695
        %v1146 = vpow.pop %v1145
        %v1147 = vmul.f32 %v1140, 1.442695
        %v1148 = vpow.pop %v1147
        %v1149 = vadd.f32 %v1142, 1.0
        %v1150 = vadd.f32 %v1144, 1.0
        %v1151 = vadd.f32 %v1146, 1.0
        %v1152 = vadd.f32 %v1148, 1.0
        %v1153 = vrcp.pop %v1149
        %v1154 = vmul.f32 %v1149, %v1153
        %v1155 = vsub.f32 1.0, %v1154
        %v1156 = vmul.f32 %v1153, %v1155
        %v1157 = vadd.f32 %v1153, %v1156
        %vm1158 = vweird.f32 %v1149
        %vm1159 = vweird.f32 %v1153
        %vm1160 = vmor %vm1158, %vm1159
        %v1161 = vsel %vm1160, %v1153, %v1157
        %v1162 = vand.u32 2147483647, %v1149
        %vm1163 = vcmp.eq.f32.partialorder %v1162, 8.507059e+37
        %v1164 = vand.u32 %v1149, 2147483648
        %v1165 = vor.u32 1.1754944e-38, %v1164
        %v1166 = vsel %vm1163, %v1165, %v1161
        %v1167 = vmul.f32 1.0, %v1166
        %v1168 = vrcp.pop %v1150
        %v1169 = vmul.f32 %v1150, %v1168
        %v1170 = vsub.f32 1.0, %v1169
        %v1171 = vmul.f32 %v1168, %v1170
        %v1172 = vadd.f32 %v1168, %v1171
        %vm1173 = vweird.f32 %v1150
        %vm1174 = vweird.f32 %v1168
        %vm1175 = vmor %vm1173, %vm1174
        %v1176 = vsel %vm1175, %v1168, %v1172
        %v1177 = vand.u32 2147483647, %v1150
        %vm1178 = vcmp.eq.f32.partialorder %v1177, 8.507059e+37
        %v1179 = vand.u32 %v1150, 2147483648
        %v1180 = vor.u32 1.1754944e-38, %v1179
        %v1181 = vsel %vm1178, %v1180, %v1176
        %v1182 = vmul.f32 1.0, %v1181
        %v1183 = vrcp.pop %v1151
        %v1184 = vmul.f32 %v1151, %v1183
        %v1185 = vsub.f32 1.0, %v1184
        %v1186 = vmul.f32 %v1183, %v1185
        %v1187 = vadd.f32 %v1183, %v1186
        %vm1188 = vweird.f32 %v1151
        %vm1189 = vweird.f32 %v1183
        %vm1190 = vmor %vm1188, %vm1189
        %v1191 = vsel %vm1190, %v1183, %v1187
        %v1192 = vand.u32 2147483647, %v1151
        %vm1193 = vcmp.eq.f32.partialorder %v1192, 8.507059e+37
        %v1194 = vand.u32 %v1151, 2147483648
        %v1195 = vor.u32 1.1754944e-38, %v1194
        %v1196 = vsel %vm1193, %v1195, %v1191
        %v1197 = vmul.f32 1.0, %v1196
        %v1198 = vrcp.pop %v1152
        %v1199 = vmul.f32 %v1152, %v1198
        %v1200 = vsub.f32 1.0, %v1199
        %v1201 = vmul.f32 %v1198, %v1200
        %v1202 = vadd.f32 %v1198, %v1201
        %vm1203 = vweird.f32 %v1152
        %vm1204 = vweird.f32 %v1198
        %vm1205 = vmor %vm1203, %vm1204
        %v1206 = vsel %vm1205, %v1198, %v1202
        %v1207 = vand.u32 2147483647, %v1152
        %vm1208 = vcmp.eq.f32.partialorder %v1207, 8.507059e+37
        %v1209 = vand.u32 %v1152, 2147483648
        %v1210 = vor.u32 1.1754944e-38, %v1209
        %v1211 = vsel %vm1208, %v1210, %v1206
        %v1212 = vmul.f32 1.0, %v1211
        %v1213 = vmul.f32 %v1133, %v1167
        %v1214 = vmul.f32 %v1134, %v1182
        %v1215 = vmul.f32 %v1135, %v1197
        %v1216 = vmul.f32 %v1136, %v1212
        %s1217 = scalar_lea.vmem [#allocation2], 16
        %v1218 = vld [vmem:[%s1217] sm:$0xff]
        %v1219 = vld [vmem:[%s1217 + $0x8] sm:$0xff]
        %v1220 = vpack.c.bf16 %v1215, %v1213
        %v1221 = vpack.c.bf16 %v1216, %v1214
        %s1222 = scalar_lea.vmem %s298, 128 [#allocation8]
        %v1223 = vld [vmem:[%s1222] sm:$0xf]
        %v1224 = vld [vmem:[%s1222 + $0x4] sm:$0xf]
        %v1225 = vld [vmem:[%s1222 + $0x8] sm:$0xf]
        %v1226 = vld [vmem:[%s1222 + $0xc] sm:$0xf]
        %v1227 = vld [vmem:[%s1222 + $0x10] sm:$0xf]
        %v1228 = vld [vmem:[%s1222 + $0x14] sm:$0xf]
        %v1229 = vld [vmem:[%s1222 + $0x18] sm:$0xf]
        %v1230 = vld [vmem:[%s1222 + $0x1c] sm:$0xf]
        %v1231 = vld [vmem:[%s1222 + $0x20] sm:$0xf]
        %v1232 = vld [vmem:[%s1222 + $0x24] sm:$0xf]
        %v1233 = vld [vmem:[%s1222 + $0x28] sm:$0xf]
        %v1234 = vld [vmem:[%s1222 + $0x2c] sm:$0xf]
        %v1235 = vld [vmem:[%s1222 + $0x30] sm:$0xf]
        %v1236 = vld [vmem:[%s1222 + $0x34] sm:$0xf]
        %v1237 = vld [vmem:[%s1222 + $0x38] sm:$0xf]
        %v1238 = vld [vmem:[%s1222 + $0x3c] sm:$0xf]
        %v1239 = vld [vmem:[%s1222 + $0x40] sm:$0xf]
        %v1240 = vld [vmem:[%s1222 + $0x44] sm:$0xf]
        %v1241 = vld [vmem:[%s1222 + $0x48] sm:$0xf]
        %v1242 = vld [vmem:[%s1222 + $0x4c] sm:$0xf]
        %v1243 = vld [vmem:[%s1222 + $0x50] sm:$0xf]
        %v1244 = vld [vmem:[%s1222 + $0x54] sm:$0xf]
        %v1245 = vld [vmem:[%s1222 + $0x58] sm:$0xf]
        %v1246 = vld [vmem:[%s1222 + $0x5c] sm:$0xf]
        %v1247 = vld [vmem:[%s1222 + $0x60] sm:$0xf]
        %v1248 = vld [vmem:[%s1222 + $0x64] sm:$0xf]
        %v1249 = vld [vmem:[%s1222 + $0x68] sm:$0xf]
        %v1250 = vld [vmem:[%s1222 + $0x6c] sm:$0xf]
        %v1251 = vld [vmem:[%s1222 + $0x70] sm:$0xf]
        %v1252 = vld [vmem:[%s1222 + $0x74] sm:$0xf]
        %v1253 = vld [vmem:[%s1222 + $0x78] sm:$0xf]
        %v1254 = vld [vmem:[%s1222 + $0x7c] sm:$0xf]
        %v1287 = vunpack.c.l.b16 %v1223
        %v1288 = vunpack.c.l.b16 %v1224
        %v1289 = vunpack.c.l.b16 %v1225
        %v1290 = vunpack.c.l.b16 %v1226
        %v1291 = vunpack.c.l.b16 %v1227
        %v1292 = vunpack.c.l.b16 %v1228
        %v1293 = vunpack.c.l.b16 %v1229
        %v1294 = vunpack.c.l.b16 %v1230
        %v1295 = vunpack.c.l.b16 %v1231
        %v1296 = vunpack.c.l.b16 %v1232
        %v1297 = vunpack.c.l.b16 %v1233
        %v1298 = vunpack.c.l.b16 %v1234
        %v1299 = vunpack.c.l.b16 %v1235
        %v1300 = vunpack.c.l.b16 %v1236
        %v1301 = vunpack.c.l.b16 %v1237
        %v1302 = vunpack.c.l.b16 %v1238
        %v1303 = vunpack.c.l.b16 %v1239
        %v1304 = vunpack.c.l.b16 %v1240
        %v1305 = vunpack.c.l.b16 %v1241
        %v1306 = vunpack.c.l.b16 %v1242
        %v1307 = vunpack.c.l.b16 %v1243
        %v1308 = vunpack.c.l.b16 %v1244
        %v1309 = vunpack.c.l.b16 %v1245
        %v1310 = vunpack.c.l.b16 %v1246
        %v1311 = vunpack.c.l.b16 %v1247
        %v1312 = vunpack.c.l.b16 %v1248
        %v1313 = vunpack.c.l.b16 %v1249
        %v1314 = vunpack.c.l.b16 %v1250
        %v1315 = vunpack.c.l.b16 %v1251
        %v1316 = vunpack.c.l.b16 %v1252
        %v1317 = vunpack.c.l.b16 %v1253
        %v1318 = vunpack.c.l.b16 %v1254
        %v1319 = vpack.c.b16 %v1288, %v1287
        %v1320 = vpack.c.b16 %v1290, %v1289
        %v1321 = vpack.c.b16 %v1292, %v1291
        %v1322 = vpack.c.b16 %v1294, %v1293
        %v1323 = vpack.c.b16 %v1296, %v1295
        %v1324 = vpack.c.b16 %v1298, %v1297
        %v1325 = vpack.c.b16 %v1300, %v1299
        %v1326 = vpack.c.b16 %v1302, %v1301
        %v1327 = vpack.c.b16 %v1304, %v1303
        %v1328 = vpack.c.b16 %v1306, %v1305
        %v1329 = vpack.c.b16 %v1308, %v1307
        %v1330 = vpack.c.b16 %v1310, %v1309
        %v1331 = vpack.c.b16 %v1312, %v1311
        %v1332 = vpack.c.b16 %v1314, %v1313
        %v1333 = vpack.c.b16 %v1316, %v1315
        %v1334 = vpack.c.b16 %v1318, %v1317
        %1351 = vmatpush.bf16.msra.mxu0 %v1326
        %1352 = vmatpush.bf16.msra.mxu0 %v1325
        %1353 = vmatpush.bf16.msra.mxu0 %v1324
        %1354 = vmatpush.bf16.msra.mxu0 %v1323
        %1355 = vmatpush.bf16.msra.mxu0 %v1322
        %1356 = vmatpush.bf16.msra.mxu0 %v1321
        %1357 = vmatpush.bf16.msra.mxu0 %v1320
        %1358 = vmatpush.bf16.msra.mxu0 %v1319
        %1359 = vmatmul.bf16.gmra.mxu0 %v1220
        %v1360 = vpop.f32.mrf.mxu0
        %v1361 = vadd.f32 0.0, %v1360
        %v1362 = vpop.f32.mrf.mxu0
        %v1363 = vadd.f32 0.0, %v1362
        %1364 = vdwg.mxu0
        %1365 = vmatpush.bf16.msra.mxu0 %v1334
        %1366 = vmatpush.bf16.msra.mxu0 %v1333
        %1367 = vmatpush.bf16.msra.mxu0 %v1332
        %1368 = vmatpush.bf16.msra.mxu0 %v1331
        %1369 = vmatpush.bf16.msra.mxu0 %v1330
        %1370 = vmatpush.bf16.msra.mxu0 %v1329
        %1371 = vmatpush.bf16.msra.mxu0 %v1328
        %1372 = vmatpush.bf16.msra.mxu0 %v1327
        %1373 = vmatmul.bf16.gmra.mxu0 %v1221
        %v1374 = vpop.f32.mrf.mxu0
        %v1375 = vadd.f32 %v1361, %v1374
        %v1376 = vpop.f32.mrf.mxu0
        %v1377 = vadd.f32 %v1363, %v1376
        %1378 = vdwg.mxu0
        %v1379 = vadd.f32 %v1218, %v1375
        %v1380 = vadd.f32 %v1219, %v1377
        %1381 = vst [vmem:[%s1217] sm:$0xff] %v1379
        %1382 = vst [vmem:[%s1217 + $0x8] sm:$0xff] %v1380
        %s1383 = scalar_lea.vmem %s278, 16 [#allocation3]
        %v1384 = vld [vmem:[%s1383] sm:$0xf]
        %v1385 = vld [vmem:[%s1383 + $0x4] sm:$0xf]
        %s1386 = scalar_lea.vmem %s288, 512 [#allocation6]
        %v1387 = vld [vmem:[%s1386] sm:$0xff]
        %v1388 = vld [vmem:[%s1386 + $0x8] sm:$0xff]
        %v1389 = vld [vmem:[%s1386 + $0x10] sm:$0xff]
        %v1390 = vld [vmem:[%s1386 + $0x18] sm:$0xff]
        %v1391 = vld [vmem:[%s1386 + $0x20] sm:$0xff]
        %v1392 = vld [vmem:[%s1386 + $0x28] sm:$0xff]
        %v1393 = vld [vmem:[%s1386 + $0x30] sm:$0xff]
        %v1394 = vld [vmem:[%s1386 + $0x38] sm:$0xff]
        %v1395 = vld [vmem:[%s1386 + $0x40] sm:$0xff]
        %v1396 = vld [vmem:[%s1386 + $0x48] sm:$0xff]
        %v1397 = vld [vmem:[%s1386 + $0x50] sm:$0xff]
        %v1398 = vld [vmem:[%s1386 + $0x58] sm:$0xff]
        %v1399 = vld [vmem:[%s1386 + $0x60] sm:$0xff]
        %v1400 = vld [vmem:[%s1386 + $0x68] sm:$0xff]
        %v1401 = vld [vmem:[%s1386 + $0x70] sm:$0xff]
        %v1402 = vld [vmem:[%s1386 + $0x78] sm:$0xff]
        %v1405 = vunpack.c.l.b16 %v1384
        %v1406 = vunpack.c.l.b16 %v1385
        %v1407 = vpack.c.b16 %v1406, %v1405
        %v1425 = vunpack.c.l.b16 %v1387
        %v1426 = vunpack.c.h.b16 %v1387
        %v1427 = vunpack.c.l.b16 %v1388
        %v1428 = vunpack.c.h.b16 %v1388
        %v1429 = vunpack.c.l.b16 %v1389
        %v1430 = vunpack.c.h.b16 %v1389
        %v1431 = vunpack.c.l.b16 %v1390
        %v1432 = vunpack.c.h.b16 %v1390
        %v1433 = vunpack.c.l.b16 %v1391
        %v1434 = vunpack.c.h.b16 %v1391
        %v1435 = vunpack.c.l.b16 %v1392
        %v1436 = vunpack.c.h.b16 %v1392
        %v1437 = vunpack.c.l.b16 %v1393
        %v1438 = vunpack.c.h.b16 %v1393
        %v1439 = vunpack.c.l.b16 %v1394
        %v1440 = vunpack.c.h.b16 %v1394
        %v1441 = vunpack.c.l.b16 %v1395
        %v1442 = vunpack.c.h.b16 %v1395
        %v1443 = vunpack.c.l.b16 %v1396
        %v1444 = vunpack.c.h.b16 %v1396
        %v1445 = vunpack.c.l.b16 %v1397
        %v1446 = vunpack.c.h.b16 %v1397
        %v1447 = vunpack.c.l.b16 %v1398
        %v1448 = vunpack.c.h.b16 %v1398
        %v1449 = vunpack.c.l.b16 %v1399
        %v1450 = vunpack.c.h.b16 %v1399
        %v1451 = vunpack.c.l.b16 %v1400
        %v1452 = vunpack.c.h.b16 %v1400
        %v1453 = vunpack.c.l.b16 %v1401
        %v1454 = vunpack.c.h.b16 %v1401
        %v1455 = vunpack.c.l.b16 %v1402
        %v1456 = vunpack.c.h.b16 %v1402
        %v1457 = vpack.c.b16 %v1427, %v1425
        %v1458 = vpack.c.b16 %v1428, %v1426
        %v1459 = vpack.c.b16 %v1431, %v1429
        %v1460 = vpack.c.b16 %v1432, %v1430
        %v1461 = vpack.c.b16 %v1435, %v1433
        %v1462 = vpack.c.b16 %v1436, %v1434
        %v1463 = vpack.c.b16 %v1439, %v1437
        %v1464 = vpack.c.b16 %v1440, %v1438
        %v1465 = vpack.c.b16 %v1443, %v1441
        %v1466 = vpack.c.b16 %v1444, %v1442
        %v1467 = vpack.c.b16 %v1447, %v1445
        %v1468 = vpack.c.b16 %v1448, %v1446
        %v1469 = vpack.c.b16 %v1451, %v1449
        %v1470 = vpack.c.b16 %v1452, %v1450
        %v1471 = vpack.c.b16 %v1455, %v1453
        %v1472 = vpack.c.b16 %v1456, %v1454
        %1489 = vmatpush.bf16.msra.mxu0 %v1471
        %1490 = vmatpush.bf16.msra.mxu0 %v1469
        %1491 = vmatpush.bf16.msra.mxu0 %v1467
        %1492 = vmatpush.bf16.msra.mxu0 %v1465
        %1493 = vmatpush.bf16.msra.mxu0 %v1463
        %1494 = vmatpush.bf16.msra.mxu0 %v1461
        %1495 = vmatpush.bf16.msra.mxu0 %v1459
        %1496 = vmatpush.bf16.msra.mxu0 %v1457
        %1497 = vmatmul.bf16.gmra.mxu0 %v1407
        %v1498 = vpop.f32.mrf.mxu0
        %v1499 = vadd.f32 0.0, %v1498
        %v1500 = vpop.f32.mrf.mxu0
        %v1501 = vadd.f32 0.0, %v1500
        %1502 = vdwg.mxu0
        %1503 = vmatpush.bf16.msra.mxu0 %v1472
        %1504 = vmatpush.bf16.msra.mxu0 %v1470
        %1505 = vmatpush.bf16.msra.mxu0 %v1468
        %1506 = vmatpush.bf16.msra.mxu0 %v1466
        %1507 = vmatpush.bf16.msra.mxu0 %v1464
        %1508 = vmatpush.bf16.msra.mxu0 %v1462
        %1509 = vmatpush.bf16.msra.mxu0 %v1460
        %1510 = vmatpush.bf16.msra.mxu0 %v1458
        %1511 = vmatmul.bf16.gmra.mxu0 %v1407
        %v1512 = vpop.f32.mrf.mxu0
        %v1513 = vadd.f32 0.0, %v1512
        %v1514 = vpop.f32.mrf.mxu0
        %v1515 = vadd.f32 0.0, %v1514
        %1516 = vdwg.mxu0
        %s1517 = scalar_lea.vmem %s288, 640 [#allocation6]
        %v1518 = vld [vmem:[%s1517] sm:$0xff]
        %v1519 = vld [vmem:[%s1517 + $0x8] sm:$0xff]
        %v1520 = vld [vmem:[%s1517 + $0x10] sm:$0xff]
        %v1521 = vld [vmem:[%s1517 + $0x18] sm:$0xff]
        %v1522 = vld [vmem:[%s1517 + $0x20] sm:$0xff]
        %v1523 = vld [vmem:[%s1517 + $0x28] sm:$0xff]
        %v1524 = vld [vmem:[%s1517 + $0x30] sm:$0xff]
        %v1525 = vld [vmem:[%s1517 + $0x38] sm:$0xff]
        %v1526 = vld [vmem:[%s1517 + $0x40] sm:$0xff]
        %v1527 = vld [vmem:[%s1517 + $0x48] sm:$0xff]
        %v1528 = vld [vmem:[%s1517 + $0x50] sm:$0xff]
        %v1529 = vld [vmem:[%s1517 + $0x58] sm:$0xff]
        %v1530 = vld [vmem:[%s1517 + $0x60] sm:$0xff]
        %v1531 = vld [vmem:[%s1517 + $0x68] sm:$0xff]
        %v1532 = vld [vmem:[%s1517 + $0x70] sm:$0xff]
        %v1533 = vld [vmem:[%s1517 + $0x78] sm:$0xff]
        %v1550 = vunpack.c.l.b16 %v1518
        %v1551 = vunpack.c.h.b16 %v1518
        %v1552 = vunpack.c.l.b16 %v1519
        %v1553 = vunpack.c.h.b16 %v1519
        %v1554 = vunpack.c.l.b16 %v1520
        %v1555 = vunpack.c.h.b16 %v1520
        %v1556 = vunpack.c.l.b16 %v1521
        %v1557 = vunpack.c.h.b16 %v1521
        %v1558 = vunpack.c.l.b16 %v1522
        %v1559 = vunpack.c.h.b16 %v1522
        %v1560 = vunpack.c.l.b16 %v1523
        %v1561 = vunpack.c.h.b16 %v1523
        %v1562 = vunpack.c.l.b16 %v1524
        %v1563 = vunpack.c.h.b16 %v1524
        %v1564 = vunpack.c.l.b16 %v1525
        %v1565 = vunpack.c.h.b16 %v1525
        %v1566 = vunpack.c.l.b16 %v1526
        %v1567 = vunpack.c.h.b16 %v1526
        %v1568 = vunpack.c.l.b16 %v1527
        %v1569 = vunpack.c.h.b16 %v1527
        %v1570 = vunpack.c.l.b16 %v1528
        %v1571 = vunpack.c.h.b16 %v1528
        %v1572 = vunpack.c.l.b16 %v1529
        %v1573 = vunpack.c.h.b16 %v1529
        %v1574 = vunpack.c.l.b16 %v1530
        %v1575 = vunpack.c.h.b16 %v1530
        %v1576 = vunpack.c.l.b16 %v1531
        %v1577 = vunpack.c.h.b16 %v1531
        %v1578 = vunpack.c.l.b16 %v1532
        %v1579 = vunpack.c.h.b16 %v1532
        %v1580 = vunpack.c.l.b16 %v1533
        %v1581 = vunpack.c.h.b16 %v1533
        %v1582 = vpack.c.b16 %v1552, %v1550
        %v1583 = vpack.c.b16 %v1553, %v1551
        %v1584 = vpack.c.b16 %v1556, %v1554
        %v1585 = vpack.c.b16 %v1557, %v1555
        %v1586 = vpack.c.b16 %v1560, %v1558
        %v1587 = vpack.c.b16 %v1561, %v1559
        %v1588 = vpack.c.b16 %v1564, %v1562
        %v1589 = vpack.c.b16 %v1565, %v1563
        %v1590 = vpack.c.b16 %v1568, %v1566
        %v1591 = vpack.c.b16 %v1569, %v1567
        %v1592 = vpack.c.b16 %v1572, %v1570
        %v1593 = vpack.c.b16 %v1573, %v1571
        %v1594 = vpack.c.b16 %v1576, %v1574
        %v1595 = vpack.c.b16 %v1577, %v1575
        %v1596 = vpack.c.b16 %v1580, %v1578
        %v1597 = vpack.c.b16 %v1581, %v1579
        %1614 = vmatpush.bf16.msra.mxu0 %v1596
        %1615 = vmatpush.bf16.msra.mxu0 %v1594
        %1616 = vmatpush.bf16.msra.mxu0 %v1592
        %1617 = vmatpush.bf16.msra.mxu0 %v1590
        %1618 = vmatpush.bf16.msra.mxu0 %v1588
        %1619 = vmatpush.bf16.msra.mxu0 %v1586
        %1620 = vmatpush.bf16.msra.mxu0 %v1584
        %1621 = vmatpush.bf16.msra.mxu0 %v1582
        %1622 = vmatmul.bf16.gmra.mxu0 %v1407
        %v1623 = vpop.f32.mrf.mxu0
        %v1624 = vadd.f32 0.0, %v1623
        %v1625 = vpop.f32.mrf.mxu0
        %v1626 = vadd.f32 0.0, %v1625
        %1627 = vdwg.mxu0
        %1628 = vmatpush.bf16.msra.mxu0 %v1597
        %1629 = vmatpush.bf16.msra.mxu0 %v1595
        %1630 = vmatpush.bf16.msra.mxu0 %v1593
        %1631 = vmatpush.bf16.msra.mxu0 %v1591
        %1632 = vmatpush.bf16.msra.mxu0 %v1589
        %1633 = vmatpush.bf16.msra.mxu0 %v1587
        %1634 = vmatpush.bf16.msra.mxu0 %v1585
        %1635 = vmatpush.bf16.msra.mxu0 %v1583
        %1636 = vmatmul.bf16.gmra.mxu0 %v1407
        %v1637 = vpop.f32.mrf.mxu0
        %v1638 = vadd.f32 0.0, %v1637
        %v1639 = vpop.f32.mrf.mxu0
        %v1640 = vadd.f32 0.0, %v1639
        %1641 = vdwg.mxu0
        %v1642 = vmul.f32 %v1499, %v1624
        %v1643 = vmul.f32 %v1513, %v1638
        %v1644 = vmul.f32 %v1501, %v1626
        %v1645 = vmul.f32 %v1515, %v1640
        %v1646 = vxor.u32 %v1642, 2147483648
        %v1647 = vxor.u32 %v1643, 2147483648
        %v1648 = vxor.u32 %v1644, 2147483648
        %v1649 = vxor.u32 %v1645, 2147483648
        %v1650 = vmul.f32 %v1646, 1.442695
        %v1651 = vpow.pop %v1650
        %v1652 = vmul.f32 %v1647, 1.442695
        %v1653 = vpow.pop %v1652
        %v1654 = vmul.f32 %v1648, 1.442695
        %v1655 = vpow.pop %v1654
        %v1656 = vmul.f32 %v1649, 1.442695
        %v1657 = vpow.pop %v1656
        %v1658 = vadd.f32 %v1651, 1.0
        %v1659 = vadd.f32 %v1653, 1.0
        %v1660 = vadd.f32 %v1655, 1.0
        %v1661 = vadd.f32 %v1657, 1.0
        %v1662 = vrcp.pop %v1658
        %v1663 = vmul.f32 %v1658, %v1662
        %v1664 = vsub.f32 1.0, %v1663
        %v1665 = vmul.f32 %v1662, %v1664
        %v1666 = vadd.f32 %v1662, %v1665
        %vm1667 = vweird.f32 %v1658
        %vm1668 = vweird.f32 %v1662
        %vm1669 = vmor %vm1667, %vm1668
        %v1670 = vsel %vm1669, %v1662, %v1666
        %v1671 = vand.u32 2147483647, %v1658
        %vm1672 = vcmp.eq.f32.partialorder %v1671, 8.507059e+37
        %v1673 = vand.u32 %v1658, 2147483648
        %v1674 = vor.u32 1.1754944e-38, %v1673
        %v1675 = vsel %vm1672, %v1674, %v1670
        %v1676 = vmul.f32 1.0, %v1675
        %v1677 = vrcp.pop %v1659
        %v1678 = vmul.f32 %v1659, %v1677
        %v1679 = vsub.f32 1.0, %v1678
        %v1680 = vmul.f32 %v1677, %v1679
        %v1681 = vadd.f32 %v1677, %v1680
        %vm1682 = vweird.f32 %v1659
        %vm1683 = vweird.f32 %v1677
        %vm1684 = vmor %vm1682, %vm1683
        %v1685 = vsel %vm1684, %v1677, %v1681
        %v1686 = vand.u32 2147483647, %v1659
        %vm1687 = vcmp.eq.f32.partialorder %v1686, 8.507059e+37
        %v1688 = vand.u32 %v1659, 2147483648
        %v1689 = vor.u32 1.1754944e-38, %v1688
        %v1690 = vsel %vm1687, %v1689, %v1685
        %v1691 = vmul.f32 1.0, %v1690
        %v1692 = vrcp.pop %v1660
        %v1693 = vmul.f32 %v1660, %v1692
        %v1694 = vsub.f32 1.0, %v1693
        %v1695 = vmul.f32 %v1692, %v1694
        %v1696 = vadd.f32 %v1692, %v1695
        %vm1697 = vweird.f32 %v1660
        %vm1698 = vweird.f32 %v1692
        %vm1699 = vmor %vm1697, %vm1698
        %v1700 = vsel %vm1699, %v1692, %v1696
        %v1701 = vand.u32 2147483647, %v1660
        %vm1702 = vcmp.eq.f32.partialorder %v1701, 8.507059e+37
        %v1703 = vand.u32 %v1660, 2147483648
        %v1704 = vor.u32 1.1754944e-38, %v1703
        %v1705 = vsel %vm1702, %v1704, %v1700
        %v1706 = vmul.f32 1.0, %v1705
        %v1707 = vrcp.pop %v1661
        %v1708 = vmul.f32 %v1661, %v1707
        %v1709 = vsub.f32 1.0, %v1708
        %v1710 = vmul.f32 %v1707, %v1709
        %v1711 = vadd.f32 %v1707, %v1710
        %vm1712 = vweird.f32 %v1661
        %vm1713 = vweird.f32 %v1707
        %vm1714 = vmor %vm1712, %vm1713
        %v1715 = vsel %vm1714, %v1707, %v1711
        %v1716 = vand.u32 2147483647, %v1661
        %vm1717 = vcmp.eq.f32.partialorder %v1716, 8.507059e+37
        %v1718 = vand.u32 %v1661, 2147483648
        %v1719 = vor.u32 1.1754944e-38, %v1718
        %v1720 = vsel %vm1717, %v1719, %v1715
        %v1721 = vmul.f32 1.0, %v1720
        %v1722 = vmul.f32 %v1642, %v1676
        %v1723 = vmul.f32 %v1643, %v1691
        %v1724 = vmul.f32 %v1644, %v1706
        %v1725 = vmul.f32 %v1645, %v1721
        %s1726 = scalar_lea.vmem [#allocation2], 32
        %v1727 = vld [vmem:[%s1726] sm:$0xff]
        %v1728 = vld [vmem:[%s1726 + $0x8] sm:$0xff]
        %v1729 = vpack.c.bf16 %v1724, %v1722
        %v1730 = vpack.c.bf16 %v1725, %v1723
        %s1731 = scalar_lea.vmem %s298, 256 [#allocation8]
        %v1732 = vld [vmem:[%s1731] sm:$0xf]
        %v1733 = vld [vmem:[%s1731 + $0x4] sm:$0xf]
        %v1734 = vld [vmem:[%s1731 + $0x8] sm:$0xf]
        %v1735 = vld [vmem:[%s1731 + $0xc] sm:$0xf]
        %v1736 = vld [vmem:[%s1731 + $0x10] sm:$0xf]
        %v1737 = vld [vmem:[%s1731 + $0x14] sm:$0xf]
        %v1738 = vld [vmem:[%s1731 + $0x18] sm:$0xf]
        %v1739 = vld [vmem:[%s1731 + $0x1c] sm:$0xf]
        %v1740 = vld [vmem:[%s1731 + $0x20] sm:$0xf]
        %v1741 = vld [vmem:[%s1731 + $0x24] sm:$0xf]
        %v1742 = vld [vmem:[%s1731 + $0x28] sm:$0xf]
        %v1743 = vld [vmem:[%s1731 + $0x2c] sm:$0xf]
        %v1744 = vld [vmem:[%s1731 + $0x30] sm:$0xf]
        %v1745 = vld [vmem:[%s1731 + $0x34] sm:$0xf]
        %v1746 = vld [vmem:[%s1731 + $0x38] sm:$0xf]
        %v1747 = vld [vmem:[%s1731 + $0x3c] sm:$0xf]
        %v1748 = vld [vmem:[%s1731 + $0x40] sm:$0xf]
        %v1749 = vld [vmem:[%s1731 + $0x44] sm:$0xf]
        %v1750 = vld [vmem:[%s1731 + $0x48] sm:$0xf]
        %v1751 = vld [vmem:[%s1731 + $0x4c] sm:$0xf]
        %v1752 = vld [vmem:[%s1731 + $0x50] sm:$0xf]
        %v1753 = vld [vmem:[%s1731 + $0x54] sm:$0xf]
        %v1754 = vld [vmem:[%s1731 + $0x58] sm:$0xf]
        %v1755 = vld [vmem:[%s1731 + $0x5c] sm:$0xf]
        %v1756 = vld [vmem:[%s1731 + $0x60] sm:$0xf]
        %v1757 = vld [vmem:[%s1731 + $0x64] sm:$0xf]
        %v1758 = vld [vmem:[%s1731 + $0x68] sm:$0xf]
        %v1759 = vld [vmem:[%s1731 + $0x6c] sm:$0xf]
        %v1760 = vld [vmem:[%s1731 + $0x70] sm:$0xf]
        %v1761 = vld [vmem:[%s1731 + $0x74] sm:$0xf]
        %v1762 = vld [vmem:[%s1731 + $0x78] sm:$0xf]
        %v1763 = vld [vmem:[%s1731 + $0x7c] sm:$0xf]
        %v1796 = vunpack.c.l.b16 %v1732
        %v1797 = vunpack.c.l.b16 %v1733
        %v1798 = vunpack.c.l.b16 %v1734
        %v1799 = vunpack.c.l.b16 %v1735
        %v1800 = vunpack.c.l.b16 %v1736
        %v1801 = vunpack.c.l.b16 %v1737
        %v1802 = vunpack.c.l.b16 %v1738
        %v1803 = vunpack.c.l.b16 %v1739
        %v1804 = vunpack.c.l.b16 %v1740
        %v1805 = vunpack.c.l.b16 %v1741
        %v1806 = vunpack.c.l.b16 %v1742
        %v1807 = vunpack.c.l.b16 %v1743
        %v1808 = vunpack.c.l.b16 %v1744
        %v1809 = vunpack.c.l.b16 %v1745
        %v1810 = vunpack.c.l.b16 %v1746
        %v1811 = vunpack.c.l.b16 %v1747
        %v1812 = vunpack.c.l.b16 %v1748
        %v1813 = vunpack.c.l.b16 %v1749
        %v1814 = vunpack.c.l.b16 %v1750
        %v1815 = vunpack.c.l.b16 %v1751
        %v1816 = vunpack.c.l.b16 %v1752
        %v1817 = vunpack.c.l.b16 %v1753
        %v1818 = vunpack.c.l.b16 %v1754
        %v1819 = vunpack.c.l.b16 %v1755
        %v1820 = vunpack.c.l.b16 %v1756
        %v1821 = vunpack.c.l.b16 %v1757
        %v1822 = vunpack.c.l.b16 %v1758
        %v1823 = vunpack.c.l.b16 %v1759
        %v1824 = vunpack.c.l.b16 %v1760
        %v1825 = vunpack.c.l.b16 %v1761
        %v1826 = vunpack.c.l.b16 %v1762
        %v1827 = vunpack.c.l.b16 %v1763
        %v1828 = vpack.c.b16 %v1797, %v1796
        %v1829 = vpack.c.b16 %v1799, %v1798
        %v1830 = vpack.c.b16 %v1801, %v1800
        %v1831 = vpack.c.b16 %v1803, %v1802
        %v1832 = vpack.c.b16 %v1805, %v1804
        %v1833 = vpack.c.b16 %v1807, %v1806
        %v1834 = vpack.c.b16 %v1809, %v1808
        %v1835 = vpack.c.b16 %v1811, %v1810
        %v1836 = vpack.c.b16 %v1813, %v1812
        %v1837 = vpack.c.b16 %v1815, %v1814
        %v1838 = vpack.c.b16 %v1817, %v1816
        %v1839 = vpack.c.b16 %v1819, %v1818
        %v1840 = vpack.c.b16 %v1821, %v1820
        %v1841 = vpack.c.b16 %v1823, %v1822
        %v1842 = vpack.c.b16 %v1825, %v1824
        %v1843 = vpack.c.b16 %v1827, %v1826
        %1860 = vmatpush.bf16.msra.mxu0 %v1835
        %1861 = vmatpush.bf16.msra.mxu0 %v1834
        %1862 = vmatpush.bf16.msra.mxu0 %v1833
        %1863 = vmatpush.bf16.msra.mxu0 %v1832
        %1864 = vmatpush.bf16.msra.mxu0 %v1831
        %1865 = vmatpush.bf16.msra.mxu0 %v1830
        %1866 = vmatpush.bf16.msra.mxu0 %v1829
        %1867 = vmatpush.bf16.msra.mxu0 %v1828
        %1868 = vmatmul.bf16.gmra.mxu0 %v1729
        %v1869 = vpop.f32.mrf.mxu0
        %v1870 = vadd.f32 0.0, %v1869
        %v1871 = vpop.f32.mrf.mxu0
        %v1872 = vadd.f32 0.0, %v1871
        %1873 = vdwg.mxu0
        %1874 = vmatpush.bf16.msra.mxu0 %v1843
        %1875 = vmatpush.bf16.msra.mxu0 %v1842
        %1876 = vmatpush.bf16.msra.mxu0 %v1841
        %1877 = vmatpush.bf16.msra.mxu0 %v1840
        %1878 = vmatpush.bf16.msra.mxu0 %v1839
        %1879 = vmatpush.bf16.msra.mxu0 %v1838
        %1880 = vmatpush.bf16.msra.mxu0 %v1837
        %1881 = vmatpush.bf16.msra.mxu0 %v1836
        %1882 = vmatmul.bf16.gmra.mxu0 %v1730
        %v1883 = vpop.f32.mrf.mxu0
        %v1884 = vadd.f32 %v1870, %v1883
        %v1885 = vpop.f32.mrf.mxu0
        %v1886 = vadd.f32 %v1872, %v1885
        %1887 = vdwg.mxu0
        %v1888 = vadd.f32 %v1727, %v1884
        %v1889 = vadd.f32 %v1728, %v1886
        %1890 = vst [vmem:[%s1726] sm:$0xff] %v1888
        %1891 = vst [vmem:[%s1726 + $0x8] sm:$0xff] %v1889
        %s1892 = scalar_lea.vmem %s278, 24 [#allocation3]
        %v1893 = vld [vmem:[%s1892] sm:$0xf]
        %v1894 = vld [vmem:[%s1892 + $0x4] sm:$0xf]
        %s1895 = scalar_lea.vmem %s288, 768 [#allocation6]
        %v1896 = vld [vmem:[%s1895] sm:$0xff]
        %v1897 = vld [vmem:[%s1895 + $0x8] sm:$0xff]
        %v1898 = vld [vmem:[%s1895 + $0x10] sm:$0xff]
        %v1899 = vld [vmem:[%s1895 + $0x18] sm:$0xff]
        %v1900 = vld [vmem:[%s1895 + $0x20] sm:$0xff]
        %v1901 = vld [vmem:[%s1895 + $0x28] sm:$0xff]
        %v1902 = vld [vmem:[%s1895 + $0x30] sm:$0xff]
        %v1903 = vld [vmem:[%s1895 + $0x38] sm:$0xff]
        %v1904 = vld [vmem:[%s1895 + $0x40] sm:$0xff]
        %v1905 = vld [vmem:[%s1895 + $0x48] sm:$0xff]
        %v1906 = vld [vmem:[%s1895 + $0x50] sm:$0xff]
        %v1907 = vld [vmem:[%s1895 + $0x58] sm:$0xff]
        %v1908 = vld [vmem:[%s1895 + $0x60] sm:$0xff]
        %v1909 = vld [vmem:[%s1895 + $0x68] sm:$0xff]
        %v1910 = vld [vmem:[%s1895 + $0x70] sm:$0xff]
        %v1911 = vld [vmem:[%s1895 + $0x78] sm:$0xff]
        %v1914 = vunpack.c.l.b16 %v1893
        %v1915 = vunpack.c.l.b16 %v1894
        %v1916 = vpack.c.b16 %v1915, %v1914
        %v1934 = vunpack.c.l.b16 %v1896
        %v1935 = vunpack.c.h.b16 %v1896
        %v1936 = vunpack.c.l.b16 %v1897
        %v1937 = vunpack.c.h.b16 %v1897
        %v1938 = vunpack.c.l.b16 %v1898
        %v1939 = vunpack.c.h.b16 %v1898
        %v1940 = vunpack.c.l.b16 %v1899
        %v1941 = vunpack.c.h.b16 %v1899
        %v1942 = vunpack.c.l.b16 %v1900
        %v1943 = vunpack.c.h.b16 %v1900
        %v1944 = vunpack.c.l.b16 %v1901
        %v1945 = vunpack.c.h.b16 %v1901
        %v1946 = vunpack.c.l.b16 %v1902
        %v1947 = vunpack.c.h.b16 %v1902
        %v1948 = vunpack.c.l.b16 %v1903
        %v1949 = vunpack.c.h.b16 %v1903
        %v1950 = vunpack.c.l.b16 %v1904
        %v1951 = vunpack.c.h.b16 %v1904
        %v1952 = vunpack.c.l.b16 %v1905
        %v1953 = vunpack.c.h.b16 %v1905
        %v1954 = vunpack.c.l.b16 %v1906
        %v1955 = vunpack.c.h.b16 %v1906
        %v1956 = vunpack.c.l.b16 %v1907
        %v1957 = vunpack.c.h.b16 %v1907
        %v1958 = vunpack.c.l.b16 %v1908
        %v1959 = vunpack.c.h.b16 %v1908
        %v1960 = vunpack.c.l.b16 %v1909
        %v1961 = vunpack.c.h.b16 %v1909
        %v1962 = vunpack.c.l.b16 %v1910
        %v1963 = vunpack.c.h.b16 %v1910
        %v1964 = vunpack.c.l.b16 %v1911
        %v1965 = vunpack.c.h.b16 %v1911
        %v1966 = vpack.c.b16 %v1936, %v1934
        %v1967 = vpack.c.b16 %v1937, %v1935
        %v1968 = vpack.c.b16 %v1940, %v1938
        %v1969 = vpack.c.b16 %v1941, %v1939
        %v1970 = vpack.c.b16 %v1944, %v1942
        %v1971 = vpack.c.b16 %v1945, %v1943
        %v1972 = vpack.c.b16 %v1948, %v1946
        %v1973 = vpack.c.b16 %v1949, %v1947
        %v1974 = vpack.c.b16 %v1952, %v1950
        %v1975 = vpack.c.b16 %v1953, %v1951
        %v1976 = vpack.c.b16 %v1956, %v1954
        %v1977 = vpack.c.b16 %v1957, %v1955
        %v1978 = vpack.c.b16 %v1960, %v1958
        %v1979 = vpack.c.b16 %v1961, %v1959
        %v1980 = vpack.c.b16 %v1964, %v1962
        %v1981 = vpack.c.b16 %v1965, %v1963
        %1998 = vmatpush.bf16.msra.mxu0 %v1980
        %1999 = vmatpush.bf16.msra.mxu0 %v1978
        %2000 = vmatpush.bf16.msra.mxu0 %v1976
        %2001 = vmatpush.bf16.msra.mxu0 %v1974
        %2002 = vmatpush.bf16.msra.mxu0 %v1972
        %2003 = vmatpush.bf16.msra.mxu0 %v1970
        %2004 = vmatpush.bf16.msra.mxu0 %v1968
        %2005 = vmatpush.bf16.msra.mxu0 %v1966
        %2006 = vmatmul.bf16.gmra.mxu0 %v1916
        %v2007 = vpop.f32.mrf.mxu0
        %v2008 = vadd.f32 0.0, %v2007
        %v2009 = vpop.f32.mrf.mxu0
        %v2010 = vadd.f32 0.0, %v2009
        %2011 = vdwg.mxu0
        %2012 = vmatpush.bf16.msra.mxu0 %v1981
        %2013 = vmatpush.bf16.msra.mxu0 %v1979
        %2014 = vmatpush.bf16.msra.mxu0 %v1977
        %2015 = vmatpush.bf16.msra.mxu0 %v1975
        %2016 = vmatpush.bf16.msra.mxu0 %v1973
        %2017 = vmatpush.bf16.msra.mxu0 %v1971
        %2018 = vmatpush.bf16.msra.mxu0 %v1969
        %2019 = vmatpush.bf16.msra.mxu0 %v1967
        %2020 = vmatmul.bf16.gmra.mxu0 %v1916
        %v2021 = vpop.f32.mrf.mxu0
        %v2022 = vadd.f32 0.0, %v2021
        %v2023 = vpop.f32.mrf.mxu0
        %v2024 = vadd.f32 0.0, %v2023
        %2025 = vdwg.mxu0
        %s2026 = scalar_lea.vmem %s288, 896 [#allocation6]
        %v2027 = vld [vmem:[%s2026] sm:$0xff]
        %v2028 = vld [vmem:[%s2026 + $0x8] sm:$0xff]
        %v2029 = vld [vmem:[%s2026 + $0x10] sm:$0xff]
        %v2030 = vld [vmem:[%s2026 + $0x18] sm:$0xff]
        %v2031 = vld [vmem:[%s2026 + $0x20] sm:$0xff]
        %v2032 = vld [vmem:[%s2026 + $0x28] sm:$0xff]
        %v2033 = vld [vmem:[%s2026 + $0x30] sm:$0xff]
        %v2034 = vld [vmem:[%s2026 + $0x38] sm:$0xff]
        %v2035 = vld [vmem:[%s2026 + $0x40] sm:$0xff]
        %v2036 = vld [vmem:[%s2026 + $0x48] sm:$0xff]
        %v2037 = vld [vmem:[%s2026 + $0x50] sm:$0xff]
        %v2038 = vld [vmem:[%s2026 + $0x58] sm:$0xff]
        %v2039 = vld [vmem:[%s2026 + $0x60] sm:$0xff]
        %v2040 = vld [vmem:[%s2026 + $0x68] sm:$0xff]
        %v2041 = vld [vmem:[%s2026 + $0x70] sm:$0xff]
        %v2042 = vld [vmem:[%s2026 + $0x78] sm:$0xff]
        %v2059 = vunpack.c.l.b16 %v2027
        %v2060 = vunpack.c.h.b16 %v2027
        %v2061 = vunpack.c.l.b16 %v2028
        %v2062 = vunpack.c.h.b16 %v2028
        %v2063 = vunpack.c.l.b16 %v2029
        %v2064 = vunpack.c.h.b16 %v2029
        %v2065 = vunpack.c.l.b16 %v2030
        %v2066 = vunpack.c.h.b16 %v2030
        %v2067 = vunpack.c.l.b16 %v2031
        %v2068 = vunpack.c.h.b16 %v2031
        %v2069 = vunpack.c.l.b16 %v2032
        %v2070 = vunpack.c.h.b16 %v2032
        %v2071 = vunpack.c.l.b16 %v2033
        %v2072 = vunpack.c.h.b16 %v2033
        %v2073 = vunpack.c.l.b16 %v2034
        %v2074 = vunpack.c.h.b16 %v2034
        %v2075 = vunpack.c.l.b16 %v2035
        %v2076 = vunpack.c.h.b16 %v2035
        %v2077 = vunpack.c.l.b16 %v2036
        %v2078 = vunpack.c.h.b16 %v2036
        %v2079 = vunpack.c.l.b16 %v2037
        %v2080 = vunpack.c.h.b16 %v2037
        %v2081 = vunpack.c.l.b16 %v2038
        %v2082 = vunpack.c.h.b16 %v2038
        %v2083 = vunpack.c.l.b16 %v2039
        %v2084 = vunpack.c.h.b16 %v2039
        %v2085 = vunpack.c.l.b16 %v2040
        %v2086 = vunpack.c.h.b16 %v2040
        %v2087 = vunpack.c.l.b16 %v2041
        %v2088 = vunpack.c.h.b16 %v2041
        %v2089 = vunpack.c.l.b16 %v2042
        %v2090 = vunpack.c.h.b16 %v2042
        %v2091 = vpack.c.b16 %v2061, %v2059
        %v2092 = vpack.c.b16 %v2062, %v2060
        %v2093 = vpack.c.b16 %v2065, %v2063
        %v2094 = vpack.c.b16 %v2066, %v2064
        %v2095 = vpack.c.b16 %v2069, %v2067
        %v2096 = vpack.c.b16 %v2070, %v2068
        %v2097 = vpack.c.b16 %v2073, %v2071
        %v2098 = vpack.c.b16 %v2074, %v2072
        %v2099 = vpack.c.b16 %v2077, %v2075
        %v2100 = vpack.c.b16 %v2078, %v2076
        %v2101 = vpack.c.b16 %v2081, %v2079
        %v2102 = vpack.c.b16 %v2082, %v2080
        %v2103 = vpack.c.b16 %v2085, %v2083
        %v2104 = vpack.c.b16 %v2086, %v2084
        %v2105 = vpack.c.b16 %v2089, %v2087
        %v2106 = vpack.c.b16 %v2090, %v2088
        %2123 = vmatpush.bf16.msra.mxu0 %v2105
        %2124 = vmatpush.bf16.msra.mxu0 %v2103
        %2125 = vmatpush.bf16.msra.mxu0 %v2101
        %2126 = vmatpush.bf16.msra.mxu0 %v2099
        %2127 = vmatpush.bf16.msra.mxu0 %v2097
        %2128 = vmatpush.bf16.msra.mxu0 %v2095
        %2129 = vmatpush.bf16.msra.mxu0 %v2093
        %2130 = vmatpush.bf16.msra.mxu0 %v2091
        %2131 = vmatmul.bf16.gmra.mxu0 %v1916
        %v2132 = vpop.f32.mrf.mxu0
        %v2133 = vadd.f32 0.0, %v2132
        %v2134 = vpop.f32.mrf.mxu0
        %v2135 = vadd.f32 0.0, %v2134
        %2136 = vdwg.mxu0
        %2137 = vmatpush.bf16.msra.mxu0 %v2106
        %2138 = vmatpush.bf16.msra.mxu0 %v2104
        %2139 = vmatpush.bf16.msra.mxu0 %v2102
        %2140 = vmatpush.bf16.msra.mxu0 %v2100
        %2141 = vmatpush.bf16.msra.mxu0 %v2098
        %2142 = vmatpush.bf16.msra.mxu0 %v2096
        %2143 = vmatpush.bf16.msra.mxu0 %v2094
        %2144 = vmatpush.bf16.msra.mxu0 %v2092
        %2145 = vmatmul.bf16.gmra.mxu0 %v1916
        %v2146 = vpop.f32.mrf.mxu0
        %v2147 = vadd.f32 0.0, %v2146
        %v2148 = vpop.f32.mrf.mxu0
        %v2149 = vadd.f32 0.0, %v2148
        %2150 = vdwg.mxu0
        %v2151 = vmul.f32 %v2008, %v2133
        %v2152 = vmul.f32 %v2022, %v2147
        %v2153 = vmul.f32 %v2010, %v2135
        %v2154 = vmul.f32 %v2024, %v2149
        %v2155 = vxor.u32 %v2151, 2147483648
        %v2156 = vxor.u32 %v2152, 2147483648
        %v2157 = vxor.u32 %v2153, 2147483648
        %v2158 = vxor.u32 %v2154, 2147483648
        %v2159 = vmul.f32 %v2155, 1.442695
        %v2160 = vpow.pop %v2159
        %v2161 = vmul.f32 %v2156, 1.442695
        %v2162 = vpow.pop %v2161
        %v2163 = vmul.f32 %v2157, 1.442695
        %v2164 = vpow.pop %v2163
        %v2165 = vmul.f32 %v2158, 1.442695
        %v2166 = vpow.pop %v2165
        %v2167 = vadd.f32 %v2160, 1.0
        %v2168 = vadd.f32 %v2162, 1.0
        %v2169 = vadd.f32 %v2164, 1.0
        %v2170 = vadd.f32 %v2166, 1.0
        %v2171 = vrcp.pop %v2167
        %v2172 = vmul.f32 %v2167, %v2171
        %v2173 = vsub.f32 1.0, %v2172
        %v2174 = vmul.f32 %v2171, %v2173
        %v2175 = vadd.f32 %v2171, %v2174
        %vm2176 = vweird.f32 %v2167
        %vm2177 = vweird.f32 %v2171
        %vm2178 = vmor %vm2176, %vm2177
        %v2179 = vsel %vm2178, %v2171, %v2175
        %v2180 = vand.u32 2147483647, %v2167
        %vm2181 = vcmp.eq.f32.partialorder %v2180, 8.507059e+37
        %v2182 = vand.u32 %v2167, 2147483648
        %v2183 = vor.u32 1.1754944e-38, %v2182
        %v2184 = vsel %vm2181, %v2183, %v2179
        %v2185 = vmul.f32 1.0, %v2184
        %v2186 = vrcp.pop %v2168
        %v2187 = vmul.f32 %v2168, %v2186
        %v2188 = vsub.f32 1.0, %v2187
        %v2189 = vmul.f32 %v2186, %v2188
        %v2190 = vadd.f32 %v2186, %v2189
        %vm2191 = vweird.f32 %v2168
        %vm2192 = vweird.f32 %v2186
        %vm2193 = vmor %vm2191, %vm2192
        %v2194 = vsel %vm2193, %v2186, %v2190
        %v2195 = vand.u32 2147483647, %v2168
        %vm2196 = vcmp.eq.f32.partialorder %v2195, 8.507059e+37
        %v2197 = vand.u32 %v2168, 2147483648
        %v2198 = vor.u32 1.1754944e-38, %v2197
        %v2199 = vsel %vm2196, %v2198, %v2194
        %v2200 = vmul.f32 1.0, %v2199
        %v2201 = vrcp.pop %v2169
        %v2202 = vmul.f32 %v2169, %v2201
        %v2203 = vsub.f32 1.0, %v2202
        %v2204 = vmul.f32 %v2201, %v2203
        %v2205 = vadd.f32 %v2201, %v2204
        %vm2206 = vweird.f32 %v2169
        %vm2207 = vweird.f32 %v2201
        %vm2208 = vmor %vm2206, %vm2207
        %v2209 = vsel %vm2208, %v2201, %v2205
        %v2210 = vand.u32 2147483647, %v2169
        %vm2211 = vcmp.eq.f32.partialorder %v2210, 8.507059e+37
        %v2212 = vand.u32 %v2169, 2147483648
        %v2213 = vor.u32 1.1754944e-38, %v2212
        %v2214 = vsel %vm2211, %v2213, %v2209
        %v2215 = vmul.f32 1.0, %v2214
        %v2216 = vrcp.pop %v2170
        %v2217 = vmul.f32 %v2170, %v2216
        %v2218 = vsub.f32 1.0, %v2217
        %v2219 = vmul.f32 %v2216, %v2218
        %v2220 = vadd.f32 %v2216, %v2219
        %vm2221 = vweird.f32 %v2170
        %vm2222 = vweird.f32 %v2216
        %vm2223 = vmor %vm2221, %vm2222
        %v2224 = vsel %vm2223, %v2216, %v2220
        %v2225 = vand.u32 2147483647, %v2170
        %vm2226 = vcmp.eq.f32.partialorder %v2225, 8.507059e+37
        %v2227 = vand.u32 %v2170, 2147483648
        %v2228 = vor.u32 1.1754944e-38, %v2227
        %v2229 = vsel %vm2226, %v2228, %v2224
        %v2230 = vmul.f32 1.0, %v2229
        %v2231 = vmul.f32 %v2151, %v2185
        %v2232 = vmul.f32 %v2152, %v2200
        %v2233 = vmul.f32 %v2153, %v2215
        %v2234 = vmul.f32 %v2154, %v2230
        %s2235 = scalar_lea.vmem [#allocation2], 48
        %v2236 = vld [vmem:[%s2235] sm:$0xff]
        %v2237 = vld [vmem:[%s2235 + $0x8] sm:$0xff]
        %v2238 = vpack.c.bf16 %v2233, %v2231
        %v2239 = vpack.c.bf16 %v2234, %v2232
        %s2240 = scalar_lea.vmem %s298, 384 [#allocation8]
        %v2241 = vld [vmem:[%s2240] sm:$0xf]
        %v2242 = vld [vmem:[%s2240 + $0x4] sm:$0xf]
        %v2243 = vld [vmem:[%s2240 + $0x8] sm:$0xf]
        %v2244 = vld [vmem:[%s2240 + $0xc] sm:$0xf]
        %v2245 = vld [vmem:[%s2240 + $0x10] sm:$0xf]
        %v2246 = vld [vmem:[%s2240 + $0x14] sm:$0xf]
        %v2247 = vld [vmem:[%s2240 + $0x18] sm:$0xf]
        %v2248 = vld [vmem:[%s2240 + $0x1c] sm:$0xf]
        %v2249 = vld [vmem:[%s2240 + $0x20] sm:$0xf]
        %v2250 = vld [vmem:[%s2240 + $0x24] sm:$0xf]
        %v2251 = vld [vmem:[%s2240 + $0x28] sm:$0xf]
        %v2252 = vld [vmem:[%s2240 + $0x2c] sm:$0xf]
        %v2253 = vld [vmem:[%s2240 + $0x30] sm:$0xf]
        %v2254 = vld [vmem:[%s2240 + $0x34] sm:$0xf]
        %v2255 = vld [vmem:[%s2240 + $0x38] sm:$0xf]
        %v2256 = vld [vmem:[%s2240 + $0x3c] sm:$0xf]
        %v2257 = vld [vmem:[%s2240 + $0x40] sm:$0xf]
        %v2258 = vld [vmem:[%s2240 + $0x44] sm:$0xf]
        %v2259 = vld [vmem:[%s2240 + $0x48] sm:$0xf]
        %v2260 = vld [vmem:[%s2240 + $0x4c] sm:$0xf]
        %v2261 = vld [vmem:[%s2240 + $0x50] sm:$0xf]
        %v2262 = vld [vmem:[%s2240 + $0x54] sm:$0xf]
        %v2263 = vld [vmem:[%s2240 + $0x58] sm:$0xf]
        %v2264 = vld [vmem:[%s2240 + $0x5c] sm:$0xf]
        %v2265 = vld [vmem:[%s2240 + $0x60] sm:$0xf]
        %v2266 = vld [vmem:[%s2240 + $0x64] sm:$0xf]
        %v2267 = vld [vmem:[%s2240 + $0x68] sm:$0xf]
        %v2268 = vld [vmem:[%s2240 + $0x6c] sm:$0xf]
        %v2269 = vld [vmem:[%s2240 + $0x70] sm:$0xf]
        %v2270 = vld [vmem:[%s2240 + $0x74] sm:$0xf]
        %v2271 = vld [vmem:[%s2240 + $0x78] sm:$0xf]
        %v2272 = vld [vmem:[%s2240 + $0x7c] sm:$0xf]
        %v2305 = vunpack.c.l.b16 %v2241
        %v2306 = vunpack.c.l.b16 %v2242
        %v2307 = vunpack.c.l.b16 %v2243
        %v2308 = vunpack.c.l.b16 %v2244
        %v2309 = vunpack.c.l.b16 %v2245
        %v2310 = vunpack.c.l.b16 %v2246
        %v2311 = vunpack.c.l.b16 %v2247
        %v2312 = vunpack.c.l.b16 %v2248
        %v2313 = vunpack.c.l.b16 %v2249
        %v2314 = vunpack.c.l.b16 %v2250
        %v2315 = vunpack.c.l.b16 %v2251
        %v2316 = vunpack.c.l.b16 %v2252
        %v2317 = vunpack.c.l.b16 %v2253
        %v2318 = vunpack.c.l.b16 %v2254
        %v2319 = vunpack.c.l.b16 %v2255
        %v2320 = vunpack.c.l.b16 %v2256
        %v2321 = vunpack.c.l.b16 %v2257
        %v2322 = vunpack.c.l.b16 %v2258
        %v2323 = vunpack.c.l.b16 %v2259
        %v2324 = vunpack.c.l.b16 %v2260
        %v2325 = vunpack.c.l.b16 %v2261
        %v2326 = vunpack.c.l.b16 %v2262
        %v2327 = vunpack.c.l.b16 %v2263
        %v2328 = vunpack.c.l.b16 %v2264
        %v2329 = vunpack.c.l.b16 %v2265
        %v2330 = vunpack.c.l.b16 %v2266
        %v2331 = vunpack.c.l.b16 %v2267
        %v2332 = vunpack.c.l.b16 %v2268
        %v2333 = vunpack.c.l.b16 %v2269
        %v2334 = vunpack.c.l.b16 %v2270
        %v2335 = vunpack.c.l.b16 %v2271
        %v2336 = vunpack.c.l.b16 %v2272
        %v2337 = vpack.c.b16 %v2306, %v2305
        %v2338 = vpack.c.b16 %v2308, %v2307
        %v2339 = vpack.c.b16 %v2310, %v2309
        %v2340 = vpack.c.b16 %v2312, %v2311
        %v2341 = vpack.c.b16 %v2314, %v2313
        %v2342 = vpack.c.b16 %v2316, %v2315
        %v2343 = vpack.c.b16 %v2318, %v2317
        %v2344 = vpack.c.b16 %v2320, %v2319
        %v2345 = vpack.c.b16 %v2322, %v2321
        %v2346 = vpack.c.b16 %v2324, %v2323
        %v2347 = vpack.c.b16 %v2326, %v2325
        %v2348 = vpack.c.b16 %v2328, %v2327
        %v2349 = vpack.c.b16 %v2330, %v2329
        %v2350 = vpack.c.b16 %v2332, %v2331
        %v2351 = vpack.c.b16 %v2334, %v2333
        %v2352 = vpack.c.b16 %v2336, %v2335
        %2369 = vmatpush.bf16.msra.mxu0 %v2344
        %2370 = vmatpush.bf16.msra.mxu0 %v2343
        %2371 = vmatpush.bf16.msra.mxu0 %v2342
        %2372 = vmatpush.bf16.msra.mxu0 %v2341
        %2373 = vmatpush.bf16.msra.mxu0 %v2340
        %2374 = vmatpush.bf16.msra.mxu0 %v2339
        %2375 = vmatpush.bf16.msra.mxu0 %v2338
        %2376 = vmatpush.bf16.msra.mxu0 %v2337
        %2377 = vmatmul.bf16.gmra.mxu0 %v2238
        %v2378 = vpop.f32.mrf.mxu0
        %v2379 = vadd.f32 0.0, %v2378
        %v2380 = vpop.f32.mrf.mxu0
        %v2381 = vadd.f32 0.0, %v2380
        %2382 = vdwg.mxu0
        %2383 = vmatpush.bf16.msra.mxu0 %v2352
        %2384 = vmatpush.bf16.msra.mxu0 %v2351
        %2385 = vmatpush.bf16.msra.mxu0 %v2350
        %2386 = vmatpush.bf16.msra.mxu0 %v2349
        %2387 = vmatpush.bf16.msra.mxu0 %v2348
        %2388 = vmatpush.bf16.msra.mxu0 %v2347
        %2389 = vmatpush.bf16.msra.mxu0 %v2346
        %2390 = vmatpush.bf16.msra.mxu0 %v2345
        %2391 = vmatmul.bf16.gmra.mxu0 %v2239
        %v2392 = vpop.f32.mrf.mxu0
        %v2393 = vadd.f32 %v2379, %v2392
        %v2394 = vpop.f32.mrf.mxu0
        %v2395 = vadd.f32 %v2381, %v2394
        %2396 = vdwg.mxu0
        %v2397 = vadd.f32 %v2236, %v2393
        %v2398 = vadd.f32 %v2237, %v2395
        %2399 = vst [vmem:[%s2235] sm:$0xff] %v2397
        %2400 = vst [vmem:[%s2235 + $0x8] sm:$0xff] %v2398
        %s2401 = scalar_lea.vmem %s278, 32 [#allocation3]
        %v2402 = vld [vmem:[%s2401] sm:$0xf]
        %v2403 = vld [vmem:[%s2401 + $0x4] sm:$0xf]
        %s2404 = scalar_lea.vmem %s288, 1024 [#allocation6]
        %v2405 = vld [vmem:[%s2404] sm:$0xff]
        %v2406 = vld [vmem:[%s2404 + $0x8] sm:$0xff]
        %v2407 = vld [vmem:[%s2404 + $0x10] sm:$0xff]
        %v2408 = vld [vmem:[%s2404 + $0x18] sm:$0xff]
        %v2409 = vld [vmem:[%s2404 + $0x20] sm:$0xff]
        %v2410 = vld [vmem:[%s2404 + $0x28] sm:$0xff]
        %v2411 = vld [vmem:[%s2404 + $0x30] sm:$0xff]
        %v2412 = vld [vmem:[%s2404 + $0x38] sm:$0xff]
        %v2413 = vld [vmem:[%s2404 + $0x40] sm:$0xff]
        %v2414 = vld [vmem:[%s2404 + $0x48] sm:$0xff]
        %v2415 = vld [vmem:[%s2404 + $0x50] sm:$0xff]
        %v2416 = vld [vmem:[%s2404 + $0x58] sm:$0xff]
        %v2417 = vld [vmem:[%s2404 + $0x60] sm:$0xff]
        %v2418 = vld [vmem:[%s2404 + $0x68] sm:$0xff]
        %v2419 = vld [vmem:[%s2404 + $0x70] sm:$0xff]
        %v2420 = vld [vmem:[%s2404 + $0x78] sm:$0xff]
        %v2423 = vunpack.c.l.b16 %v2402
        %v2424 = vunpack.c.l.b16 %v2403
        %v2425 = vpack.c.b16 %v2424, %v2423
        %v2443 = vunpack.c.l.b16 %v2405
        %v2444 = vunpack.c.h.b16 %v2405
        %v2445 = vunpack.c.l.b16 %v2406
        %v2446 = vunpack.c.h.b16 %v2406
        %v2447 = vunpack.c.l.b16 %v2407
        %v2448 = vunpack.c.h.b16 %v2407
        %v2449 = vunpack.c.l.b16 %v2408
        %v2450 = vunpack.c.h.b16 %v2408
        %v2451 = vunpack.c.l.b16 %v2409
        %v2452 = vunpack.c.h.b16 %v2409
        %v2453 = vunpack.c.l.b16 %v2410
        %v2454 = vunpack.c.h.b16 %v2410
        %v2455 = vunpack.c.l.b16 %v2411
        %v2456 = vunpack.c.h.b16 %v2411
        %v2457 = vunpack.c.l.b16 %v2412
        %v2458 = vunpack.c.h.b16 %v2412
        %v2459 = vunpack.c.l.b16 %v2413
        %v2460 = vunpack.c.h.b16 %v2413
        %v2461 = vunpack.c.l.b16 %v2414
        %v2462 = vunpack.c.h.b16 %v2414
        %v2463 = vunpack.c.l.b16 %v2415
        %v2464 = vunpack.c.h.b16 %v2415
        %v2465 = vunpack.c.l.b16 %v2416
        %v2466 = vunpack.c.h.b16 %v2416
        %v2467 = vunpack.c.l.b16 %v2417
        %v2468 = vunpack.c.h.b16 %v2417
        %v2469 = vunpack.c.l.b16 %v2418
        %v2470 = vunpack.c.h.b16 %v2418
        %v2471 = vunpack.c.l.b16 %v2419
        %v2472 = vunpack.c.h.b16 %v2419
        %v2473 = vunpack.c.l.b16 %v2420
        %v2474 = vunpack.c.h.b16 %v2420
        %v2475 = vpack.c.b16 %v2445, %v2443
        %v2476 = vpack.c.b16 %v2446, %v2444
        %v2477 = vpack.c.b16 %v2449, %v2447
        %v2478 = vpack.c.b16 %v2450, %v2448
        %v2479 = vpack.c.b16 %v2453, %v2451
        %v2480 = vpack.c.b16 %v2454, %v2452
        %v2481 = vpack.c.b16 %v2457, %v2455
        %v2482 = vpack.c.b16 %v2458, %v2456
        %v2483 = vpack.c.b16 %v2461, %v2459
        %v2484 = vpack.c.b16 %v2462, %v2460
        %v2485 = vpack.c.b16 %v2465, %v2463
        %v2486 = vpack.c.b16 %v2466, %v2464
        %v2487 = vpack.c.b16 %v2469, %v2467
        %v2488 = vpack.c.b16 %v2470, %v2468
        %v2489 = vpack.c.b16 %v2473, %v2471
        %v2490 = vpack.c.b16 %v2474, %v2472
        %2507 = vmatpush.bf16.msra.mxu0 %v2489
        %2508 = vmatpush.bf16.msra.mxu0 %v2487
        %2509 = vmatpush.bf16.msra.mxu0 %v2485
        %2510 = vmatpush.bf16.msra.mxu0 %v2483
        %2511 = vmatpush.bf16.msra.mxu0 %v2481
        %2512 = vmatpush.bf16.msra.mxu0 %v2479
        %2513 = vmatpush.bf16.msra.mxu0 %v2477
        %2514 = vmatpush.bf16.msra.mxu0 %v2475
        %2515 = vmatmul.bf16.gmra.mxu0 %v2425
        %v2516 = vpop.f32.mrf.mxu0
        %v2517 = vadd.f32 0.0, %v2516
        %v2518 = vpop.f32.mrf.mxu0
        %v2519 = vadd.f32 0.0, %v2518
        %2520 = vdwg.mxu0
        %2521 = vmatpush.bf16.msra.mxu0 %v2490
        %2522 = vmatpush.bf16.msra.mxu0 %v2488
        %2523 = vmatpush.bf16.msra.mxu0 %v2486
        %2524 = vmatpush.bf16.msra.mxu0 %v2484
        %2525 = vmatpush.bf16.msra.mxu0 %v2482
        %2526 = vmatpush.bf16.msra.mxu0 %v2480
        %2527 = vmatpush.bf16.msra.mxu0 %v2478
        %2528 = vmatpush.bf16.msra.mxu0 %v2476
        %2529 = vmatmul.bf16.gmra.mxu0 %v2425
        %v2530 = vpop.f32.mrf.mxu0
        %v2531 = vadd.f32 0.0, %v2530
        %v2532 = vpop.f32.mrf.mxu0
        %v2533 = vadd.f32 0.0, %v2532
        %2534 = vdwg.mxu0
        %s2535 = scalar_lea.vmem %s288, 1152 [#allocation6]
        %v2536 = vld [vmem:[%s2535] sm:$0xff]
        %v2537 = vld [vmem:[%s2535 + $0x8] sm:$0xff]
        %v2538 = vld [vmem:[%s2535 + $0x10] sm:$0xff]
        %v2539 = vld [vmem:[%s2535 + $0x18] sm:$0xff]
        %v2540 = vld [vmem:[%s2535 + $0x20] sm:$0xff]
        %v2541 = vld [vmem:[%s2535 + $0x28] sm:$0xff]
        %v2542 = vld [vmem:[%s2535 + $0x30] sm:$0xff]
        %v2543 = vld [vmem:[%s2535 + $0x38] sm:$0xff]
        %v2544 = vld [vmem:[%s2535 + $0x40] sm:$0xff]
        %v2545 = vld [vmem:[%s2535 + $0x48] sm:$0xff]
        %v2546 = vld [vmem:[%s2535 + $0x50] sm:$0xff]
        %v2547 = vld [vmem:[%s2535 + $0x58] sm:$0xff]
        %v2548 = vld [vmem:[%s2535 + $0x60] sm:$0xff]
        %v2549 = vld [vmem:[%s2535 + $0x68] sm:$0xff]
        %v2550 = vld [vmem:[%s2535 + $0x70] sm:$0xff]
        %v2551 = vld [vmem:[%s2535 + $0x78] sm:$0xff]
        %v2568 = vunpack.c.l.b16 %v2536
        %v2569 = vunpack.c.h.b16 %v2536
        %v2570 = vunpack.c.l.b16 %v2537
        %v2571 = vunpack.c.h.b16 %v2537
        %v2572 = vunpack.c.l.b16 %v2538
        %v2573 = vunpack.c.h.b16 %v2538
        %v2574 = vunpack.c.l.b16 %v2539
        %v2575 = vunpack.c.h.b16 %v2539
        %v2576 = vunpack.c.l.b16 %v2540
        %v2577 = vunpack.c.h.b16 %v2540
        %v2578 = vunpack.c.l.b16 %v2541
        %v2579 = vunpack.c.h.b16 %v2541
        %v2580 = vunpack.c.l.b16 %v2542
        %v2581 = vunpack.c.h.b16 %v2542
        %v2582 = vunpack.c.l.b16 %v2543
        %v2583 = vunpack.c.h.b16 %v2543
        %v2584 = vunpack.c.l.b16 %v2544
        %v2585 = vunpack.c.h.b16 %v2544
        %v2586 = vunpack.c.l.b16 %v2545
        %v2587 = vunpack.c.h.b16 %v2545
        %v2588 = vunpack.c.l.b16 %v2546
        %v2589 = vunpack.c.h.b16 %v2546
        %v2590 = vunpack.c.l.b16 %v2547
        %v2591 = vunpack.c.h.b16 %v2547
        %v2592 = vunpack.c.l.b16 %v2548
        %v2593 = vunpack.c.h.b16 %v2548
        %v2594 = vunpack.c.l.b16 %v2549
        %v2595 = vunpack.c.h.b16 %v2549
        %v2596 = vunpack.c.l.b16 %v2550
        %v2597 = vunpack.c.h.b16 %v2550
        %v2598 = vunpack.c.l.b16 %v2551
        %v2599 = vunpack.c.h.b16 %v2551
        %v2600 = vpack.c.b16 %v2570, %v2568
        %v2601 = vpack.c.b16 %v2571, %v2569
        %v2602 = vpack.c.b16 %v2574, %v2572
        %v2603 = vpack.c.b16 %v2575, %v2573
        %v2604 = vpack.c.b16 %v2578, %v2576
        %v2605 = vpack.c.b16 %v2579, %v2577
        %v2606 = vpack.c.b16 %v2582, %v2580
        %v2607 = vpack.c.b16 %v2583, %v2581
        %v2608 = vpack.c.b16 %v2586, %v2584
        %v2609 = vpack.c.b16 %v2587, %v2585
        %v2610 = vpack.c.b16 %v2590, %v2588
        %v2611 = vpack.c.b16 %v2591, %v2589
        %v2612 = vpack.c.b16 %v2594, %v2592
        %v2613 = vpack.c.b16 %v2595, %v2593
        %v2614 = vpack.c.b16 %v2598, %v2596
        %v2615 = vpack.c.b16 %v2599, %v2597
        %2632 = vmatpush.bf16.msra.mxu0 %v2614
        %2633 = vmatpush.bf16.msra.mxu0 %v2612
        %2634 = vmatpush.bf16.msra.mxu0 %v2610
        %2635 = vmatpush.bf16.msra.mxu0 %v2608
        %2636 = vmatpush.bf16.msra.mxu0 %v2606
        %2637 = vmatpush.bf16.msra.mxu0 %v2604
        %2638 = vmatpush.bf16.msra.mxu0 %v2602
        %2639 = vmatpush.bf16.msra.mxu0 %v2600
        %2640 = vmatmul.bf16.gmra.mxu0 %v2425
        %v2641 = vpop.f32.mrf.mxu0
        %v2642 = vadd.f32 0.0, %v2641
        %v2643 = vpop.f32.mrf.mxu0
        %v2644 = vadd.f32 0.0, %v2643
        %2645 = vdwg.mxu0
        %2646 = vmatpush.bf16.msra.mxu0 %v2615
        %2647 = vmatpush.bf16.msra.mxu0 %v2613
        %2648 = vmatpush.bf16.msra.mxu0 %v2611
        %2649 = vmatpush.bf16.msra.mxu0 %v2609
        %2650 = vmatpush.bf16.msra.mxu0 %v2607
        %2651 = vmatpush.bf16.msra.mxu0 %v2605
        %2652 = vmatpush.bf16.msra.mxu0 %v2603
        %2653 = vmatpush.bf16.msra.mxu0 %v2601
        %2654 = vmatmul.bf16.gmra.mxu0 %v2425
        %v2655 = vpop.f32.mrf.mxu0
        %v2656 = vadd.f32 0.0, %v2655
        %v2657 = vpop.f32.mrf.mxu0
        %v2658 = vadd.f32 0.0, %v2657
        %2659 = vdwg.mxu0
        %v2660 = vmul.f32 %v2517, %v2642
        %v2661 = vmul.f32 %v2531, %v2656
        %v2662 = vmul.f32 %v2519, %v2644
        %v2663 = vmul.f32 %v2533, %v2658
        %v2664 = vxor.u32 %v2660, 2147483648
        %v2665 = vxor.u32 %v2661, 2147483648
        %v2666 = vxor.u32 %v2662, 2147483648
        %v2667 = vxor.u32 %v2663, 2147483648
        %v2668 = vmul.f32 %v2664, 1.442695
        %v2669 = vpow.pop %v2668
        %v2670 = vmul.f32 %v2665, 1.442695
        %v2671 = vpow.pop %v2670
        %v2672 = vmul.f32 %v2666, 1.442695
        %v2673 = vpow.pop %v2672
        %v2674 = vmul.f32 %v2667, 1.442695
        %v2675 = vpow.pop %v2674
        %v2676 = vadd.f32 %v2669, 1.0
        %v2677 = vadd.f32 %v2671, 1.0
        %v2678 = vadd.f32 %v2673, 1.0
        %v2679 = vadd.f32 %v2675, 1.0
        %v2680 = vrcp.pop %v2676
        %v2681 = vmul.f32 %v2676, %v2680
        %v2682 = vsub.f32 1.0, %v2681
        %v2683 = vmul.f32 %v2680, %v2682
        %v2684 = vadd.f32 %v2680, %v2683
        %vm2685 = vweird.f32 %v2676
        %vm2686 = vweird.f32 %v2680
        %vm2687 = vmor %vm2685, %vm2686
        %v2688 = vsel %vm2687, %v2680, %v2684
        %v2689 = vand.u32 2147483647, %v2676
        %vm2690 = vcmp.eq.f32.partialorder %v2689, 8.507059e+37
        %v2691 = vand.u32 %v2676, 2147483648
        %v2692 = vor.u32 1.1754944e-38, %v2691
        %v2693 = vsel %vm2690, %v2692, %v2688
        %v2694 = vmul.f32 1.0, %v2693
        %v2695 = vrcp.pop %v2677
        %v2696 = vmul.f32 %v2677, %v2695
        %v2697 = vsub.f32 1.0, %v2696
        %v2698 = vmul.f32 %v2695, %v2697
        %v2699 = vadd.f32 %v2695, %v2698
        %vm2700 = vweird.f32 %v2677
        %vm2701 = vweird.f32 %v2695
        %vm2702 = vmor %vm2700, %vm2701
        %v2703 = vsel %vm2702, %v2695, %v2699
        %v2704 = vand.u32 2147483647, %v2677
        %vm2705 = vcmp.eq.f32.partialorder %v2704, 8.507059e+37
        %v2706 = vand.u32 %v2677, 2147483648
        %v2707 = vor.u32 1.1754944e-38, %v2706
        %v2708 = vsel %vm2705, %v2707, %v2703
        %v2709 = vmul.f32 1.0, %v2708
        %v2710 = vrcp.pop %v2678
        %v2711 = vmul.f32 %v2678, %v2710
        %v2712 = vsub.f32 1.0, %v2711
        %v2713 = vmul.f32 %v2710, %v2712
        %v2714 = vadd.f32 %v2710, %v2713
        %vm2715 = vweird.f32 %v2678
        %vm2716 = vweird.f32 %v2710
        %vm2717 = vmor %vm2715, %vm2716
        %v2718 = vsel %vm2717, %v2710, %v2714
        %v2719 = vand.u32 2147483647, %v2678
        %vm2720 = vcmp.eq.f32.partialorder %v2719, 8.507059e+37
        %v2721 = vand.u32 %v2678, 2147483648
        %v2722 = vor.u32 1.1754944e-38, %v2721
        %v2723 = vsel %vm2720, %v2722, %v2718
        %v2724 = vmul.f32 1.0, %v2723
        %v2725 = vrcp.pop %v2679
        %v2726 = vmul.f32 %v2679, %v2725
        %v2727 = vsub.f32 1.0, %v2726
        %v2728 = vmul.f32 %v2725, %v2727
        %v2729 = vadd.f32 %v2725, %v2728
        %vm2730 = vweird.f32 %v2679
        %vm2731 = vweird.f32 %v2725
        %vm2732 = vmor %vm2730, %vm2731
        %v2733 = vsel %vm2732, %v2725, %v2729
        %v2734 = vand.u32 2147483647, %v2679
        %vm2735 = vcmp.eq.f32.partialorder %v2734, 8.507059e+37
        %v2736 = vand.u32 %v2679, 2147483648
        %v2737 = vor.u32 1.1754944e-38, %v2736
        %v2738 = vsel %vm2735, %v2737, %v2733
        %v2739 = vmul.f32 1.0, %v2738
        %v2740 = vmul.f32 %v2660, %v2694
        %v2741 = vmul.f32 %v2661, %v2709
        %v2742 = vmul.f32 %v2662, %v2724
        %v2743 = vmul.f32 %v2663, %v2739
        %s2744 = scalar_lea.vmem [#allocation2], 64
        %v2745 = vld [vmem:[%s2744] sm:$0xff]
        %v2746 = vld [vmem:[%s2744 + $0x8] sm:$0xff]
        %v2747 = vpack.c.bf16 %v2742, %v2740
        %v2748 = vpack.c.bf16 %v2743, %v2741
        %s2749 = scalar_lea.vmem %s298, 512 [#allocation8]
        %v2750 = vld [vmem:[%s2749] sm:$0xf]
        %v2751 = vld [vmem:[%s2749 + $0x4] sm:$0xf]
        %v2752 = vld [vmem:[%s2749 + $0x8] sm:$0xf]
        %v2753 = vld [vmem:[%s2749 + $0xc] sm:$0xf]
        %v2754 = vld [vmem:[%s2749 + $0x10] sm:$0xf]
        %v2755 = vld [vmem:[%s2749 + $0x14] sm:$0xf]
        %v2756 = vld [vmem:[%s2749 + $0x18] sm:$0xf]
        %v2757 = vld [vmem:[%s2749 + $0x1c] sm:$0xf]
        %v2758 = vld [vmem:[%s2749 + $0x20] sm:$0xf]
        %v2759 = vld [vmem:[%s2749 + $0x24] sm:$0xf]
        %v2760 = vld [vmem:[%s2749 + $0x28] sm:$0xf]
        %v2761 = vld [vmem:[%s2749 + $0x2c] sm:$0xf]
        %v2762 = vld [vmem:[%s2749 + $0x30] sm:$0xf]
        %v2763 = vld [vmem:[%s2749 + $0x34] sm:$0xf]
        %v2764 = vld [vmem:[%s2749 + $0x38] sm:$0xf]
        %v2765 = vld [vmem:[%s2749 + $0x3c] sm:$0xf]
        %v2766 = vld [vmem:[%s2749 + $0x40] sm:$0xf]
        %v2767 = vld [vmem:[%s2749 + $0x44] sm:$0xf]
        %v2768 = vld [vmem:[%s2749 + $0x48] sm:$0xf]
        %v2769 = vld [vmem:[%s2749 + $0x4c] sm:$0xf]
        %v2770 = vld [vmem:[%s2749 + $0x50] sm:$0xf]
        %v2771 = vld [vmem:[%s2749 + $0x54] sm:$0xf]
        %v2772 = vld [vmem:[%s2749 + $0x58] sm:$0xf]
        %v2773 = vld [vmem:[%s2749 + $0x5c] sm:$0xf]
        %v2774 = vld [vmem:[%s2749 + $0x60] sm:$0xf]
        %v2775 = vld [vmem:[%s2749 + $0x64] sm:$0xf]
        %v2776 = vld [vmem:[%s2749 + $0x68] sm:$0xf]
        %v2777 = vld [vmem:[%s2749 + $0x6c] sm:$0xf]
        %v2778 = vld [vmem:[%s2749 + $0x70] sm:$0xf]
        %v2779 = vld [vmem:[%s2749 + $0x74] sm:$0xf]
        %v2780 = vld [vmem:[%s2749 + $0x78] sm:$0xf]
        %v2781 = vld [vmem:[%s2749 + $0x7c] sm:$0xf]
        %v2814 = vunpack.c.l.b16 %v2750
        %v2815 = vunpack.c.l.b16 %v2751
        %v2816 = vunpack.c.l.b16 %v2752
        %v2817 = vunpack.c.l.b16 %v2753
        %v2818 = vunpack.c.l.b16 %v2754
        %v2819 = vunpack.c.l.b16 %v2755
        %v2820 = vunpack.c.l.b16 %v2756
        %v2821 = vunpack.c.l.b16 %v2757
        %v2822 = vunpack.c.l.b16 %v2758
        %v2823 = vunpack.c.l.b16 %v2759
        %v2824 = vunpack.c.l.b16 %v2760
        %v2825 = vunpack.c.l.b16 %v2761
        %v2826 = vunpack.c.l.b16 %v2762
        %v2827 = vunpack.c.l.b16 %v2763
        %v2828 = vunpack.c.l.b16 %v2764
        %v2829 = vunpack.c.l.b16 %v2765
        %v2830 = vunpack.c.l.b16 %v2766
        %v2831 = vunpack.c.l.b16 %v2767
        %v2832 = vunpack.c.l.b16 %v2768
        %v2833 = vunpack.c.l.b16 %v2769
        %v2834 = vunpack.c.l.b16 %v2770
        %v2835 = vunpack.c.l.b16 %v2771
        %v2836 = vunpack.c.l.b16 %v2772
        %v2837 = vunpack.c.l.b16 %v2773
        %v2838 = vunpack.c.l.b16 %v2774
        %v2839 = vunpack.c.l.b16 %v2775
        %v2840 = vunpack.c.l.b16 %v2776
        %v2841 = vunpack.c.l.b16 %v2777
        %v2842 = vunpack.c.l.b16 %v2778
        %v2843 = vunpack.c.l.b16 %v2779
        %v2844 = vunpack.c.l.b16 %v2780
        %v2845 = vunpack.c.l.b16 %v2781
        %v2846 = vpack.c.b16 %v2815, %v2814
        %v2847 = vpack.c.b16 %v2817, %v2816
        %v2848 = vpack.c.b16 %v2819, %v2818
        %v2849 = vpack.c.b16 %v2821, %v2820
        %v2850 = vpack.c.b16 %v2823, %v2822
        %v2851 = vpack.c.b16 %v2825, %v2824
        %v2852 = vpack.c.b16 %v2827, %v2826
        %v2853 = vpack.c.b16 %v2829, %v2828
        %v2854 = vpack.c.b16 %v2831, %v2830
        %v2855 = vpack.c.b16 %v2833, %v2832
        %v2856 = vpack.c.b16 %v2835, %v2834
        %v2857 = vpack.c.b16 %v2837, %v2836
        %v2858 = vpack.c.b16 %v2839, %v2838
        %v2859 = vpack.c.b16 %v2841, %v2840
        %v2860 = vpack.c.b16 %v2843, %v2842
        %v2861 = vpack.c.b16 %v2845, %v2844
        %2878 = vmatpush.bf16.msra.mxu0 %v2853
        %2879 = vmatpush.bf16.msra.mxu0 %v2852
        %2880 = vmatpush.bf16.msra.mxu0 %v2851
        %2881 = vmatpush.bf16.msra.mxu0 %v2850
        %2882 = vmatpush.bf16.msra.mxu0 %v2849
        %2883 = vmatpush.bf16.msra.mxu0 %v2848
        %2884 = vmatpush.bf16.msra.mxu0 %v2847
        %2885 = vmatpush.bf16.msra.mxu0 %v2846
        %2886 = vmatmul.bf16.gmra.mxu0 %v2747
        %v2887 = vpop.f32.mrf.mxu0
        %v2888 = vadd.f32 0.0, %v2887
        %v2889 = vpop.f32.mrf.mxu0
        %v2890 = vadd.f32 0.0, %v2889
        %2891 = vdwg.mxu0
        %2892 = vmatpush.bf16.msra.mxu0 %v2861
        %2893 = vmatpush.bf16.msra.mxu0 %v2860
        %2894 = vmatpush.bf16.msra.mxu0 %v2859
        %2895 = vmatpush.bf16.msra.mxu0 %v2858
        %2896 = vmatpush.bf16.msra.mxu0 %v2857
        %2897 = vmatpush.bf16.msra.mxu0 %v2856
        %2898 = vmatpush.bf16.msra.mxu0 %v2855
        %2899 = vmatpush.bf16.msra.mxu0 %v2854
        %2900 = vmatmul.bf16.gmra.mxu0 %v2748
        %v2901 = vpop.f32.mrf.mxu0
        %v2902 = vadd.f32 %v2888, %v2901
        %v2903 = vpop.f32.mrf.mxu0
        %v2904 = vadd.f32 %v2890, %v2903
        %2905 = vdwg.mxu0
        %v2906 = vadd.f32 %v2745, %v2902
        %v2907 = vadd.f32 %v2746, %v2904
        %2908 = vst [vmem:[%s2744] sm:$0xff] %v2906
        %2909 = vst [vmem:[%s2744 + $0x8] sm:$0xff] %v2907
        %s2910 = scalar_lea.vmem %s278, 40 [#allocation3]
        %v2911 = vld [vmem:[%s2910] sm:$0xf]
        %v2912 = vld [vmem:[%s2910 + $0x4] sm:$0xf]
        %s2913 = scalar_lea.vmem %s288, 1280 [#allocation6]
        %v2914 = vld [vmem:[%s2913] sm:$0xff]
        %v2915 = vld [vmem:[%s2913 + $0x8] sm:$0xff]
        %v2916 = vld [vmem:[%s2913 + $0x10] sm:$0xff]
        %v2917 = vld [vmem:[%s2913 + $0x18] sm:$0xff]
        %v2918 = vld [vmem:[%s2913 + $0x20] sm:$0xff]
        %v2919 = vld [vmem:[%s2913 + $0x28] sm:$0xff]
        %v2920 = vld [vmem:[%s2913 + $0x30] sm:$0xff]
        %v2921 = vld [vmem:[%s2913 + $0x38] sm:$0xff]
        %v2922 = vld [vmem:[%s2913 + $0x40] sm:$0xff]
        %v2923 = vld [vmem:[%s2913 + $0x48] sm:$0xff]
        %v2924 = vld [vmem:[%s2913 + $0x50] sm:$0xff]
        %v2925 = vld [vmem:[%s2913 + $0x58] sm:$0xff]
        %v2926 = vld [vmem:[%s2913 + $0x60] sm:$0xff]
        %v2927 = vld [vmem:[%s2913 + $0x68] sm:$0xff]
        %v2928 = vld [vmem:[%s2913 + $0x70] sm:$0xff]
        %v2929 = vld [vmem:[%s2913 + $0x78] sm:$0xff]
        %v2932 = vunpack.c.l.b16 %v2911
        %v2933 = vunpack.c.l.b16 %v2912
        %v2934 = vpack.c.b16 %v2933, %v2932
        %v2952 = vunpack.c.l.b16 %v2914
        %v2953 = vunpack.c.h.b16 %v2914
        %v2954 = vunpack.c.l.b16 %v2915
        %v2955 = vunpack.c.h.b16 %v2915
        %v2956 = vunpack.c.l.b16 %v2916
        %v2957 = vunpack.c.h.b16 %v2916
        %v2958 = vunpack.c.l.b16 %v2917
        %v2959 = vunpack.c.h.b16 %v2917
        %v2960 = vunpack.c.l.b16 %v2918
        %v2961 = vunpack.c.h.b16 %v2918
        %v2962 = vunpack.c.l.b16 %v2919
        %v2963 = vunpack.c.h.b16 %v2919
        %v2964 = vunpack.c.l.b16 %v2920
        %v2965 = vunpack.c.h.b16 %v2920
        %v2966 = vunpack.c.l.b16 %v2921
        %v2967 = vunpack.c.h.b16 %v2921
        %v2968 = vunpack.c.l.b16 %v2922
        %v2969 = vunpack.c.h.b16 %v2922
        %v2970 = vunpack.c.l.b16 %v2923
        %v2971 = vunpack.c.h.b16 %v2923
        %v2972 = vunpack.c.l.b16 %v2924
        %v2973 = vunpack.c.h.b16 %v2924
        %v2974 = vunpack.c.l.b16 %v2925
        %v2975 = vunpack.c.h.b16 %v2925
        %v2976 = vunpack.c.l.b16 %v2926
        %v2977 = vunpack.c.h.b16 %v2926
        %v2978 = vunpack.c.l.b16 %v2927
        %v2979 = vunpack.c.h.b16 %v2927
        %v2980 = vunpack.c.l.b16 %v2928
        %v2981 = vunpack.c.h.b16 %v2928
        %v2982 = vunpack.c.l.b16 %v2929
        %v2983 = vunpack.c.h.b16 %v2929
        %v2984 = vpack.c.b16 %v2954, %v2952
        %v2985 = vpack.c.b16 %v2955, %v2953
        %v2986 = vpack.c.b16 %v2958, %v2956
        %v2987 = vpack.c.b16 %v2959, %v2957
        %v2988 = vpack.c.b16 %v2962, %v2960
        %v2989 = vpack.c.b16 %v2963, %v2961
        %v2990 = vpack.c.b16 %v2966, %v2964
        %v2991 = vpack.c.b16 %v2967, %v2965
        %v2992 = vpack.c.b16 %v2970, %v2968
        %v2993 = vpack.c.b16 %v2971, %v2969
        %v2994 = vpack.c.b16 %v2974, %v2972
        %v2995 = vpack.c.b16 %v2975, %v2973
        %v2996 = vpack.c.b16 %v2978, %v2976
        %v2997 = vpack.c.b16 %v2979, %v2977
        %v2998 = vpack.c.b16 %v2982, %v2980
        %v2999 = vpack.c.b16 %v2983, %v2981
        %3016 = vmatpush.bf16.msra.mxu0 %v2998
        %3017 = vmatpush.bf16.msra.mxu0 %v2996
        %3018 = vmatpush.bf16.msra.mxu0 %v2994
        %3019 = vmatpush.bf16.msra.mxu0 %v2992
        %3020 = vmatpush.bf16.msra.mxu0 %v2990
        %3021 = vmatpush.bf16.msra.mxu0 %v2988
        %3022 = vmatpush.bf16.msra.mxu0 %v2986
        %3023 = vmatpush.bf16.msra.mxu0 %v2984
        %3024 = vmatmul.bf16.gmra.mxu0 %v2934
        %v3025 = vpop.f32.mrf.mxu0
        %v3026 = vadd.f32 0.0, %v3025
        %v3027 = vpop.f32.mrf.mxu0
        %v3028 = vadd.f32 0.0, %v3027
        %3029 = vdwg.mxu0
        %3030 = vmatpush.bf16.msra.mxu0 %v2999
        %3031 = vmatpush.bf16.msra.mxu0 %v2997
        %3032 = vmatpush.bf16.msra.mxu0 %v2995
        %3033 = vmatpush.bf16.msra.mxu0 %v2993
        %3034 = vmatpush.bf16.msra.mxu0 %v2991
        %3035 = vmatpush.bf16.msra.mxu0 %v2989
        %3036 = vmatpush.bf16.msra.mxu0 %v2987
        %3037 = vmatpush.bf16.msra.mxu0 %v2985
        %3038 = vmatmul.bf16.gmra.mxu0 %v2934
        %v3039 = vpop.f32.mrf.mxu0
        %v3040 = vadd.f32 0.0, %v3039
        %v3041 = vpop.f32.mrf.mxu0
        %v3042 = vadd.f32 0.0, %v3041
        %3043 = vdwg.mxu0
        %s3044 = scalar_lea.vmem %s288, 1408 [#allocation6]
        %v3045 = vld [vmem:[%s3044] sm:$0xff]
        %v3046 = vld [vmem:[%s3044 + $0x8] sm:$0xff]
        %v3047 = vld [vmem:[%s3044 + $0x10] sm:$0xff]
        %v3048 = vld [vmem:[%s3044 + $0x18] sm:$0xff]
        %v3049 = vld [vmem:[%s3044 + $0x20] sm:$0xff]
        %v3050 = vld [vmem:[%s3044 + $0x28] sm:$0xff]
        %v3051 = vld [vmem:[%s3044 + $0x30] sm:$0xff]
        %v3052 = vld [vmem:[%s3044 + $0x38] sm:$0xff]
        %v3053 = vld [vmem:[%s3044 + $0x40] sm:$0xff]
        %v3054 = vld [vmem:[%s3044 + $0x48] sm:$0xff]
        %v3055 = vld [vmem:[%s3044 + $0x50] sm:$0xff]
        %v3056 = vld [vmem:[%s3044 + $0x58] sm:$0xff]
        %v3057 = vld [vmem:[%s3044 + $0x60] sm:$0xff]
        %v3058 = vld [vmem:[%s3044 + $0x68] sm:$0xff]
        %v3059 = vld [vmem:[%s3044 + $0x70] sm:$0xff]
        %v3060 = vld [vmem:[%s3044 + $0x78] sm:$0xff]
        %v3077 = vunpack.c.l.b16 %v3045
        %v3078 = vunpack.c.h.b16 %v3045
        %v3079 = vunpack.c.l.b16 %v3046
        %v3080 = vunpack.c.h.b16 %v3046
        %v3081 = vunpack.c.l.b16 %v3047
        %v3082 = vunpack.c.h.b16 %v3047
        %v3083 = vunpack.c.l.b16 %v3048
        %v3084 = vunpack.c.h.b16 %v3048
        %v3085 = vunpack.c.l.b16 %v3049
        %v3086 = vunpack.c.h.b16 %v3049
        %v3087 = vunpack.c.l.b16 %v3050
        %v3088 = vunpack.c.h.b16 %v3050
        %v3089 = vunpack.c.l.b16 %v3051
        %v3090 = vunpack.c.h.b16 %v3051
        %v3091 = vunpack.c.l.b16 %v3052
        %v3092 = vunpack.c.h.b16 %v3052
        %v3093 = vunpack.c.l.b16 %v3053
        %v3094 = vunpack.c.h.b16 %v3053
        %v3095 = vunpack.c.l.b16 %v3054
        %v3096 = vunpack.c.h.b16 %v3054
        %v3097 = vunpack.c.l.b16 %v3055
        %v3098 = vunpack.c.h.b16 %v3055
        %v3099 = vunpack.c.l.b16 %v3056
        %v3100 = vunpack.c.h.b16 %v3056
        %v3101 = vunpack.c.l.b16 %v3057
        %v3102 = vunpack.c.h.b16 %v3057
        %v3103 = vunpack.c.l.b16 %v3058
        %v3104 = vunpack.c.h.b16 %v3058
        %v3105 = vunpack.c.l.b16 %v3059
        %v3106 = vunpack.c.h.b16 %v3059
        %v3107 = vunpack.c.l.b16 %v3060
        %v3108 = vunpack.c.h.b16 %v3060
        %v3109 = vpack.c.b16 %v3079, %v3077
        %v3110 = vpack.c.b16 %v3080, %v3078
        %v3111 = vpack.c.b16 %v3083, %v3081
        %v3112 = vpack.c.b16 %v3084, %v3082
        %v3113 = vpack.c.b16 %v3087, %v3085
        %v3114 = vpack.c.b16 %v3088, %v3086
        %v3115 = vpack.c.b16 %v3091, %v3089
        %v3116 = vpack.c.b16 %v3092, %v3090
        %v3117 = vpack.c.b16 %v3095, %v3093
        %v3118 = vpack.c.b16 %v3096, %v3094
        %v3119 = vpack.c.b16 %v3099, %v3097
        %v3120 = vpack.c.b16 %v3100, %v3098
        %v3121 = vpack.c.b16 %v3103, %v3101
        %v3122 = vpack.c.b16 %v3104, %v3102
        %v3123 = vpack.c.b16 %v3107, %v3105
        %v3124 = vpack.c.b16 %v3108, %v3106
        %3141 = vmatpush.bf16.msra.mxu0 %v3123
        %3142 = vmatpush.bf16.msra.mxu0 %v3121
        %3143 = vmatpush.bf16.msra.mxu0 %v3119
        %3144 = vmatpush.bf16.msra.mxu0 %v3117
        %3145 = vmatpush.bf16.msra.mxu0 %v3115
        %3146 = vmatpush.bf16.msra.mxu0 %v3113
        %3147 = vmatpush.bf16.msra.mxu0 %v3111
        %3148 = vmatpush.bf16.msra.mxu0 %v3109
        %3149 = vmatmul.bf16.gmra.mxu0 %v2934
        %v3150 = vpop.f32.mrf.mxu0
        %v3151 = vadd.f32 0.0, %v3150
        %v3152 = vpop.f32.mrf.mxu0
        %v3153 = vadd.f32 0.0, %v3152
        %3154 = vdwg.mxu0
        %3155 = vmatpush.bf16.msra.mxu0 %v3124
        %3156 = vmatpush.bf16.msra.mxu0 %v3122
        %3157 = vmatpush.bf16.msra.mxu0 %v3120
        %3158 = vmatpush.bf16.msra.mxu0 %v3118
        %3159 = vmatpush.bf16.msra.mxu0 %v3116
        %3160 = vmatpush.bf16.msra.mxu0 %v3114
        %3161 = vmatpush.bf16.msra.mxu0 %v3112
        %3162 = vmatpush.bf16.msra.mxu0 %v3110
        %3163 = vmatmul.bf16.gmra.mxu0 %v2934
        %v3164 = vpop.f32.mrf.mxu0
        %v3165 = vadd.f32 0.0, %v3164
        %v3166 = vpop.f32.mrf.mxu0
        %v3167 = vadd.f32 0.0, %v3166
        %3168 = vdwg.mxu0
        %v3169 = vmul.f32 %v3026, %v3151
        %v3170 = vmul.f32 %v3040, %v3165
        %v3171 = vmul.f32 %v3028, %v3153
        %v3172 = vmul.f32 %v3042, %v3167
        %v3173 = vxor.u32 %v3169, 2147483648
        %v3174 = vxor.u32 %v3170, 2147483648
        %v3175 = vxor.u32 %v3171, 2147483648
        %v3176 = vxor.u32 %v3172, 2147483648
        %v3177 = vmul.f32 %v3173, 1.442695
        %v3178 = vpow.pop %v3177
        %v3179 = vmul.f32 %v3174, 1.442695
        %v3180 = vpow.pop %v3179
        %v3181 = vmul.f32 %v3175, 1.442695
        %v3182 = vpow.pop %v3181
        %v3183 = vmul.f32 %v3176, 1.442695
        %v3184 = vpow.pop %v3183
        %v3185 = vadd.f32 %v3178, 1.0
        %v3186 = vadd.f32 %v3180, 1.0
        %v3187 = vadd.f32 %v3182, 1.0
        %v3188 = vadd.f32 %v3184, 1.0
        %v3189 = vrcp.pop %v3185
        %v3190 = vmul.f32 %v3185, %v3189
        %v3191 = vsub.f32 1.0, %v3190
        %v3192 = vmul.f32 %v3189, %v3191
        %v3193 = vadd.f32 %v3189, %v3192
        %vm3194 = vweird.f32 %v3185
        %vm3195 = vweird.f32 %v3189
        %vm3196 = vmor %vm3194, %vm3195
        %v3197 = vsel %vm3196, %v3189, %v3193
        %v3198 = vand.u32 2147483647, %v3185
        %vm3199 = vcmp.eq.f32.partialorder %v3198, 8.507059e+37
        %v3200 = vand.u32 %v3185, 2147483648
        %v3201 = vor.u32 1.1754944e-38, %v3200
        %v3202 = vsel %vm3199, %v3201, %v3197
        %v3203 = vmul.f32 1.0, %v3202
        %v3204 = vrcp.pop %v3186
        %v3205 = vmul.f32 %v3186, %v3204
        %v3206 = vsub.f32 1.0, %v3205
        %v3207 = vmul.f32 %v3204, %v3206
        %v3208 = vadd.f32 %v3204, %v3207
        %vm3209 = vweird.f32 %v3186
        %vm3210 = vweird.f32 %v3204
        %vm3211 = vmor %vm3209, %vm3210
        %v3212 = vsel %vm3211, %v3204, %v3208
        %v3213 = vand.u32 2147483647, %v3186
        %vm3214 = vcmp.eq.f32.partialorder %v3213, 8.507059e+37
        %v3215 = vand.u32 %v3186, 2147483648
        %v3216 = vor.u32 1.1754944e-38, %v3215
        %v3217 = vsel %vm3214, %v3216, %v3212
        %v3218 = vmul.f32 1.0, %v3217
        %v3219 = vrcp.pop %v3187
        %v3220 = vmul.f32 %v3187, %v3219
        %v3221 = vsub.f32 1.0, %v3220
        %v3222 = vmul.f32 %v3219, %v3221
        %v3223 = vadd.f32 %v3219, %v3222
        %vm3224 = vweird.f32 %v3187
        %vm3225 = vweird.f32 %v3219
        %vm3226 = vmor %vm3224, %vm3225
        %v3227 = vsel %vm3226, %v3219, %v3223
        %v3228 = vand.u32 2147483647, %v3187
        %vm3229 = vcmp.eq.f32.partialorder %v3228, 8.507059e+37
        %v3230 = vand.u32 %v3187, 2147483648
        %v3231 = vor.u32 1.1754944e-38, %v3230
        %v3232 = vsel %vm3229, %v3231, %v3227
        %v3233 = vmul.f32 1.0, %v3232
        %v3234 = vrcp.pop %v3188
        %v3235 = vmul.f32 %v3188, %v3234
        %v3236 = vsub.f32 1.0, %v3235
        %v3237 = vmul.f32 %v3234, %v3236
        %v3238 = vadd.f32 %v3234, %v3237
        %vm3239 = vweird.f32 %v3188
        %vm3240 = vweird.f32 %v3234
        %vm3241 = vmor %vm3239, %vm3240
        %v3242 = vsel %vm3241, %v3234, %v3238
        %v3243 = vand.u32 2147483647, %v3188
        %vm3244 = vcmp.eq.f32.partialorder %v3243, 8.507059e+37
        %v3245 = vand.u32 %v3188, 2147483648
        %v3246 = vor.u32 1.1754944e-38, %v3245
        %v3247 = vsel %vm3244, %v3246, %v3242
        %v3248 = vmul.f32 1.0, %v3247
        %v3249 = vmul.f32 %v3169, %v3203
        %v3250 = vmul.f32 %v3170, %v3218
        %v3251 = vmul.f32 %v3171, %v3233
        %v3252 = vmul.f32 %v3172, %v3248
        %s3253 = scalar_lea.vmem [#allocation2], 80
        %v3254 = vld [vmem:[%s3253] sm:$0xff]
        %v3255 = vld [vmem:[%s3253 + $0x8] sm:$0xff]
        %v3256 = vpack.c.bf16 %v3251, %v3249
        %v3257 = vpack.c.bf16 %v3252, %v3250
        %s3258 = scalar_lea.vmem %s298, 640 [#allocation8]
        %v3259 = vld [vmem:[%s3258] sm:$0xf]
        %v3260 = vld [vmem:[%s3258 + $0x4] sm:$0xf]
        %v3261 = vld [vmem:[%s3258 + $0x8] sm:$0xf]
        %v3262 = vld [vmem:[%s3258 + $0xc] sm:$0xf]
        %v3263 = vld [vmem:[%s3258 + $0x10] sm:$0xf]
        %v3264 = vld [vmem:[%s3258 + $0x14] sm:$0xf]
        %v3265 = vld [vmem:[%s3258 + $0x18] sm:$0xf]
        %v3266 = vld [vmem:[%s3258 + $0x1c] sm:$0xf]
        %v3267 = vld [vmem:[%s3258 + $0x20] sm:$0xf]
        %v3268 = vld [vmem:[%s3258 + $0x24] sm:$0xf]
        %v3269 = vld [vmem:[%s3258 + $0x28] sm:$0xf]
        %v3270 = vld [vmem:[%s3258 + $0x2c] sm:$0xf]
        %v3271 = vld [vmem:[%s3258 + $0x30] sm:$0xf]
        %v3272 = vld [vmem:[%s3258 + $0x34] sm:$0xf]
        %v3273 = vld [vmem:[%s3258 + $0x38] sm:$0xf]
        %v3274 = vld [vmem:[%s3258 + $0x3c] sm:$0xf]
        %v3275 = vld [vmem:[%s3258 + $0x40] sm:$0xf]
        %v3276 = vld [vmem:[%s3258 + $0x44] sm:$0xf]
        %v3277 = vld [vmem:[%s3258 + $0x48] sm:$0xf]
        %v3278 = vld [vmem:[%s3258 + $0x4c] sm:$0xf]
        %v3279 = vld [vmem:[%s3258 + $0x50] sm:$0xf]
        %v3280 = vld [vmem:[%s3258 + $0x54] sm:$0xf]
        %v3281 = vld [vmem:[%s3258 + $0x58] sm:$0xf]
        %v3282 = vld [vmem:[%s3258 + $0x5c] sm:$0xf]
        %v3283 = vld [vmem:[%s3258 + $0x60] sm:$0xf]
        %v3284 = vld [vmem:[%s3258 + $0x64] sm:$0xf]
        %v3285 = vld [vmem:[%s3258 + $0x68] sm:$0xf]
        %v3286 = vld [vmem:[%s3258 + $0x6c] sm:$0xf]
        %v3287 = vld [vmem:[%s3258 + $0x70] sm:$0xf]
        %v3288 = vld [vmem:[%s3258 + $0x74] sm:$0xf]
        %v3289 = vld [vmem:[%s3258 + $0x78] sm:$0xf]
        %v3290 = vld [vmem:[%s3258 + $0x7c] sm:$0xf]
        %v3323 = vunpack.c.l.b16 %v3259
        %v3324 = vunpack.c.l.b16 %v3260
        %v3325 = vunpack.c.l.b16 %v3261
        %v3326 = vunpack.c.l.b16 %v3262
        %v3327 = vunpack.c.l.b16 %v3263
        %v3328 = vunpack.c.l.b16 %v3264
        %v3329 = vunpack.c.l.b16 %v3265
        %v3330 = vunpack.c.l.b16 %v3266
        %v3331 = vunpack.c.l.b16 %v3267
        %v3332 = vunpack.c.l.b16 %v3268
        %v3333 = vunpack.c.l.b16 %v3269
        %v3334 = vunpack.c.l.b16 %v3270
        %v3335 = vunpack.c.l.b16 %v3271
        %v3336 = vunpack.c.l.b16 %v3272
        %v3337 = vunpack.c.l.b16 %v3273
        %v3338 = vunpack.c.l.b16 %v3274
        %v3339 = vunpack.c.l.b16 %v3275
        %v3340 = vunpack.c.l.b16 %v3276
        %v3341 = vunpack.c.l.b16 %v3277
        %v3342 = vunpack.c.l.b16 %v3278
        %v3343 = vunpack.c.l.b16 %v3279
        %v3344 = vunpack.c.l.b16 %v3280
        %v3345 = vunpack.c.l.b16 %v3281
        %v3346 = vunpack.c.l.b16 %v3282
        %v3347 = vunpack.c.l.b16 %v3283
        %v3348 = vunpack.c.l.b16 %v3284
        %v3349 = vunpack.c.l.b16 %v3285
        %v3350 = vunpack.c.l.b16 %v3286
        %v3351 = vunpack.c.l.b16 %v3287
        %v3352 = vunpack.c.l.b16 %v3288
        %v3353 = vunpack.c.l.b16 %v3289
        %v3354 = vunpack.c.l.b16 %v3290
        %v3355 = vpack.c.b16 %v3324, %v3323
        %v3356 = vpack.c.b16 %v3326, %v3325
        %v3357 = vpack.c.b16 %v3328, %v3327
        %v3358 = vpack.c.b16 %v3330, %v3329
        %v3359 = vpack.c.b16 %v3332, %v3331
        %v3360 = vpack.c.b16 %v3334, %v3333
        %v3361 = vpack.c.b16 %v3336, %v3335
        %v3362 = vpack.c.b16 %v3338, %v3337
        %v3363 = vpack.c.b16 %v3340, %v3339
        %v3364 = vpack.c.b16 %v3342, %v3341
        %v3365 = vpack.c.b16 %v3344, %v3343
        %v3366 = vpack.c.b16 %v3346, %v3345
        %v3367 = vpack.c.b16 %v3348, %v3347
        %v3368 = vpack.c.b16 %v3350, %v3349
        %v3369 = vpack.c.b16 %v3352, %v3351
        %v3370 = vpack.c.b16 %v3354, %v3353
        %3387 = vmatpush.bf16.msra.mxu0 %v3362
        %3388 = vmatpush.bf16.msra.mxu0 %v3361
        %3389 = vmatpush.bf16.msra.mxu0 %v3360
        %3390 = vmatpush.bf16.msra.mxu0 %v3359
        %3391 = vmatpush.bf16.msra.mxu0 %v3358
        %3392 = vmatpush.bf16.msra.mxu0 %v3357
        %3393 = vmatpush.bf16.msra.mxu0 %v3356
        %3394 = vmatpush.bf16.msra.mxu0 %v3355
        %3395 = vmatmul.bf16.gmra.mxu0 %v3256
        %v3396 = vpop.f32.mrf.mxu0
        %v3397 = vadd.f32 0.0, %v3396
        %v3398 = vpop.f32.mrf.mxu0
        %v3399 = vadd.f32 0.0, %v3398
        %3400 = vdwg.mxu0
        %3401 = vmatpush.bf16.msra.mxu0 %v3370
        %3402 = vmatpush.bf16.msra.mxu0 %v3369
        %3403 = vmatpush.bf16.msra.mxu0 %v3368
        %3404 = vmatpush.bf16.msra.mxu0 %v3367
        %3405 = vmatpush.bf16.msra.mxu0 %v3366
        %3406 = vmatpush.bf16.msra.mxu0 %v3365
        %3407 = vmatpush.bf16.msra.mxu0 %v3364
        %3408 = vmatpush.bf16.msra.mxu0 %v3363
        %3409 = vmatmul.bf16.gmra.mxu0 %v3257
        %v3410 = vpop.f32.mrf.mxu0
        %v3411 = vadd.f32 %v3397, %v3410
        %v3412 = vpop.f32.mrf.mxu0
        %v3413 = vadd.f32 %v3399, %v3412
        %3414 = vdwg.mxu0
        %v3415 = vadd.f32 %v3254, %v3411
        %v3416 = vadd.f32 %v3255, %v3413
        %3417 = vst [vmem:[%s3253] sm:$0xff] %v3415
        %3418 = vst [vmem:[%s3253 + $0x8] sm:$0xff] %v3416
        // Predicated region
        $region53: #{tpu_custom_call.1} parent=35 // pred_check
          %p3419 = pneg %p353
        $region54: #{tpu_custom_call.1} parent=35 // pred_check_branch
          %3421 = sbr.rel (%p3419) target = $region56
        $region55: #{tpu_custom_call.1} parent=35 // pred_region
          %v3422 = vld [vmem:[#allocation2] sm:$0xff]
          %v3423 = vld [vmem:[#allocation2 + $0x8] sm:$0xff]
          %v3424 = vld [vmem:[#allocation2 + $0x10] sm:$0xff]
          %v3425 = vld [vmem:[#allocation2 + $0x18] sm:$0xff]
          %v3426 = vld [vmem:[#allocation2 + $0x20] sm:$0xff]
          %v3427 = vld [vmem:[#allocation2 + $0x28] sm:$0xff]
          %v3428 = vld [vmem:[#allocation2 + $0x30] sm:$0xff]
          %v3429 = vld [vmem:[#allocation2 + $0x38] sm:$0xff]
          %v3430 = vld [vmem:[#allocation2 + $0x40] sm:$0xff]
          %v3431 = vld [vmem:[#allocation2 + $0x48] sm:$0xff]
          %v3432 = vld [vmem:[#allocation2 + $0x50] sm:$0xff]
          %v3433 = vld [vmem:[#allocation2 + $0x58] sm:$0xff]
          %v3434 = vld [vmem:[%s350] sm:$0xff]
          %v3435 = vld [vmem:[%s350 + $0x8] sm:$0xff]
          %v3436 = vld [vmem:[%s350 + $0x10] sm:$0xff]
          %v3437 = vld [vmem:[%s350 + $0x18] sm:$0xff]
          %v3438 = vld [vmem:[%s350 + $0x20] sm:$0xff]
          %v3439 = vld [vmem:[%s350 + $0x28] sm:$0xff]
          %v3440 = vld [vmem:[%s350 + $0x30] sm:$0xff]
          %v3441 = vld [vmem:[%s350 + $0x38] sm:$0xff]
          %v3442 = vld [vmem:[%s350 + $0x40] sm:$0xff]
          %v3443 = vld [vmem:[%s350 + $0x48] sm:$0xff]
          %v3444 = vld [vmem:[%s350 + $0x50] sm:$0xff]
          %v3445 = vld [vmem:[%s350 + $0x58] sm:$0xff]
          %3447 = vset.pattern.permute.xlu0 0
          %3448 = vperm.xlu0 %3447, %v3434
          %v3449 = vpop.permute.xlu0 %3448
          %3452 = vset.pattern.permute.xlu0 0
          %3453 = vperm.xlu0 %3452, %v3435
          %v3454 = vpop.permute.xlu0 %3453
          %3457 = vset.pattern.permute.xlu0 0
          %3458 = vperm.xlu0 %3457, %v3436
          %v3459 = vpop.permute.xlu0 %3458
          %3462 = vset.pattern.permute.xlu0 0
          %3463 = vperm.xlu0 %3462, %v3437
          %v3464 = vpop.permute.xlu0 %3463
          %3467 = vset.pattern.permute.xlu0 0
          %3468 = vperm.xlu0 %3467, %v3438
          %v3469 = vpop.permute.xlu0 %3468
          %3472 = vset.pattern.permute.xlu0 0
          %3473 = vperm.xlu0 %3472, %v3439
          %v3474 = vpop.permute.xlu0 %3473
          %3477 = vset.pattern.permute.xlu0 0
          %3478 = vperm.xlu0 %3477, %v3440
          %v3479 = vpop.permute.xlu0 %3478
          %3482 = vset.pattern.permute.xlu0 0
          %3483 = vperm.xlu0 %3482, %v3441
          %v3484 = vpop.permute.xlu0 %3483
          %3487 = vset.pattern.permute.xlu0 0
          %3488 = vperm.xlu0 %3487, %v3442
          %v3489 = vpop.permute.xlu0 %3488
          %3492 = vset.pattern.permute.xlu0 0
          %3493 = vperm.xlu0 %3492, %v3443
          %v3494 = vpop.permute.xlu0 %3493
          %3497 = vset.pattern.permute.xlu0 0
          %3498 = vperm.xlu0 %3497, %v3444
          %v3499 = vpop.permute.xlu0 %3498
          %3502 = vset.pattern.permute.xlu0 0
          %3503 = vperm.xlu0 %3502, %v3445
          %v3504 = vpop.permute.xlu0 %3503
          %v3506 = vmul.f32 %v3422, %v3449
          %v3507 = vmul.f32 %v3423, %v3454
          %v3508 = vmul.f32 %v3424, %v3459
          %v3509 = vmul.f32 %v3425, %v3464
          %v3510 = vmul.f32 %v3426, %v3469
          %v3511 = vmul.f32 %v3427, %v3474
          %v3512 = vmul.f32 %v3428, %v3479
          %v3513 = vmul.f32 %v3429, %v3484
          %v3514 = vmul.f32 %v3430, %v3489
          %v3515 = vmul.f32 %v3431, %v3494
          %v3516 = vmul.f32 %v3432, %v3499
          %v3517 = vmul.f32 %v3433, %v3504
          %3518 = vst [vmem:[%s339] sm:$0xff] %v3506
          %3519 = vst [vmem:[%s339 + $0x8] sm:$0xff] %v3507
          %3520 = vst [vmem:[%s339 + $0x10] sm:$0xff] %v3508
          %3521 = vst [vmem:[%s339 + $0x18] sm:$0xff] %v3509
          %3522 = vst [vmem:[%s339 + $0x20] sm:$0xff] %v3510
          %3523 = vst [vmem:[%s339 + $0x28] sm:$0xff] %v3511
          %3524 = vst [vmem:[%s339 + $0x30] sm:$0xff] %v3512
          %3525 = vst [vmem:[%s339 + $0x38] sm:$0xff] %v3513
          %3526 = vst [vmem:[%s339 + $0x40] sm:$0xff] %v3514
          %3527 = vst [vmem:[%s339 + $0x48] sm:$0xff] %v3515
          %3528 = vst [vmem:[%s339 + $0x50] sm:$0xff] %v3516
          %3529 = vst [vmem:[%s339 + $0x58] sm:$0xff] %v3517
        $region56: #{tpu_custom_call.1} parent=35 // pred_fallthru
          _
        %s3530 = sand.u32 %s152, 1
        %s3531 = scalar_lea.sflag [#allocation5], %s3530
        %s3532 = sand.u32 %s152, 1
        %s3533 = smul.addr %s3532, 96
        %s3534 = scalar_lea.vmem [#allocation9], %s3533
        // Predicated region
        $region57: #{tpu_custom_call.1} parent=35 // pred_check
          %p3535 = pneg %p162
        $region58: #{tpu_custom_call.1} parent=35 // pred_check_branch
          %3537 = sbr.rel (%p3535) target = $region60
        $region59: #{tpu_custom_call.1} parent=35 // pred_region
          %s3538 = smul.u32 6, %s28
          %3540 = vsyncadd %s3531, 0
          %s3541 = smul.addr %s3538, 2
          %s3542 = smul.addr %s3541, 8
          %s3543 = scalar_lea.hbm %s4, %s3542
          %s3544 = sshll.u32 %s3534, 4
          %s3545 = int_to_ptr.vmem [resolvable:$true] %s3544
          %s3546 = sshll.u32 %s3543, 4
          %s3547 = int_to_ptr.hbm [resolvable:$true] %s3546
          %3552 = dma.vmem_to_hbm [thread:$0]  %s3545, 1536, %s3547, %s3531, 128, 128, 8
        $region60: #{tpu_custom_call.1} parent=35 // pred_fallthru
          _
      $region36: #{tpu_custom_call.1} parent=5 // pred_fallthru
        _
      %p3553 = scmp.le.s32.totalorder 2, %s19
      // Predicated region
      $region61: #{tpu_custom_call.1} parent=5 // pred_check
        %p3554 = pneg %p3553
      $region62: #{tpu_custom_call.1} parent=5 // pred_check_branch
        %3556 = sbr.rel (%p3554) target = $region64
      $region63: #{tpu_custom_call.1} parent=5 // pred_region
        %s3557 = ssub.s32 %s19, 2
        // Predicated region
        $region65: #{tpu_custom_call.1} parent=63 // pred_check
          %p3558 = pneg %p168
        $region66: #{tpu_custom_call.1} parent=63 // pred_check_branch
          %3560 = sbr.rel (%p3558) target = $region68
        $region67: #{tpu_custom_call.1} parent=63 // pred_region
          %s3561 = sand.u32 %s153, 1
          %s3562 = scalar_lea.sflag [#allocation5], %s3561
          %s3563 = sand.u32 %s153, 1
          %s3564 = smul.addr %s3563, 96
          %s3565 = scalar_lea.vmem [#allocation9], %s3564
          %3567 = dma.done %s3562, 1536
        $region68: #{tpu_custom_call.1} parent=63 // pred_fallthru
          _
      $region64: #{tpu_custom_call.1} parent=5 // pred_fallthru
        _
    $region6: #{tpu_custom_call.1} parent=1 // loop_footer
      %s23 = sadd.s32 1, %s19
    $region7: #{tpu_custom_call.1} parent=1 // loop_footer_branch
      %18 = sbr.rel target = $region3
    $region8: #{tpu_custom_call.1} parent=1 // loop_exit
      _
    %3568 = vsyncpa [#allocation4], 1
    %s3569 = scalar_lea.sflag [#allocation4], 1
    %3570 = vsyncpa %s3569, 1
    %3571 = vsyncpa [#allocation7], 1
    %s3572 = scalar_lea.sflag [#allocation7], 1
    %3573 = vsyncpa %s3572, 1
    %3574 = vsyncpa [#allocation5], 1
    %s3575 = scalar_lea.sflag [#allocation5], 1
    %3576 = vsyncpa %s3575, 1

</llo_original>
